<compile_context>
chip_gen: v7x
topology: tpu7x:2x2x1
jax: 0.10.0
libtpu: 0.0.40
codegen_flags: <defaults>
</compile_context>

<pallas_src>
import math

import jax
import jax.numpy as jnp
from jax.experimental import pallas as pl
from jax.experimental.pallas import tpu as pltpu

# ---------------- model hyper-parameters (small, self-consistent) ------------
B, S, D = 2, 8, 32          # batch, seq len, embedding dimension
H = 4                        # number of attention heads
DH = D // H                  # head dim
F = 64                       # feed-forward hidden dim
NUM_LAYERS = 2
LN_EPS = 1e-5                # torch.nn.LayerNorm default

# ---------------- parameter-slab layout (single packed f32 array) ------------
WSLAB_COLS = 3 * D + D + F                 # 192: [wqkv | wo | w1] width
ROW_WA = 0                                 # per layer: D rows of [wqkv|wo|w1]
ROW_W2 = ROW_WA + NUM_LAYERS * D           # per layer: F rows of w2 (cols 0:D)
ROW_VEC = ROW_W2 + NUM_LAYERS * F          # per layer: 8 bias/LN rows
ROW_FN = ROW_VEC + NUM_LAYERS * 8          # final LayerNorm gamma/beta rows
TOTAL_ROWS = ROW_FN + 8                    # padded to a sublane multiple


# ------------------------------ kernel ----------------------------------------
def _layer_norm(v, g, b):
    mu = jnp.mean(v, axis=-1, keepdims=True)
    var = jnp.mean((v - mu) ** 2, axis=-1, keepdims=True)
    return (v - mu) * jax.lax.rsqrt(var + LN_EPS) * g + b


def encoder_kernel(x_ref, mask_ref, w_ref, out_ref):
    x = x_ref[...]                               # (B*S, D)
    mask = mask_ref[...]                         # (B, S); 1.0 = valid key, 0.0 = pad
    # additive key-padding bias, tiled once to the (head*batch) attention batch
    neg = ((1.0 - mask) * -1e9).reshape(B, 1, S)             # (B, 1, S)
    bias = jnp.concatenate([neg] * H, axis=0)                # (H*B, 1, S); n = h*B + b

    for l in range(NUM_LAYERS):                  # static unroll over layers
        # ---- static slices out of the single packed parameter slab ----
        wa = ROW_WA + l * D
        wqkv = w_ref[wa:wa + D, 0:3 * D]                     # (D, 3D) per-head [q|k|v]; q pre-scaled
        wo = w_ref[wa:wa + D, 3 * D:4 * D]                   # (D, D)
        w1 = w_ref[wa:wa + D, 4 * D:4 * D + F]               # (D, F)
        w2 = w_ref[ROW_W2 + l * F:ROW_W2 + (l + 1) * F, 0:D]  # (F, D)

        vr = ROW_VEC + l * 8
        ln1_g = w_ref[vr + 0:vr + 1, 0:D]
        ln1_b = w_ref[vr + 1:vr + 2, 0:D]
        bqkv = w_ref[vr + 2:vr + 3, 0:3 * D]
        bo = w_ref[vr + 3:vr + 4, 0:D]
        ln2_g = w_ref[vr + 4:vr + 5, 0:D]
        ln2_b = w_ref[vr + 5:vr + 6, 0:D]
        b1 = w_ref[vr + 6:vr + 7, 0:F]
        b2 = w_ref[vr + 7:vr + 8, 0:D]

        # ---- self-attention sublayer (pre-norm + residual); dropout = identity ----
        h_ln = _layer_norm(x, ln1_g, ln1_b)
        qkv = jnp.dot(h_ln, wqkv, preferred_element_type=jnp.float32) + bqkv  # (B*S, 3D)
        qkv3 = qkv.reshape(B, S, 3 * D)                       # free leading-dim split

        # head split: one 3*DH-wide lane slice per head + one leading-axis concat
        qkv_h = jnp.concatenate(
            [qkv3[:, :, hh * 3 * DH:(hh + 1) * 3 * DH] for hh in range(H)],
            axis=0)                                           # (H*B, S, 3*DH)
        q = qkv_h[:, :, 0:DH]                                 # scale already folded into wqkv
        k = qkv_h[:, :, DH:2 * DH]
        v = qkv_h[:, :, 2 * DH:3 * DH]

        # batched attention over the whole (head, batch) space at once
        s = jnp.einsum('nqd,nkd->nqk', q, k, preferred_element_type=jnp.float32)
        s = s + bias
        s = s - jnp.max(s, axis=-1, keepdims=True)
        p = jnp.exp(s)
        p = p * pl.reciprocal(jnp.sum(p, axis=-1, keepdims=True), approx=True)
        o = jnp.einsum('nqk,nkd->nqd', p, v, preferred_element_type=jnp.float32)  # (H*B, S, DH)

        # reassemble heads back into the lane dim: H leading slices + one lane concat
        attn = jnp.concatenate([o[hh * B:(hh + 1) * B] for hh in range(H)],
                               axis=-1)                       # (B, S, D)
        attn = attn.reshape(B * S, D)                         # free leading-dim merge
        attn = jnp.dot(attn, wo, preferred_element_type=jnp.float32) + bo
        x = x + attn

        # ---- feed-forward sublayer (pre-norm + residual) ----
        h2 = _layer_norm(x, ln2_g, ln2_b)
        ff = jnp.dot(h2, w1, preferred_element_type=jnp.float32) + b1
        ff = jnp.maximum(ff, 0.0)
        ff = jnp.dot(ff, w2, preferred_element_type=jnp.float32) + b2
        x = x + ff

    # ---- final encoder LayerNorm ----
    fn_g = w_ref[ROW_FN + 0:ROW_FN + 1, 0:D]
    fn_b = w_ref[ROW_FN + 1:ROW_FN + 2, 0:D]
    out_ref[...] = _layer_norm(x, fn_g, fn_b)


# ------------------------------ wrapper ----------------------------------------
@jax.jit
def encoder_forward(src, src_padding_mask, param_slab):
    x2 = src.astype(jnp.float32).reshape(B * S, D)
    mask2 = src_padding_mask.astype(jnp.float32).reshape(B, S)

    vmem = lambda: pl.BlockSpec(memory_space=pltpu.MemorySpace.VMEM)
    out2 = pl.pallas_call(
        encoder_kernel,
        out_shape=jax.ShapeDtypeStruct((B * S, D), jnp.float32),
        in_specs=[vmem(), vmem(), vmem()],
        out_specs=vmem(),
    )(x2, mask2, param_slab)
    return out2.reshape(B, S, D)


# ------------------------------ parameter init / packing -----------------------
def init_params(key):
    """Builds all layer weights and packs them into ONE contiguous f32 slab.

    One-time transforms done here (NOT per call):
      * Q/K/V fused and column-reordered per head ([q_h | k_h | v_h] blocks).
      * 1/sqrt(DH) attention scale folded into the Q columns (weights + bias).
    """
    scale = 1.0 / math.sqrt(DH)

    def dense(k, fan_in, fan_out):
        return jax.random.normal(k, (fan_in, fan_out), jnp.float32) * 0.02

    slab = jnp.zeros((TOTAL_ROWS, WSLAB_COLS), jnp.float32)

    for l in range(NUM_LAYERS):
        ks = jax.random.split(jax.random.fold_in(key, l), 6)
        wq, wk, wv = dense(ks[0], D, D), dense(ks[1], D, D), dense(ks[2], D, D)
        wo, w1, w2 = dense(ks[3], D, D), dense(ks[4], D, F), dense(ks[5], F, D)
        bq = bk = bv = jnp.zeros((D,), jnp.float32)
        bo = b2 = jnp.zeros((D,), jnp.float32)
        b1 = jnp.zeros((F,), jnp.float32)
        ln1_g = ln2_g = jnp.ones((D,), jnp.float32)
        ln1_b = ln2_b = jnp.zeros((D,), jnp.float32)

        # fused QKV, per-head column blocks, attention scale folded into Q
        wcols, bcols = [], []
        for h in range(H):
            sl = slice(h * DH, (h + 1) * DH)
            wcols += [wq[:, sl] * scale, wk[:, sl], wv[:, sl]]
            bcols += [bq[sl] * scale, bk[sl], bv[sl]]
        wqkv = jnp.concatenate(wcols, axis=1)        # (D, 3D)
        bqkv = jnp.concatenate(bcols)                # (3D,)

        r = ROW_WA + l * D
        slab = slab.at[r:r + D, 0:3 * D].set(wqkv)
        slab = slab.at[r:r + D, 3 * D:4 * D].set(wo)
        slab = slab.at[r:r + D, 4 * D:4 * D + F].set(w1)
        slab = slab.at[ROW_W2 + l * F:ROW_W2 + (l + 1) * F, 0:D].set(w2)

        for i, vec in enumerate([ln1_g, ln1_b, bqkv, bo, ln2_g, ln2_b, b1, b2]):
            slab = slab.at[ROW_VEC + l * 8 + i, 0:vec.shape[0]].set(vec)

    slab = slab.at[ROW_FN + 0, 0:D].set(jnp.ones((D,), jnp.float32))   # final norm gamma
    slab = slab.at[ROW_FN + 1, 0:D].set(jnp.zeros((D,), jnp.float32))  # final norm beta
    return slab


# ------------------------------ main --------------------------------------------
if __name__ == "__main__":
    key = jax.random.PRNGKey(0)
    k_src, k_par = jax.random.split(key)

    src = jax.random.normal(k_src, (B, S, D), jnp.float32)
    # padding mask convention: 1.0 = valid token, 0.0 = padded
    # (inverse of torch's key_padding_mask True=pad; callers must convert).
    src_padding_mask = jnp.ones((B, S), jnp.float32).at[1, -2:].set(0.0)

    param_slab = init_params(k_par)

    out = encoder_forward(src, src_padding_mask, param_slab)
    jax.block_until_ready(out)
    assert out.shape == (B, S, D)
    assert bool(jnp.all(jnp.isfinite(out)))
    print("KERNEL_OK")
</pallas_src>

<mosaic_0001>
module attributes {stable_mosaic.version = 11 : i64} {
  func.func @encoder_kernel(%arg0: memref<16x32xf32, #tpu.memory_space<vmem>>, %arg1: memref<2x8xf32, #tpu.memory_space<vmem>>, %arg2: memref<216x192xf32, #tpu.memory_space<vmem>>, %arg3: memref<16x32xf32, #tpu.memory_space<vmem>>) attributes {dimension_semantics = [], scalar_prefetch = 0 : i64, scratch_operands = 0 : i64, tpu.core_type = #tpu.core_type<tc>} {
    %c0 = arith.constant 0 : index
    %c0_0 = arith.constant 0 : index
    %0 = vector.load %arg0[%c0, %c0_0] : memref<16x32xf32, #tpu.memory_space<vmem>>, vector<16x32xf32>
    %c0_1 = arith.constant 0 : index
    %c0_2 = arith.constant 0 : index
    %1 = vector.load %arg1[%c0_1, %c0_2] : memref<2x8xf32, #tpu.memory_space<vmem>>, vector<2x8xf32>
    %cst = arith.constant 1.000000e+00 : f32
    %2 = vector.broadcast %cst : f32 to vector<2x8xf32>
    %3 = arith.subf %2, %1 : vector<2x8xf32>
    %cst_3 = arith.constant -1.000000e+09 : f32
    %4 = vector.broadcast %cst_3 : f32 to vector<2x8xf32>
    %5 = arith.mulf %3, %4 : vector<2x8xf32>
    %6 = vector.shape_cast %5 : vector<2x8xf32> to vector<2x1x8xf32>
    %7 = tpu.concatenate %6, %6, %6, %6 in 0 : vector<2x1x8xf32>, vector<2x1x8xf32>, vector<2x1x8xf32>, vector<2x1x8xf32> -> vector<8x1x8xf32>
    %c0_4 = arith.constant 0 : index
    %c0_5 = arith.constant 0 : index
    %8 = vector.load %arg2[%c0_4, %c0_5] : memref<216x192xf32, #tpu.memory_space<vmem>>, vector<32x96xf32>
    %c0_6 = arith.constant 0 : index
    %c96 = arith.constant 96 : index
    %9 = vector.load %arg2[%c0_6, %c96] : memref<216x192xf32, #tpu.memory_space<vmem>>, vector<32x32xf32>
    %c0_7 = arith.constant 0 : index
    %c128 = arith.constant 128 : index
    %10 = vector.load %arg2[%c0_7, %c128] : memref<216x192xf32, #tpu.memory_space<vmem>>, vector<32x64xf32>
    %c64 = arith.constant 64 : index
    %c0_8 = arith.constant 0 : index
    %11 = vector.load %arg2[%c64, %c0_8] : memref<216x192xf32, #tpu.memory_space<vmem>>, vector<64x32xf32>
    %c192 = arith.constant 192 : index
    %c0_9 = arith.constant 0 : index
    %12 = vector.load %arg2[%c192, %c0_9] : memref<216x192xf32, #tpu.memory_space<vmem>>, vector<1x32xf32>
    %c193 = arith.constant 193 : index
    %c0_10 = arith.constant 0 : index
    %13 = vector.load %arg2[%c193, %c0_10] : memref<216x192xf32, #tpu.memory_space<vmem>>, vector<1x32xf32>
    %c194 = arith.constant 194 : index
    %c0_11 = arith.constant 0 : index
    %14 = vector.load %arg2[%c194, %c0_11] : memref<216x192xf32, #tpu.memory_space<vmem>>, vector<1x96xf32>
    %c195 = arith.constant 195 : index
    %c0_12 = arith.constant 0 : index
    %15 = vector.load %arg2[%c195, %c0_12] : memref<216x192xf32, #tpu.memory_space<vmem>>, vector<1x32xf32>
    %c196 = arith.constant 196 : index
    %c0_13 = arith.constant 0 : index
    %16 = vector.load %arg2[%c196, %c0_13] : memref<216x192xf32, #tpu.memory_space<vmem>>, vector<1x32xf32>
    %c197 = arith.constant 197 : index
    %c0_14 = arith.constant 0 : index
    %17 = vector.load %arg2[%c197, %c0_14] : memref<216x192xf32, #tpu.memory_space<vmem>>, vector<1x32xf32>
    %c198 = arith.constant 198 : index
    %c0_15 = arith.constant 0 : index
    %18 = vector.load %arg2[%c198, %c0_15] : memref<216x192xf32, #tpu.memory_space<vmem>>, vector<1x64xf32>
    %c199 = arith.constant 199 : index
    %c0_16 = arith.constant 0 : index
    %19 = vector.load %arg2[%c199, %c0_16] : memref<216x192xf32, #tpu.memory_space<vmem>>, vector<1x32xf32>
    %cst_17 = arith.constant dense<0.000000e+00> : vector<16xf32>
    %20 = vector.multi_reduction <add>, %0, %cst_17 [1] : vector<16x32xf32> to vector<16xf32>
    %21 = vector.shape_cast %20 : vector<16xf32> to vector<16x1xf32>
    %cst_18 = arith.constant 3.200000e+01 : f32
    %22 = vector.broadcast %cst_18 : f32 to vector<16x1xf32>
    %23 = arith.divf %21, %22 : vector<16x1xf32>
    %24 = vector.broadcast %23 : vector<16x1xf32> to vector<16x32xf32>
    %25 = arith.subf %0, %24 : vector<16x32xf32>
    %26 = arith.mulf %25, %25 : vector<16x32xf32>
    %cst_19 = arith.constant dense<0.000000e+00> : vector<16xf32>
    %27 = vector.multi_reduction <add>, %26, %cst_19 [1] : vector<16x32xf32> to vector<16xf32>
    %28 = vector.shape_cast %27 : vector<16xf32> to vector<16x1xf32>
    %cst_20 = arith.constant 3.200000e+01 : f32
    %29 = vector.broadcast %cst_20 : f32 to vector<16x1xf32>
    %30 = arith.divf %28, %29 : vector<16x1xf32>
    %31 = vector.broadcast %23 : vector<16x1xf32> to vector<16x32xf32>
    %32 = arith.subf %0, %31 : vector<16x32xf32>
    %cst_21 = arith.constant 9.99999974E-6 : f32
    %33 = vector.broadcast %cst_21 : f32 to vector<16x1xf32>
    %34 = arith.addf %30, %33 : vector<16x1xf32>
    %35 = math.rsqrt %34 : vector<16x1xf32>
    %36 = vector.broadcast %35 : vector<16x1xf32> to vector<16x32xf32>
    %37 = arith.mulf %32, %36 : vector<16x32xf32>
    %38 = vector.broadcast %12 : vector<1x32xf32> to vector<16x32xf32>
    %39 = arith.mulf %37, %38 : vector<16x32xf32>
    %40 = vector.broadcast %13 : vector<1x32xf32> to vector<16x32xf32>
    %41 = arith.addf %39, %40 : vector<16x32xf32>
    %cst_22 = arith.constant dense<0.000000e+00> : vector<16x96xf32>
    %42 = tpu.matmul %41, %8, %cst_22 {dimension_numbers = #tpu.dot_dimension_numbers<[1], [0], [0], [1], [0, 0, 1, 1], [], []>} : vector<16x32xf32>, vector<32x96xf32>, vector<16x96xf32> -> vector<16x96xf32>
    %43 = vector.broadcast %14 : vector<1x96xf32> to vector<16x96xf32>
    %44 = arith.addf %42, %43 : vector<16x96xf32>
    %45 = vector.shape_cast %44 : vector<16x96xf32> to vector<2x8x96xf32>
    %46 = vector.extract_strided_slice %45 {offsets = [0, 0, 0], sizes = [2, 8, 24], strides = [1, 1, 1]} : vector<2x8x96xf32> to vector<2x8x24xf32>
    %47 = vector.extract_strided_slice %45 {offsets = [0, 0, 24], sizes = [2, 8, 24], strides = [1, 1, 1]} : vector<2x8x96xf32> to vector<2x8x24xf32>
    %48 = vector.extract_strided_slice %45 {offsets = [0, 0, 48], sizes = [2, 8, 24], strides = [1, 1, 1]} : vector<2x8x96xf32> to vector<2x8x24xf32>
    %49 = vector.extract_strided_slice %45 {offsets = [0, 0, 72], sizes = [2, 8, 24], strides = [1, 1, 1]} : vector<2x8x96xf32> to vector<2x8x24xf32>
    %50 = tpu.concatenate %46, %47, %48, %49 in 0 : vector<2x8x24xf32>, vector<2x8x24xf32>, vector<2x8x24xf32>, vector<2x8x24xf32> -> vector<8x8x24xf32>
    %51 = vector.extract_strided_slice %50 {offsets = [0, 0, 0], sizes = [8, 8, 8], strides = [1, 1, 1]} : vector<8x8x24xf32> to vector<8x8x8xf32>
    %52 = vector.extract_strided_slice %50 {offsets = [0, 0, 8], sizes = [8, 8, 8], strides = [1, 1, 1]} : vector<8x8x24xf32> to vector<8x8x8xf32>
    %53 = vector.extract_strided_slice %50 {offsets = [0, 0, 16], sizes = [8, 8, 8], strides = [1, 1, 1]} : vector<8x8x24xf32> to vector<8x8x8xf32>
    "tpu.trace_start"() <{level = 10 : i32, message = "nqd,nkd->nqk"}> : () -> ()
    %cst_23 = arith.constant dense<0.000000e+00> : vector<8x8x8xf32>
    %54 = tpu.matmul %51, %52, %cst_23 {dimension_numbers = #tpu.dot_dimension_numbers<[2], [2], [1], [1], [0, 0, 0, 1, 1, 1], [0], [0]>} : vector<8x8x8xf32>, vector<8x8x8xf32>, vector<8x8x8xf32> -> vector<8x8x8xf32>
    "tpu.trace_stop"() : () -> ()
    %55 = vector.broadcast %7 : vector<8x1x8xf32> to vector<8x8x8xf32>
    %56 = arith.addf %54, %55 : vector<8x8x8xf32>
    %cst_24 = arith.constant dense<0xFF800000> : vector<8x8xf32>
    %57 = vector.multi_reduction <maximumf>, %56, %cst_24 [2] : vector<8x8x8xf32> to vector<8x8xf32>
    %58 = vector.shape_cast %57 : vector<8x8xf32> to vector<8x8x1xf32>
    %59 = vector.broadcast %58 : vector<8x8x1xf32> to vector<8x8x8xf32>
    %60 = arith.subf %56, %59 : vector<8x8x8xf32>
    %61 = math.exp %60 : vector<8x8x8xf32>
    %cst_25 = arith.constant dense<0.000000e+00> : vector<8x8xf32>
    %62 = vector.multi_reduction <add>, %61, %cst_25 [2] : vector<8x8x8xf32> to vector<8x8xf32>
    %63 = vector.shape_cast %62 : vector<8x8xf32> to vector<8x8x1xf32>
    %64 = tpu.reciprocal %63 {approx = true} : vector<8x8x1xf32> -> vector<8x8x1xf32>
    %65 = vector.broadcast %64 : vector<8x8x1xf32> to vector<8x8x8xf32>
    %66 = arith.mulf %61, %65 : vector<8x8x8xf32>
    "tpu.trace_start"() <{level = 10 : i32, message = "nqk,nkd->nqd"}> : () -> ()
    %cst_26 = arith.constant dense<0.000000e+00> : vector<8x8x8xf32>
    %67 = tpu.matmul %66, %53, %cst_26 {dimension_numbers = #tpu.dot_dimension_numbers<[2], [1], [1], [2], [0, 0, 0, 1, 1, 2], [0], [0]>} : vector<8x8x8xf32>, vector<8x8x8xf32>, vector<8x8x8xf32> -> vector<8x8x8xf32>
    "tpu.trace_stop"() : () -> ()
    %68 = vector.extract_strided_slice %67 {offsets = [0, 0, 0], sizes = [2, 8, 8], strides = [1, 1, 1]} : vector<8x8x8xf32> to vector<2x8x8xf32>
    %69 = vector.extract_strided_slice %67 {offsets = [2, 0, 0], sizes = [2, 8, 8], strides = [1, 1, 1]} : vector<8x8x8xf32> to vector<2x8x8xf32>
    %70 = vector.extract_strided_slice %67 {offsets = [4, 0, 0], sizes = [2, 8, 8], strides = [1, 1, 1]} : vector<8x8x8xf32> to vector<2x8x8xf32>
    %71 = vector.extract_strided_slice %67 {offsets = [6, 0, 0], sizes = [2, 8, 8], strides = [1, 1, 1]} : vector<8x8x8xf32> to vector<2x8x8xf32>
    %72 = tpu.concatenate %68, %69, %70, %71 in 2 : vector<2x8x8xf32>, vector<2x8x8xf32>, vector<2x8x8xf32>, vector<2x8x8xf32> -> vector<2x8x32xf32>
    %73 = vector.shape_cast %72 : vector<2x8x32xf32> to vector<16x32xf32>
    %cst_27 = arith.constant dense<0.000000e+00> : vector<16x32xf32>
    %74 = tpu.matmul %73, %9, %cst_27 {dimension_numbers = #tpu.dot_dimension_numbers<[1], [0], [0], [1], [0, 0, 1, 1], [], []>} : vector<16x32xf32>, vector<32x32xf32>, vector<16x32xf32> -> vector<16x32xf32>
    %75 = vector.broadcast %15 : vector<1x32xf32> to vector<16x32xf32>
    %76 = arith.addf %74, %75 : vector<16x32xf32>
    %77 = arith.addf %0, %76 : vector<16x32xf32>
    %cst_28 = arith.constant dense<0.000000e+00> : vector<16xf32>
    %78 = vector.multi_reduction <add>, %77, %cst_28 [1] : vector<16x32xf32> to vector<16xf32>
    %79 = vector.shape_cast %78 : vector<16xf32> to vector<16x1xf32>
    %cst_29 = arith.constant 3.200000e+01 : f32
    %80 = vector.broadcast %cst_29 : f32 to vector<16x1xf32>
    %81 = arith.divf %79, %80 : vector<16x1xf32>
    %82 = vector.broadcast %81 : vector<16x1xf32> to vector<16x32xf32>
    %83 = arith.subf %77, %82 : vector<16x32xf32>
    %84 = arith.mulf %83, %83 : vector<16x32xf32>
    %cst_30 = arith.constant dense<0.000000e+00> : vector<16xf32>
    %85 = vector.multi_reduction <add>, %84, %cst_30 [1] : vector<16x32xf32> to vector<16xf32>
    %86 = vector.shape_cast %85 : vector<16xf32> to vector<16x1xf32>
    %cst_31 = arith.constant 3.200000e+01 : f32
    %87 = vector.broadcast %cst_31 : f32 to vector<16x1xf32>
    %88 = arith.divf %86, %87 : vector<16x1xf32>
    %89 = vector.broadcast %81 : vector<16x1xf32> to vector<16x32xf32>
    %90 = arith.subf %77, %89 : vector<16x32xf32>
    %cst_32 = arith.constant 9.99999974E-6 : f32
    %91 = vector.broadcast %cst_32 : f32 to vector<16x1xf32>
    %92 = arith.addf %88, %91 : vector<16x1xf32>
    %93 = math.rsqrt %92 : vector<16x1xf32>
    %94 = vector.broadcast %93 : vector<16x1xf32> to vector<16x32xf32>
    %95 = arith.mulf %90, %94 : vector<16x32xf32>
    %96 = vector.broadcast %16 : vector<1x32xf32> to vector<16x32xf32>
    %97 = arith.mulf %95, %96 : vector<16x32xf32>
    %98 = vector.broadcast %17 : vector<1x32xf32> to vector<16x32xf32>
    %99 = arith.addf %97, %98 : vector<16x32xf32>
    %cst_33 = arith.constant dense<0.000000e+00> : vector<16x64xf32>
    %100 = tpu.matmul %99, %10, %cst_33 {dimension_numbers = #tpu.dot_dimension_numbers<[1], [0], [0], [1], [0, 0, 1, 1], [], []>} : vector<16x32xf32>, vector<32x64xf32>, vector<16x64xf32> -> vector<16x64xf32>
    %101 = vector.broadcast %18 : vector<1x64xf32> to vector<16x64xf32>
    %102 = arith.addf %100, %101 : vector<16x64xf32>
    %cst_34 = arith.constant 0.000000e+00 : f32
    %103 = vector.broadcast %cst_34 : f32 to vector<16x64xf32>
    %104 = arith.maximumf %102, %103 : vector<16x64xf32>
    %cst_35 = arith.constant dense<0.000000e+00> : vector<16x32xf32>
    %105 = tpu.matmul %104, %11, %cst_35 {dimension_numbers = #tpu.dot_dimension_numbers<[1], [0], [0], [1], [0, 0, 1, 1], [], []>} : vector<16x64xf32>, vector<64x32xf32>, vector<16x32xf32> -> vector<16x32xf32>
    %106 = vector.broadcast %19 : vector<1x32xf32> to vector<16x32xf32>
    %107 = arith.addf %105, %106 : vector<16x32xf32>
    %108 = arith.addf %77, %107 : vector<16x32xf32>
    %c32 = arith.constant 32 : index
    %c0_36 = arith.constant 0 : index
    %109 = vector.load %arg2[%c32, %c0_36] : memref<216x192xf32, #tpu.memory_space<vmem>>, vector<32x96xf32>
    %c32_37 = arith.constant 32 : index
    %c96_38 = arith.constant 96 : index
    %110 = vector.load %arg2[%c32_37, %c96_38] : memref<216x192xf32, #tpu.memory_space<vmem>>, vector<32x32xf32>
    %c32_39 = arith.constant 32 : index
    %c128_40 = arith.constant 128 : index
    %111 = vector.load %arg2[%c32_39, %c128_40] : memref<216x192xf32, #tpu.memory_space<vmem>>, vector<32x64xf32>
    %c128_41 = arith.constant 128 : index
    %c0_42 = arith.constant 0 : index
    %112 = vector.load %arg2[%c128_41, %c0_42] : memref<216x192xf32, #tpu.memory_space<vmem>>, vector<64x32xf32>
    %c200 = arith.constant 200 : index
    %c0_43 = arith.constant 0 : index
    %113 = vector.load %arg2[%c200, %c0_43] : memref<216x192xf32, #tpu.memory_space<vmem>>, vector<1x32xf32>
    %c201 = arith.constant 201 : index
    %c0_44 = arith.constant 0 : index
    %114 = vector.load %arg2[%c201, %c0_44] : memref<216x192xf32, #tpu.memory_space<vmem>>, vector<1x32xf32>
    %c202 = arith.constant 202 : index
    %c0_45 = arith.constant 0 : index
    %115 = vector.load %arg2[%c202, %c0_45] : memref<216x192xf32, #tpu.memory_space<vmem>>, vector<1x96xf32>
    %c203 = arith.constant 203 : index
    %c0_46 = arith.constant 0 : index
    %116 = vector.load %arg2[%c203, %c0_46] : memref<216x192xf32, #tpu.memory_space<vmem>>, vector<1x32xf32>
    %c204 = arith.constant 204 : index
    %c0_47 = arith.constant 0 : index
    %117 = vector.load %arg2[%c204, %c0_47] : memref<216x192xf32, #tpu.memory_space<vmem>>, vector<1x32xf32>
    %c205 = arith.constant 205 : index
    %c0_48 = arith.constant 0 : index
    %118 = vector.load %arg2[%c205, %c0_48] : memref<216x192xf32, #tpu.memory_space<vmem>>, vector<1x32xf32>
    %c206 = arith.constant 206 : index
    %c0_49 = arith.constant 0 : index
    %119 = vector.load %arg2[%c206, %c0_49] : memref<216x192xf32, #tpu.memory_space<vmem>>, vector<1x64xf32>
    %c207 = arith.constant 207 : index
    %c0_50 = arith.constant 0 : index
    %120 = vector.load %arg2[%c207, %c0_50] : memref<216x192xf32, #tpu.memory_space<vmem>>, vector<1x32xf32>
    %cst_51 = arith.constant dense<0.000000e+00> : vector<16xf32>
    %121 = vector.multi_reduction <add>, %108, %cst_51 [1] : vector<16x32xf32> to vector<16xf32>
    %122 = vector.shape_cast %121 : vector<16xf32> to vector<16x1xf32>
    %cst_52 = arith.constant 3.200000e+01 : f32
    %123 = vector.broadcast %cst_52 : f32 to vector<16x1xf32>
    %124 = arith.divf %122, %123 : vector<16x1xf32>
    %125 = vector.broadcast %124 : vector<16x1xf32> to vector<16x32xf32>
    %126 = arith.subf %108, %125 : vector<16x32xf32>
    %127 = arith.mulf %126, %126 : vector<16x32xf32>
    %cst_53 = arith.constant dense<0.000000e+00> : vector<16xf32>
    %128 = vector.multi_reduction <add>, %127, %cst_53 [1] : vector<16x32xf32> to vector<16xf32>
    %129 = vector.shape_cast %128 : vector<16xf32> to vector<16x1xf32>
    %cst_54 = arith.constant 3.200000e+01 : f32
    %130 = vector.broadcast %cst_54 : f32 to vector<16x1xf32>
    %131 = arith.divf %129, %130 : vector<16x1xf32>
    %132 = vector.broadcast %124 : vector<16x1xf32> to vector<16x32xf32>
    %133 = arith.subf %108, %132 : vector<16x32xf32>
    %cst_55 = arith.constant 9.99999974E-6 : f32
    %134 = vector.broadcast %cst_55 : f32 to vector<16x1xf32>
    %135 = arith.addf %131, %134 : vector<16x1xf32>
    %136 = math.rsqrt %135 : vector<16x1xf32>
    %137 = vector.broadcast %136 : vector<16x1xf32> to vector<16x32xf32>
    %138 = arith.mulf %133, %137 : vector<16x32xf32>
    %139 = vector.broadcast %113 : vector<1x32xf32> to vector<16x32xf32>
    %140 = arith.mulf %138, %139 : vector<16x32xf32>
    %141 = vector.broadcast %114 : vector<1x32xf32> to vector<16x32xf32>
    %142 = arith.addf %140, %141 : vector<16x32xf32>
    %cst_56 = arith.constant dense<0.000000e+00> : vector<16x96xf32>
    %143 = tpu.matmul %142, %109, %cst_56 {dimension_numbers = #tpu.dot_dimension_numbers<[1], [0], [0], [1], [0, 0, 1, 1], [], []>} : vector<16x32xf32>, vector<32x96xf32>, vector<16x96xf32> -> vector<16x96xf32>
    %144 = vector.broadcast %115 : vector<1x96xf32> to vector<16x96xf32>
    %145 = arith.addf %143, %144 : vector<16x96xf32>
    %146 = vector.shape_cast %145 : vector<16x96xf32> to vector<2x8x96xf32>
    %147 = vector.extract_strided_slice %146 {offsets = [0, 0, 0], sizes = [2, 8, 24], strides = [1, 1, 1]} : vector<2x8x96xf32> to vector<2x8x24xf32>
    %148 = vector.extract_strided_slice %146 {offsets = [0, 0, 24], sizes = [2, 8, 24], strides = [1, 1, 1]} : vector<2x8x96xf32> to vector<2x8x24xf32>
    %149 = vector.extract_strided_slice %146 {offsets = [0, 0, 48], sizes = [2, 8, 24], strides = [1, 1, 1]} : vector<2x8x96xf32> to vector<2x8x24xf32>
    %150 = vector.extract_strided_slice %146 {offsets = [0, 0, 72], sizes = [2, 8, 24], strides = [1, 1, 1]} : vector<2x8x96xf32> to vector<2x8x24xf32>
    %151 = tpu.concatenate %147, %148, %149, %150 in 0 : vector<2x8x24xf32>, vector<2x8x24xf32>, vector<2x8x24xf32>, vector<2x8x24xf32> -> vector<8x8x24xf32>
    %152 = vector.extract_strided_slice %151 {offsets = [0, 0, 0], sizes = [8, 8, 8], strides = [1, 1, 1]} : vector<8x8x24xf32> to vector<8x8x8xf32>
    %153 = vector.extract_strided_slice %151 {offsets = [0, 0, 8], sizes = [8, 8, 8], strides = [1, 1, 1]} : vector<8x8x24xf32> to vector<8x8x8xf32>
    %154 = vector.extract_strided_slice %151 {offsets = [0, 0, 16], sizes = [8, 8, 8], strides = [1, 1, 1]} : vector<8x8x24xf32> to vector<8x8x8xf32>
    "tpu.trace_start"() <{level = 10 : i32, message = "nqd,nkd->nqk"}> : () -> ()
    %cst_57 = arith.constant dense<0.000000e+00> : vector<8x8x8xf32>
    %155 = tpu.matmul %152, %153, %cst_57 {dimension_numbers = #tpu.dot_dimension_numbers<[2], [2], [1], [1], [0, 0, 0, 1, 1, 1], [0], [0]>} : vector<8x8x8xf32>, vector<8x8x8xf32>, vector<8x8x8xf32> -> vector<8x8x8xf32>
    "tpu.trace_stop"() : () -> ()
    %156 = vector.broadcast %7 : vector<8x1x8xf32> to vector<8x8x8xf32>
    %157 = arith.addf %155, %156 : vector<8x8x8xf32>
    %cst_58 = arith.constant dense<0xFF800000> : vector<8x8xf32>
    %158 = vector.multi_reduction <maximumf>, %157, %cst_58 [2] : vector<8x8x8xf32> to vector<8x8xf32>
    %159 = vector.shape_cast %158 : vector<8x8xf32> to vector<8x8x1xf32>
    %160 = vector.broadcast %159 : vector<8x8x1xf32> to vector<8x8x8xf32>
    %161 = arith.subf %157, %160 : vector<8x8x8xf32>
    %162 = math.exp %161 : vector<8x8x8xf32>
    %cst_59 = arith.constant dense<0.000000e+00> : vector<8x8xf32>
    %163 = vector.multi_reduction <add>, %162, %cst_59 [2] : vector<8x8x8xf32> to vector<8x8xf32>
    %164 = vector.shape_cast %163 : vector<8x8xf32> to vector<8x8x1xf32>
    %165 = tpu.reciprocal %164 {approx = true} : vector<8x8x1xf32> -> vector<8x8x1xf32>
    %166 = vector.broadcast %165 : vector<8x8x1xf32> to vector<8x8x8xf32>
    %167 = arith.mulf %162, %166 : vector<8x8x8xf32>
    "tpu.trace_start"() <{level = 10 : i32, message = "nqk,nkd->nqd"}> : () -> ()
    %cst_60 = arith.constant dense<0.000000e+00> : vector<8x8x8xf32>
    %168 = tpu.matmul %167, %154, %cst_60 {dimension_numbers = #tpu.dot_dimension_numbers<[2], [1], [1], [2], [0, 0, 0, 1, 1, 2], [0], [0]>} : vector<8x8x8xf32>, vector<8x8x8xf32>, vector<8x8x8xf32> -> vector<8x8x8xf32>
    "tpu.trace_stop"() : () -> ()
    %169 = vector.extract_strided_slice %168 {offsets = [0, 0, 0], sizes = [2, 8, 8], strides = [1, 1, 1]} : vector<8x8x8xf32> to vector<2x8x8xf32>
    %170 = vector.extract_strided_slice %168 {offsets = [2, 0, 0], sizes = [2, 8, 8], strides = [1, 1, 1]} : vector<8x8x8xf32> to vector<2x8x8xf32>
    %171 = vector.extract_strided_slice %168 {offsets = [4, 0, 0], sizes = [2, 8, 8], strides = [1, 1, 1]} : vector<8x8x8xf32> to vector<2x8x8xf32>
    %172 = vector.extract_strided_slice %168 {offsets = [6, 0, 0], sizes = [2, 8, 8], strides = [1, 1, 1]} : vector<8x8x8xf32> to vector<2x8x8xf32>
    %173 = tpu.concatenate %169, %170, %171, %172 in 2 : vector<2x8x8xf32>, vector<2x8x8xf32>, vector<2x8x8xf32>, vector<2x8x8xf32> -> vector<2x8x32xf32>
    %174 = vector.shape_cast %173 : vector<2x8x32xf32> to vector<16x32xf32>
    %cst_61 = arith.constant dense<0.000000e+00> : vector<16x32xf32>
    %175 = tpu.matmul %174, %110, %cst_61 {dimension_numbers = #tpu.dot_dimension_numbers<[1], [0], [0], [1], [0, 0, 1, 1], [], []>} : vector<16x32xf32>, vector<32x32xf32>, vector<16x32xf32> -> vector<16x32xf32>
    %176 = vector.broadcast %116 : vector<1x32xf32> to vector<16x32xf32>
    %177 = arith.addf %175, %176 : vector<16x32xf32>
    %178 = arith.addf %108, %177 : vector<16x32xf32>
    %cst_62 = arith.constant dense<0.000000e+00> : vector<16xf32>
    %179 = vector.multi_reduction <add>, %178, %cst_62 [1] : vector<16x32xf32> to vector<16xf32>
    %180 = vector.shape_cast %179 : vector<16xf32> to vector<16x1xf32>
    %cst_63 = arith.constant 3.200000e+01 : f32
    %181 = vector.broadcast %cst_63 : f32 to vector<16x1xf32>
    %182 = arith.divf %180, %181 : vector<16x1xf32>
    %183 = vector.broadcast %182 : vector<16x1xf32> to vector<16x32xf32>
    %184 = arith.subf %178, %183 : vector<16x32xf32>
    %185 = arith.mulf %184, %184 : vector<16x32xf32>
    %cst_64 = arith.constant dense<0.000000e+00> : vector<16xf32>
    %186 = vector.multi_reduction <add>, %185, %cst_64 [1] : vector<16x32xf32> to vector<16xf32>
    %187 = vector.shape_cast %186 : vector<16xf32> to vector<16x1xf32>
    %cst_65 = arith.constant 3.200000e+01 : f32
    %188 = vector.broadcast %cst_65 : f32 to vector<16x1xf32>
    %189 = arith.divf %187, %188 : vector<16x1xf32>
    %190 = vector.broadcast %182 : vector<16x1xf32> to vector<16x32xf32>
    %191 = arith.subf %178, %190 : vector<16x32xf32>
    %cst_66 = arith.constant 9.99999974E-6 : f32
    %192 = vector.broadcast %cst_66 : f32 to vector<16x1xf32>
    %193 = arith.addf %189, %192 : vector<16x1xf32>
    %194 = math.rsqrt %193 : vector<16x1xf32>
    %195 = vector.broadcast %194 : vector<16x1xf32> to vector<16x32xf32>
    %196 = arith.mulf %191, %195 : vector<16x32xf32>
    %197 = vector.broadcast %117 : vector<1x32xf32> to vector<16x32xf32>
    %198 = arith.mulf %196, %197 : vector<16x32xf32>
    %199 = vector.broadcast %118 : vector<1x32xf32> to vector<16x32xf32>
    %200 = arith.addf %198, %199 : vector<16x32xf32>
    %cst_67 = arith.constant dense<0.000000e+00> : vector<16x64xf32>
    %201 = tpu.matmul %200, %111, %cst_67 {dimension_numbers = #tpu.dot_dimension_numbers<[1], [0], [0], [1], [0, 0, 1, 1], [], []>} : vector<16x32xf32>, vector<32x64xf32>, vector<16x64xf32> -> vector<16x64xf32>
    %202 = vector.broadcast %119 : vector<1x64xf32> to vector<16x64xf32>
    %203 = arith.addf %201, %202 : vector<16x64xf32>
    %cst_68 = arith.constant 0.000000e+00 : f32
    %204 = vector.broadcast %cst_68 : f32 to vector<16x64xf32>
    %205 = arith.maximumf %203, %204 : vector<16x64xf32>
    %cst_69 = arith.constant dense<0.000000e+00> : vector<16x32xf32>
    %206 = tpu.matmul %205, %112, %cst_69 {dimension_numbers = #tpu.dot_dimension_numbers<[1], [0], [0], [1], [0, 0, 1, 1], [], []>} : vector<16x64xf32>, vector<64x32xf32>, vector<16x32xf32> -> vector<16x32xf32>
    %207 = vector.broadcast %120 : vector<1x32xf32> to vector<16x32xf32>
    %208 = arith.addf %206, %207 : vector<16x32xf32>
    %209 = arith.addf %178, %208 : vector<16x32xf32>
    %c208 = arith.constant 208 : index
    %c0_70 = arith.constant 0 : index
    %210 = vector.load %arg2[%c208, %c0_70] : memref<216x192xf32, #tpu.memory_space<vmem>>, vector<1x32xf32>
    %c209 = arith.constant 209 : index
    %c0_71 = arith.constant 0 : index
    %211 = vector.load %arg2[%c209, %c0_71] : memref<216x192xf32, #tpu.memory_space<vmem>>, vector<1x32xf32>
    %cst_72 = arith.constant dense<0.000000e+00> : vector<16xf32>
    %212 = vector.multi_reduction <add>, %209, %cst_72 [1] : vector<16x32xf32> to vector<16xf32>
    %213 = vector.shape_cast %212 : vector<16xf32> to vector<16x1xf32>
    %cst_73 = arith.constant 3.200000e+01 : f32
    %214 = vector.broadcast %cst_73 : f32 to vector<16x1xf32>
    %215 = arith.divf %213, %214 : vector<16x1xf32>
    %216 = vector.broadcast %215 : vector<16x1xf32> to vector<16x32xf32>
    %217 = arith.subf %209, %216 : vector<16x32xf32>
    %218 = arith.mulf %217, %217 : vector<16x32xf32>
    %cst_74 = arith.constant dense<0.000000e+00> : vector<16xf32>
    %219 = vector.multi_reduction <add>, %218, %cst_74 [1] : vector<16x32xf32> to vector<16xf32>
    %220 = vector.shape_cast %219 : vector<16xf32> to vector<16x1xf32>
    %cst_75 = arith.constant 3.200000e+01 : f32
    %221 = vector.broadcast %cst_75 : f32 to vector<16x1xf32>
    %222 = arith.divf %220, %221 : vector<16x1xf32>
    %223 = vector.broadcast %215 : vector<16x1xf32> to vector<16x32xf32>
    %224 = arith.subf %209, %223 : vector<16x32xf32>
    %cst_76 = arith.constant 9.99999974E-6 : f32
    %225 = vector.broadcast %cst_76 : f32 to vector<16x1xf32>
    %226 = arith.addf %222, %225 : vector<16x1xf32>
    %227 = math.rsqrt %226 : vector<16x1xf32>
    %228 = vector.broadcast %227 : vector<16x1xf32> to vector<16x32xf32>
    %229 = arith.mulf %224, %228 : vector<16x32xf32>
    %230 = vector.broadcast %210 : vector<1x32xf32> to vector<16x32xf32>
    %231 = arith.mulf %229, %230 : vector<16x32xf32>
    %232 = vector.broadcast %211 : vector<1x32xf32> to vector<16x32xf32>
    %233 = arith.addf %231, %232 : vector<16x32xf32>
    %c0_77 = arith.constant 0 : index
    %c0_78 = arith.constant 0 : index
    %234 = vector.load %arg3[%c0_77, %c0_78] : memref<16x32xf32, #tpu.memory_space<vmem>>, vector<16x32xf32>
    tpu.vector_store %arg3[%c0_77, %c0_78], %233 {strides = array<i32>} : memref<16x32xf32, #tpu.memory_space<vmem>>, vector<16x32xf32>,
    return
  }
}

</mosaic_0001>

<llo_original>
// kernel: encoder_forward.1
$region0: #{encoder_forward.1}
  #allocation0 [shape = 'u32[]', space=smem, size = 0x4, offset = 0x4, fixed_abs, tag = 'smem constant byte address 0x4 - core index']
  #allocation1 [shape = 'u32[144,128]{1,0:T(1,128)}', space=vmem, size = 0x12000, scoped, tag = 'internal scratch']
  %s0 = inlined_call_operand.vmem [shape: f32[16,32], index: 0, kind: input, shape index: {}]
  %s1 = inlined_call_operand.vmem [shape: f32[2,8], index: 1, kind: input, shape index: {}]
  %s2 = inlined_call_operand.vmem [shape: f32[216,192], index: 2, kind: input, shape index: {}]
  %s3 = inlined_call_operand.hbm [shape: f32[16,32], index: 3, kind: output, shape index: {}]
  %s4 = sld [smem:[#allocation0]]
  $region22: #{encoder_forward.1} parent=0
    _
  %s6 = ssub.s32 1, %s4
  %s7 = scalar_select 0, %s6, %s4
  $region1: #{encoder_forward.1} parent=0
    #allocation2 [shape = 'u8[8192]{0}', space=vmem, size = 0x2000, scoped, tag = 'output window, operand 0, single buffered']
    #allocation3 [shape = 's32[1]{0}', space=sflag, size = 0x4, scoped, tag = 'scoped memory for encoder_forward.1']
    %8 = vsyncpa [#allocation3], 0
    // Predicated region
    $region2: #{encoder_forward.1} parent=1 // pred_check
      _
    $region3: #{encoder_forward.1} parent=1 // pred_check_branch
      %10 = sbr.rel (0) target = $region5
    $region4: #{encoder_forward.1} parent=1 // pred_region
      _
    $region5: #{encoder_forward.1} parent=1 // pred_fallthru
      _
    // Predicated region
    $region6: #{encoder_forward.1} parent=1 // pred_check
      _
    $region7: #{encoder_forward.1} parent=1 // pred_check_branch
      %12 = sbr.rel (0) target = $region9
    $region8: #{encoder_forward.1} parent=1 // pred_region
      _
    $region9: #{encoder_forward.1} parent=1 // pred_fallthru
      _
    // Predicated region
    $region10: #{encoder_forward.1} parent=1 // pred_check
      _
    $region11: #{encoder_forward.1} parent=1 // pred_check_branch
      %14 = sbr.rel (0) target = $region13
    $region12: #{encoder_forward.1} parent=1 // pred_region
      _
    $region13: #{encoder_forward.1} parent=1 // pred_fallthru
      _
    %v15 = vld [vmem:[%s0] sm:$0xff]
    %v16 = vld [vmem:[%s0 + $0x8] sm:$0xff]
    %v17 = vld [vmem:[%s1] sm:$0x3]
    %v18 = vsub.f32 1.0, %v17
    %v19 = vmul.f32 %v18, -1e+09
    %v22 = vunpack.c.l.s4 1966171168
    %v23 = vunpack.c.0.s8 %v22
    %v24 = vlaneseq
    %v25 = vshrl.u32 %v24, 7
    %v26 = vsub.s32 %v23, %v25
    %v27 = vrot.slane %v19, %v26
    %v28 = vcombine.high %v27, %v27
    %v30 = vunpack.c.l.s4 1966171168
    %v31 = vunpack.c.0.s8 %v30
    %v32 = vlaneseq
    %v33 = vshrl.u32 %v32, 7
    %v34 = vsub.s32 %v31, %v33
    %v35 = vrot.slane %v27, %v34
    %v37 = vunpack.c.l.s4 1966171168
    %v38 = vunpack.c.0.s8 %v37
    %v39 = vlaneseq
    %v40 = vshrl.u32 %v39, 7
    %v41 = vsub.s32 %v38, %v40
    %v42 = vrot.slane %v28, %v41
    %v43 = vld [vmem:[%s2] sm:$0xff]
    %v44 = vld [vmem:[%s2 + $0x10] sm:$0xff]
    %v45 = vld [vmem:[%s2 + $0x20] sm:$0xff]
    %v46 = vld [vmem:[%s2 + $0x30] sm:$0xff]
    %v47 = vld [vmem:[%s2 + $0x8] sm:$0xff]
    %v48 = vld [vmem:[%s2 + $0x18] sm:$0xff]
    %v49 = vld [vmem:[%s2 + $0x28] sm:$0xff]
    %v50 = vld [vmem:[%s2 + $0x38] sm:$0xff]
    %v51 = vld [vmem:[%s2 + $0x80] sm:$0xff]
    %v52 = vld [vmem:[%s2 + $0x90] sm:$0xff]
    %v53 = vld [vmem:[%s2 + $0xa0] sm:$0xff]
    %v54 = vld [vmem:[%s2 + $0xb0] sm:$0xff]
    %v55 = vld [vmem:[%s2 + $0xc0] sm:$0xff]
    %v56 = vld [vmem:[%s2 + $0xd0] sm:$0xff]
    %v57 = vld [vmem:[%s2 + $0xe0] sm:$0xff]
    %v58 = vld [vmem:[%s2 + $0xf0] sm:$0xff]
    %v59 = vld [vmem:[%s2 + $0x180] ss:$0 sm:$0xff]
    %v60 = vld [vmem:[%s2 + $0x181] ss:$0 sm:$0xff]
    %v61 = vld [vmem:[%s2 + $0x182] ss:$0 sm:$0xff]
    %v62 = vld [vmem:[%s2 + $0x183] ss:$0 sm:$0xff]
    %v63 = vld [vmem:[%s2 + $0x184] ss:$0 sm:$0xff]
    %v64 = vld [vmem:[%s2 + $0x185] ss:$0 sm:$0xff]
    %v65 = vld [vmem:[%s2 + $0x186] ss:$0 sm:$0xff]
    %v66 = vld [vmem:[%s2 + $0x187] ss:$0 sm:$0xff]
    %vm67 = vcmask 261120
    %v68 = vsel %vm67, %v15, 0.0
    %69 = vadd.xlane.f32.xlu0 %v68
    %v70 = vpop.xlane.xlu0 %69
    %v71 = vsel %vm67, %v16, 0.0
    %72 = vadd.xlane.f32.xlu0 %v71
    %v73 = vpop.xlane.xlu0 %72
    %v74 = vrcp.pop 32.0
    %v75 = vmul.f32 %v70, %v74
    %v76 = vmul.f32 %v73, %v74
    %v77 = vsub.f32 %v15, %v75
    %v78 = vsub.f32 %v16, %v76
    %v79 = vmul.f32 %v77, %v77
    %v80 = vmul.f32 %v78, %v78
    %v81 = vsel %vm67, %v79, 0.0
    %82 = vadd.xlane.f32.xlu0 %v81
    %v83 = vpop.xlane.xlu0 %82
    %v84 = vsel %vm67, %v80, 0.0
    %85 = vadd.xlane.f32.xlu0 %v84
    %v86 = vpop.xlane.xlu0 %85
    %v87 = vmul.f32 %v83, %v74
    %v88 = vmul.f32 %v86, %v74
    %v89 = vadd.f32 %v87, 1e-05
    %v90 = vadd.f32 %v88, 1e-05
    %v91 = vrsqrt.pop %v89
    %v92 = vrsqrt.pop %v90
    %v93 = vmul.f32 %v77, %v91
    %v94 = vmul.f32 %v78, %v92
    %v95 = vmul.f32 %v93, %v59
    %v96 = vmul.f32 %v94, %v59
    %v97 = vadd.f32 %v95, %v60
    %v98 = vadd.f32 %v96, %v60
    %v100 = vsel %vm67, %v97, 0
    %v103 = vsel %vm67, %v98, 0
    %105 = vmatprep.subr.mxu0 0.0
    %106 = vmatpush1.msra.mxu0 %v43
    %107 = vmatprep.subr.mxu0 0.0
    %108 = vmatpush1.msra.mxu0 %v44
    %109 = vmatprep.subr.mxu0 0.0
    %110 = vmatpush1.msra.mxu0 %v45
    %111 = vmatprep.subr.mxu0 0.0
    %112 = vmatpush1.msra.mxu0 %v46
    %113 = vmatprep.subr.mxu0 0.0
    %114 = vmatpush1.msra.mxu0 0.0
    %115 = vmatprep.subr.mxu0 0.0
    %116 = vmatpush1.msra.mxu0 0.0
    %117 = vmatprep.subr.mxu0 0.0
    %118 = vmatpush1.msra.mxu0 0.0
    %119 = vmatprep.subr.mxu0 0.0
    %120 = vmatpush1.msra.mxu0 0.0
    %121 = vmatprep.subr.mxu0 0.0
    %122 = vmatpush1.msra.mxu0 0.0
    %123 = vmatprep.subr.mxu0 0.0
    %124 = vmatpush1.msra.mxu0 0.0
    %125 = vmatprep.subr.mxu0 0.0
    %126 = vmatpush1.msra.mxu0 0.0
    %127 = vmatprep.subr.mxu0 0.0
    %128 = vmatpush1.msra.mxu0 0.0
    %129 = vmatprep.subr.mxu0 0.0
    %130 = vmatpush1.msra.mxu0 0.0
    %131 = vmatprep.subr.mxu0 0.0
    %132 = vmatpush1.msra.mxu0 0.0
    %133 = vmatprep.subr.mxu0 0.0
    %134 = vmatpush1.msra.mxu0 0.0
    %135 = vmatprep.subr.mxu0 0.0
    %136 = vmatpush1.msra.mxu0 0.0
    %137 = vmatprep.subr.mxu0 0.0
    %138 = vmatpush1.msra.mxu0 0.0
    %139 = vmatprep.subr.mxu0 0.0
    %140 = vmatpush1.msra.mxu0 0.0
    %141 = vmatprep.subr.mxu0 0.0
    %142 = vmatpush1.msra.mxu0 0.0
    %143 = vmatprep.subr.mxu0 0.0
    %144 = vmatpush1.msra.mxu0 0.0
    %145 = vmatprep.subr.mxu0 0.0
    %146 = vmatpush1.msra.mxu0 0.0
    %147 = vmatprep.subr.mxu0 0.0
    %148 = vmatpush1.msra.mxu0 0.0
    %149 = vmatprep.subr.mxu0 0.0
    %150 = vmatpush1.msra.mxu0 0.0
    %151 = vmatprep.subr.mxu0 0.0
    %152 = vmatpush1.msra.mxu0 0.0
    %153 = vmatprep.subr.mxu0 0.0
    %154 = vmatpush1.msra.mxu0 0.0
    %155 = vmatprep.subr.mxu0 0.0
    %156 = vmatpush1.msra.mxu0 0.0
    %157 = vmatprep.subr.mxu0 0.0
    %158 = vmatpush1.msra.mxu0 0.0
    %159 = vmatprep.subr.mxu0 0.0
    %160 = vmatpush1.msra.mxu0 0.0
    %161 = vmatprep.subr.mxu0 0.0
    %162 = vmatpush1.msra.mxu0 0.0
    %163 = vmatprep.subr.mxu0 0.0
    %164 = vmatpush1.msra.mxu0 0.0
    %165 = vmatprep.subr.mxu0 0.0
    %166 = vmatpush1.msra.mxu0 0.0
    %167 = vmatprep.subr.mxu0 0.0
    %168 = vmatpush1.msra.mxu0 0.0
    %169 = vmatprep.mubr.f32.mxu0 0.0
    %170 = vmatmul.mubr.f32.gmra.mrb[0].mxu0 %v100
    %v171 = vpop.f32.mrb[0].mxu0
    %v172 = vadd.f32 %v61, %v171
    %v173 = vpop.f32.mrb[0].mxu0
    %174 = vmatprep.mubr.f32.mxu0 0.0
    %175 = vmatmul.mubr.f32.gmra.mrb[0].mxu0 %v103
    %v176 = vpop.f32.mrb[0].mxu0
    %v177 = vadd.f32 %v61, %v176
    %v178 = vpop.f32.mrb[0].mxu0
    %179 = vdwg.mxu0
    %182 = vrot.lane.b32.xlu0 %v172, 104
    %v183 = vpop.permute.xlu0 %182
    %184 = vrot.lane.b32.xlu0 %v177, 104
    %v185 = vpop.permute.xlu0 %184
    %186 = vrot.lane.b32.xlu0 %v172, 80
    %v187 = vpop.permute.xlu0 %186
    %188 = vrot.lane.b32.xlu0 %v177, 80
    %v189 = vpop.permute.xlu0 %188
    %190 = vrot.lane.b32.xlu0 %v172, 56
    %v191 = vpop.permute.xlu0 %190
    %192 = vrot.lane.b32.xlu0 %v177, 56
    %v193 = vpop.permute.xlu0 %192
    %v194 = vlaneseq
    %v195 = vshrl.u32 %v194, 7
    %v196 = vsub.s32 0, %v195
    %v197 = vrot.slane %v35, %v196
    %v198 = vlaneseq
    %v199 = vshrl.u32 %v198, 7
    %v200 = vsub.s32 0, %v199
    %v201 = vrot.slane %v42, %v200
    %204 = vrot.lane.b32.xlu0 %v172, 120
    %v205 = vpop.permute.xlu0 %204
    %vm206 = vcmask 64512
    %v207 = vsel %vm206, %v172, 0
    %v209 = vsel %vm206, %v205, 0
    %211 = vmatprep.subr.mxu0 0.0
    %212 = vmatpush1.xpose.msra.mxu0 %v209
    %213 = vmatprep.subr.mxu0 0.0
    %214 = vmatpush1.xpose.msra.mxu0 0.0
    %215 = vmatprep.subr.mxu0 0.0
    %216 = vmatpush1.xpose.msra.mxu0 0.0
    %217 = vmatprep.subr.mxu0 0.0
    %218 = vmatpush1.xpose.msra.mxu0 0.0
    %219 = vmatprep.subr.mxu0 0.0
    %220 = vmatpush1.xpose.msra.mxu0 0.0
    %221 = vmatprep.subr.mxu0 0.0
    %222 = vmatpush1.xpose.msra.mxu0 0.0
    %223 = vmatprep.subr.mxu0 0.0
    %224 = vmatpush1.xpose.msra.mxu0 0.0
    %225 = vmatprep.subr.mxu0 0.0
    %226 = vmatpush1.xpose.msra.mxu0 0.0
    %227 = vmatprep.subr.mxu0 0.0
    %228 = vmatpush1.xpose.msra.mxu0 0.0
    %229 = vmatprep.subr.mxu0 0.0
    %230 = vmatpush1.xpose.msra.mxu0 0.0
    %231 = vmatprep.subr.mxu0 0.0
    %232 = vmatpush1.xpose.msra.mxu0 0.0
    %233 = vmatprep.subr.mxu0 0.0
    %234 = vmatpush1.xpose.msra.mxu0 0.0
    %235 = vmatprep.subr.mxu0 0.0
    %236 = vmatpush1.xpose.msra.mxu0 0.0
    %237 = vmatprep.subr.mxu0 0.0
    %238 = vmatpush1.xpose.msra.mxu0 0.0
    %239 = vmatprep.subr.mxu0 0.0
    %240 = vmatpush1.xpose.msra.mxu0 0.0
    %241 = vmatprep.subr.mxu0 0.0
    %242 = vmatpush1.xpose.msra.mxu0 0.0
    %243 = vmatprep.subr.mxu0 0.0
    %244 = vmatpush1.xpose.msra.mxu0 0.0
    %245 = vmatprep.subr.mxu0 0.0
    %246 = vmatpush1.xpose.msra.mxu0 0.0
    %247 = vmatprep.subr.mxu0 0.0
    %248 = vmatpush1.xpose.msra.mxu0 0.0
    %249 = vmatprep.subr.mxu0 0.0
    %250 = vmatpush1.xpose.msra.mxu0 0.0
    %251 = vmatprep.subr.mxu0 0.0
    %252 = vmatpush1.xpose.msra.mxu0 0.0
    %253 = vmatprep.subr.mxu0 0.0
    %254 = vmatpush1.xpose.msra.mxu0 0.0
    %255 = vmatprep.subr.mxu0 0.0
    %256 = vmatpush1.xpose.msra.mxu0 0.0
    %257 = vmatprep.subr.mxu0 0.0
    %258 = vmatpush1.xpose.msra.mxu0 0.0
    %259 = vmatprep.subr.mxu0 0.0
    %260 = vmatpush1.xpose.msra.mxu0 0.0
    %261 = vmatprep.subr.mxu0 0.0
    %262 = vmatpush1.xpose.msra.mxu0 0.0
    %263 = vmatprep.subr.mxu0 0.0
    %264 = vmatpush1.xpose.msra.mxu0 0.0
    %265 = vmatprep.subr.mxu0 0.0
    %266 = vmatpush1.xpose.msra.mxu0 0.0
    %267 = vmatprep.subr.mxu0 0.0
    %268 = vmatpush1.xpose.msra.mxu0 0.0
    %269 = vmatprep.subr.mxu0 0.0
    %270 = vmatpush1.xpose.msra.mxu0 0.0
    %271 = vmatprep.subr.mxu0 0.0
    %272 = vmatpush1.xpose.msra.mxu0 0.0
    %273 = vmatprep.subr.mxu0 0.0
    %274 = vmatpush1.xpose.msra.mxu0 0.0
    %275 = vmatprep.mubr.f32.mxu0 0.0
    %276 = vmatmul.mubr.f32.gmra.mrb[0].mxu0 %v207
    %v277 = vpop.f32.mrb[0].mxu0
    %v278 = vadd.f32 %v197, %v277
    %v279 = vpop.f32.mrb[0].mxu0
    %280 = vdwg.mxu0
    %281 = vrot.lane.b32.xlu0 %v177, 120
    %v282 = vpop.permute.xlu0 %281
    %v283 = vsel %vm206, %v177, 0
    %v285 = vsel %vm206, %v282, 0
    %287 = vmatprep.subr.mxu0 0.0
    %288 = vmatpush1.xpose.msra.mxu0 %v285
    %289 = vmatprep.subr.mxu0 0.0
    %290 = vmatpush1.xpose.msra.mxu0 0.0
    %291 = vmatprep.subr.mxu0 0.0
    %292 = vmatpush1.xpose.msra.mxu0 0.0
    %293 = vmatprep.subr.mxu0 0.0
    %294 = vmatpush1.xpose.msra.mxu0 0.0
    %295 = vmatprep.subr.mxu0 0.0
    %296 = vmatpush1.xpose.msra.mxu0 0.0
    %297 = vmatprep.subr.mxu0 0.0
    %298 = vmatpush1.xpose.msra.mxu0 0.0
    %299 = vmatprep.subr.mxu0 0.0
    %300 = vmatpush1.xpose.msra.mxu0 0.0
    %301 = vmatprep.subr.mxu0 0.0
    %302 = vmatpush1.xpose.msra.mxu0 0.0
    %303 = vmatprep.subr.mxu0 0.0
    %304 = vmatpush1.xpose.msra.mxu0 0.0
    %305 = vmatprep.subr.mxu0 0.0
    %306 = vmatpush1.xpose.msra.mxu0 0.0
    %307 = vmatprep.subr.mxu0 0.0
    %308 = vmatpush1.xpose.msra.mxu0 0.0
    %309 = vmatprep.subr.mxu0 0.0
    %310 = vmatpush1.xpose.msra.mxu0 0.0
    %311 = vmatprep.subr.mxu0 0.0
    %312 = vmatpush1.xpose.msra.mxu0 0.0
    %313 = vmatprep.subr.mxu0 0.0
    %314 = vmatpush1.xpose.msra.mxu0 0.0
    %315 = vmatprep.subr.mxu0 0.0
    %316 = vmatpush1.xpose.msra.mxu0 0.0
    %317 = vmatprep.subr.mxu0 0.0
    %318 = vmatpush1.xpose.msra.mxu0 0.0
    %319 = vmatprep.subr.mxu0 0.0
    %320 = vmatpush1.xpose.msra.mxu0 0.0
    %321 = vmatprep.subr.mxu0 0.0
    %322 = vmatpush1.xpose.msra.mxu0 0.0
    %323 = vmatprep.subr.mxu0 0.0
    %324 = vmatpush1.xpose.msra.mxu0 0.0
    %325 = vmatprep.subr.mxu0 0.0
    %326 = vmatpush1.xpose.msra.mxu0 0.0
    %327 = vmatprep.subr.mxu0 0.0
    %328 = vmatpush1.xpose.msra.mxu0 0.0
    %329 = vmatprep.subr.mxu0 0.0
    %330 = vmatpush1.xpose.msra.mxu0 0.0
    %331 = vmatprep.subr.mxu0 0.0
    %332 = vmatpush1.xpose.msra.mxu0 0.0
    %333 = vmatprep.subr.mxu0 0.0
    %334 = vmatpush1.xpose.msra.mxu0 0.0
    %335 = vmatprep.subr.mxu0 0.0
    %336 = vmatpush1.xpose.msra.mxu0 0.0
    %337 = vmatprep.subr.mxu0 0.0
    %338 = vmatpush1.xpose.msra.mxu0 0.0
    %339 = vmatprep.subr.mxu0 0.0
    %340 = vmatpush1.xpose.msra.mxu0 0.0
    %341 = vmatprep.subr.mxu0 0.0
    %342 = vmatpush1.xpose.msra.mxu0 0.0
    %343 = vmatprep.subr.mxu0 0.0
    %344 = vmatpush1.xpose.msra.mxu0 0.0
    %345 = vmatprep.subr.mxu0 0.0
    %346 = vmatpush1.xpose.msra.mxu0 0.0
    %347 = vmatprep.subr.mxu0 0.0
    %348 = vmatpush1.xpose.msra.mxu0 0.0
    %349 = vmatprep.subr.mxu0 0.0
    %350 = vmatpush1.xpose.msra.mxu0 0.0
    %351 = vmatprep.mubr.f32.mxu0 0.0
    %352 = vmatmul.mubr.f32.gmra.mrb[0].mxu0 %v283
    %v353 = vpop.f32.mrb[0].mxu0
    %v354 = vadd.f32 %v201, %v353
    %v355 = vpop.f32.mrb[0].mxu0
    %356 = vdwg.mxu0
    %357 = vrot.lane.b32.xlu0 %v183, 120
    %v358 = vpop.permute.xlu0 %357
    %v359 = vsel %vm206, %v183, 0
    %v361 = vsel %vm206, %v358, 0
    %363 = vmatprep.subr.mxu0 0.0
    %364 = vmatpush1.xpose.msra.mxu0 %v361
    %365 = vmatprep.subr.mxu0 0.0
    %366 = vmatpush1.xpose.msra.mxu0 0.0
    %367 = vmatprep.subr.mxu0 0.0
    %368 = vmatpush1.xpose.msra.mxu0 0.0
    %369 = vmatprep.subr.mxu0 0.0
    %370 = vmatpush1.xpose.msra.mxu0 0.0
    %371 = vmatprep.subr.mxu0 0.0
    %372 = vmatpush1.xpose.msra.mxu0 0.0
    %373 = vmatprep.subr.mxu0 0.0
    %374 = vmatpush1.xpose.msra.mxu0 0.0
    %375 = vmatprep.subr.mxu0 0.0
    %376 = vmatpush1.xpose.msra.mxu0 0.0
    %377 = vmatprep.subr.mxu0 0.0
    %378 = vmatpush1.xpose.msra.mxu0 0.0
    %379 = vmatprep.subr.mxu0 0.0
    %380 = vmatpush1.xpose.msra.mxu0 0.0
    %381 = vmatprep.subr.mxu0 0.0
    %382 = vmatpush1.xpose.msra.mxu0 0.0
    %383 = vmatprep.subr.mxu0 0.0
    %384 = vmatpush1.xpose.msra.mxu0 0.0
    %385 = vmatprep.subr.mxu0 0.0
    %386 = vmatpush1.xpose.msra.mxu0 0.0
    %387 = vmatprep.subr.mxu0 0.0
    %388 = vmatpush1.xpose.msra.mxu0 0.0
    %389 = vmatprep.subr.mxu0 0.0
    %390 = vmatpush1.xpose.msra.mxu0 0.0
    %391 = vmatprep.subr.mxu0 0.0
    %392 = vmatpush1.xpose.msra.mxu0 0.0
    %393 = vmatprep.subr.mxu0 0.0
    %394 = vmatpush1.xpose.msra.mxu0 0.0
    %395 = vmatprep.subr.mxu0 0.0
    %396 = vmatpush1.xpose.msra.mxu0 0.0
    %397 = vmatprep.subr.mxu0 0.0
    %398 = vmatpush1.xpose.msra.mxu0 0.0
    %399 = vmatprep.subr.mxu0 0.0
    %400 = vmatpush1.xpose.msra.mxu0 0.0
    %401 = vmatprep.subr.mxu0 0.0
    %402 = vmatpush1.xpose.msra.mxu0 0.0
    %403 = vmatprep.subr.mxu0 0.0
    %404 = vmatpush1.xpose.msra.mxu0 0.0
    %405 = vmatprep.subr.mxu0 0.0
    %406 = vmatpush1.xpose.msra.mxu0 0.0
    %407 = vmatprep.subr.mxu0 0.0
    %408 = vmatpush1.xpose.msra.mxu0 0.0
    %409 = vmatprep.subr.mxu0 0.0
    %410 = vmatpush1.xpose.msra.mxu0 0.0
    %411 = vmatprep.subr.mxu0 0.0
    %412 = vmatpush1.xpose.msra.mxu0 0.0
    %413 = vmatprep.subr.mxu0 0.0
    %414 = vmatpush1.xpose.msra.mxu0 0.0
    %415 = vmatprep.subr.mxu0 0.0
    %416 = vmatpush1.xpose.msra.mxu0 0.0
    %417 = vmatprep.subr.mxu0 0.0
    %418 = vmatpush1.xpose.msra.mxu0 0.0
    %419 = vmatprep.subr.mxu0 0.0
    %420 = vmatpush1.xpose.msra.mxu0 0.0
    %421 = vmatprep.subr.mxu0 0.0
    %422 = vmatpush1.xpose.msra.mxu0 0.0
    %423 = vmatprep.subr.mxu0 0.0
    %424 = vmatpush1.xpose.msra.mxu0 0.0
    %425 = vmatprep.subr.mxu0 0.0
    %426 = vmatpush1.xpose.msra.mxu0 0.0
    %427 = vmatprep.mubr.f32.mxu0 0.0
    %428 = vmatmul.mubr.f32.gmra.mrb[0].mxu0 %v359
    %v429 = vpop.f32.mrb[0].mxu0
    %v430 = vadd.f32 %v197, %v429
    %v431 = vpop.f32.mrb[0].mxu0
    %432 = vdwg.mxu0
    %433 = vrot.lane.b32.xlu0 %v185, 120
    %v434 = vpop.permute.xlu0 %433
    %v435 = vsel %vm206, %v185, 0
    %v437 = vsel %vm206, %v434, 0
    %439 = vmatprep.subr.mxu0 0.0
    %440 = vmatpush1.xpose.msra.mxu0 %v437
    %441 = vmatprep.subr.mxu0 0.0
    %442 = vmatpush1.xpose.msra.mxu0 0.0
    %443 = vmatprep.subr.mxu0 0.0
    %444 = vmatpush1.xpose.msra.mxu0 0.0
    %445 = vmatprep.subr.mxu0 0.0
    %446 = vmatpush1.xpose.msra.mxu0 0.0
    %447 = vmatprep.subr.mxu0 0.0
    %448 = vmatpush1.xpose.msra.mxu0 0.0
    %449 = vmatprep.subr.mxu0 0.0
    %450 = vmatpush1.xpose.msra.mxu0 0.0
    %451 = vmatprep.subr.mxu0 0.0
    %452 = vmatpush1.xpose.msra.mxu0 0.0
    %453 = vmatprep.subr.mxu0 0.0
    %454 = vmatpush1.xpose.msra.mxu0 0.0
    %455 = vmatprep.subr.mxu0 0.0
    %456 = vmatpush1.xpose.msra.mxu0 0.0
    %457 = vmatprep.subr.mxu0 0.0
    %458 = vmatpush1.xpose.msra.mxu0 0.0
    %459 = vmatprep.subr.mxu0 0.0
    %460 = vmatpush1.xpose.msra.mxu0 0.0
    %461 = vmatprep.subr.mxu0 0.0
    %462 = vmatpush1.xpose.msra.mxu0 0.0
    %463 = vmatprep.subr.mxu0 0.0
    %464 = vmatpush1.xpose.msra.mxu0 0.0
    %465 = vmatprep.subr.mxu0 0.0
    %466 = vmatpush1.xpose.msra.mxu0 0.0
    %467 = vmatprep.subr.mxu0 0.0
    %468 = vmatpush1.xpose.msra.mxu0 0.0
    %469 = vmatprep.subr.mxu0 0.0
    %470 = vmatpush1.xpose.msra.mxu0 0.0
    %471 = vmatprep.subr.mxu0 0.0
    %472 = vmatpush1.xpose.msra.mxu0 0.0
    %473 = vmatprep.subr.mxu0 0.0
    %474 = vmatpush1.xpose.msra.mxu0 0.0
    %475 = vmatprep.subr.mxu0 0.0
    %476 = vmatpush1.xpose.msra.mxu0 0.0
    %477 = vmatprep.subr.mxu0 0.0
    %478 = vmatpush1.xpose.msra.mxu0 0.0
    %479 = vmatprep.subr.mxu0 0.0
    %480 = vmatpush1.xpose.msra.mxu0 0.0
    %481 = vmatprep.subr.mxu0 0.0
    %482 = vmatpush1.xpose.msra.mxu0 0.0
    %483 = vmatprep.subr.mxu0 0.0
    %484 = vmatpush1.xpose.msra.mxu0 0.0
    %485 = vmatprep.subr.mxu0 0.0
    %486 = vmatpush1.xpose.msra.mxu0 0.0
    %487 = vmatprep.subr.mxu0 0.0
    %488 = vmatpush1.xpose.msra.mxu0 0.0
    %489 = vmatprep.subr.mxu0 0.0
    %490 = vmatpush1.xpose.msra.mxu0 0.0
    %491 = vmatprep.subr.mxu0 0.0
    %492 = vmatpush1.xpose.msra.mxu0 0.0
    %493 = vmatprep.subr.mxu0 0.0
    %494 = vmatpush1.xpose.msra.mxu0 0.0
    %495 = vmatprep.subr.mxu0 0.0
    %496 = vmatpush1.xpose.msra.mxu0 0.0
    %497 = vmatprep.subr.mxu0 0.0
    %498 = vmatpush1.xpose.msra.mxu0 0.0
    %499 = vmatprep.subr.mxu0 0.0
    %500 = vmatpush1.xpose.msra.mxu0 0.0
    %501 = vmatprep.subr.mxu0 0.0
    %502 = vmatpush1.xpose.msra.mxu0 0.0
    %503 = vmatprep.mubr.f32.mxu0 0.0
    %504 = vmatmul.mubr.f32.gmra.mrb[0].mxu0 %v435
    %v505 = vpop.f32.mrb[0].mxu0
    %v506 = vadd.f32 %v201, %v505
    %v507 = vpop.f32.mrb[0].mxu0
    %508 = vdwg.mxu0
    %509 = vrot.lane.b32.xlu0 %v187, 120
    %v510 = vpop.permute.xlu0 %509
    %v511 = vsel %vm206, %v187, 0
    %v513 = vsel %vm206, %v510, 0
    %515 = vmatprep.subr.mxu0 0.0
    %516 = vmatpush1.xpose.msra.mxu0 %v513
    %517 = vmatprep.subr.mxu0 0.0
    %518 = vmatpush1.xpose.msra.mxu0 0.0
    %519 = vmatprep.subr.mxu0 0.0
    %520 = vmatpush1.xpose.msra.mxu0 0.0
    %521 = vmatprep.subr.mxu0 0.0
    %522 = vmatpush1.xpose.msra.mxu0 0.0
    %523 = vmatprep.subr.mxu0 0.0
    %524 = vmatpush1.xpose.msra.mxu0 0.0
    %525 = vmatprep.subr.mxu0 0.0
    %526 = vmatpush1.xpose.msra.mxu0 0.0
    %527 = vmatprep.subr.mxu0 0.0
    %528 = vmatpush1.xpose.msra.mxu0 0.0
    %529 = vmatprep.subr.mxu0 0.0
    %530 = vmatpush1.xpose.msra.mxu0 0.0
    %531 = vmatprep.subr.mxu0 0.0
    %532 = vmatpush1.xpose.msra.mxu0 0.0
    %533 = vmatprep.subr.mxu0 0.0
    %534 = vmatpush1.xpose.msra.mxu0 0.0
    %535 = vmatprep.subr.mxu0 0.0
    %536 = vmatpush1.xpose.msra.mxu0 0.0
    %537 = vmatprep.subr.mxu0 0.0
    %538 = vmatpush1.xpose.msra.mxu0 0.0
    %539 = vmatprep.subr.mxu0 0.0
    %540 = vmatpush1.xpose.msra.mxu0 0.0
    %541 = vmatprep.subr.mxu0 0.0
    %542 = vmatpush1.xpose.msra.mxu0 0.0
    %543 = vmatprep.subr.mxu0 0.0
    %544 = vmatpush1.xpose.msra.mxu0 0.0
    %545 = vmatprep.subr.mxu0 0.0
    %546 = vmatpush1.xpose.msra.mxu0 0.0
    %547 = vmatprep.subr.mxu0 0.0
    %548 = vmatpush1.xpose.msra.mxu0 0.0
    %549 = vmatprep.subr.mxu0 0.0
    %550 = vmatpush1.xpose.msra.mxu0 0.0
    %551 = vmatprep.subr.mxu0 0.0
    %552 = vmatpush1.xpose.msra.mxu0 0.0
    %553 = vmatprep.subr.mxu0 0.0
    %554 = vmatpush1.xpose.msra.mxu0 0.0
    %555 = vmatprep.subr.mxu0 0.0
    %556 = vmatpush1.xpose.msra.mxu0 0.0
    %557 = vmatprep.subr.mxu0 0.0
    %558 = vmatpush1.xpose.msra.mxu0 0.0
    %559 = vmatprep.subr.mxu0 0.0
    %560 = vmatpush1.xpose.msra.mxu0 0.0
    %561 = vmatprep.subr.mxu0 0.0
    %562 = vmatpush1.xpose.msra.mxu0 0.0
    %563 = vmatprep.subr.mxu0 0.0
    %564 = vmatpush1.xpose.msra.mxu0 0.0
    %565 = vmatprep.subr.mxu0 0.0
    %566 = vmatpush1.xpose.msra.mxu0 0.0
    %567 = vmatprep.subr.mxu0 0.0
    %568 = vmatpush1.xpose.msra.mxu0 0.0
    %569 = vmatprep.subr.mxu0 0.0
    %570 = vmatpush1.xpose.msra.mxu0 0.0
    %571 = vmatprep.subr.mxu0 0.0
    %572 = vmatpush1.xpose.msra.mxu0 0.0
    %573 = vmatprep.subr.mxu0 0.0
    %574 = vmatpush1.xpose.msra.mxu0 0.0
    %575 = vmatprep.subr.mxu0 0.0
    %576 = vmatpush1.xpose.msra.mxu0 0.0
    %577 = vmatprep.subr.mxu0 0.0
    %578 = vmatpush1.xpose.msra.mxu0 0.0
    %579 = vmatprep.mubr.f32.mxu0 0.0
    %580 = vmatmul.mubr.f32.gmra.mrb[0].mxu0 %v511
    %v581 = vpop.f32.mrb[0].mxu0
    %v582 = vadd.f32 %v197, %v581
    %v583 = vpop.f32.mrb[0].mxu0
    %584 = vdwg.mxu0
    %585 = vrot.lane.b32.xlu0 %v189, 120
    %v586 = vpop.permute.xlu0 %585
    %v587 = vsel %vm206, %v189, 0
    %v589 = vsel %vm206, %v586, 0
    %591 = vmatprep.subr.mxu0 0.0
    %592 = vmatpush1.xpose.msra.mxu0 %v589
    %593 = vmatprep.subr.mxu0 0.0
    %594 = vmatpush1.xpose.msra.mxu0 0.0
    %595 = vmatprep.subr.mxu0 0.0
    %596 = vmatpush1.xpose.msra.mxu0 0.0
    %597 = vmatprep.subr.mxu0 0.0
    %598 = vmatpush1.xpose.msra.mxu0 0.0
    %599 = vmatprep.subr.mxu0 0.0
    %600 = vmatpush1.xpose.msra.mxu0 0.0
    %601 = vmatprep.subr.mxu0 0.0
    %602 = vmatpush1.xpose.msra.mxu0 0.0
    %603 = vmatprep.subr.mxu0 0.0
    %604 = vmatpush1.xpose.msra.mxu0 0.0
    %605 = vmatprep.subr.mxu0 0.0
    %606 = vmatpush1.xpose.msra.mxu0 0.0
    %607 = vmatprep.subr.mxu0 0.0
    %608 = vmatpush1.xpose.msra.mxu0 0.0
    %609 = vmatprep.subr.mxu0 0.0
    %610 = vmatpush1.xpose.msra.mxu0 0.0
    %611 = vmatprep.subr.mxu0 0.0
    %612 = vmatpush1.xpose.msra.mxu0 0.0
    %613 = vmatprep.subr.mxu0 0.0
    %614 = vmatpush1.xpose.msra.mxu0 0.0
    %615 = vmatprep.subr.mxu0 0.0
    %616 = vmatpush1.xpose.msra.mxu0 0.0
    %617 = vmatprep.subr.mxu0 0.0
    %618 = vmatpush1.xpose.msra.mxu0 0.0
    %619 = vmatprep.subr.mxu0 0.0
    %620 = vmatpush1.xpose.msra.mxu0 0.0
    %621 = vmatprep.subr.mxu0 0.0
    %622 = vmatpush1.xpose.msra.mxu0 0.0
    %623 = vmatprep.subr.mxu0 0.0
    %624 = vmatpush1.xpose.msra.mxu0 0.0
    %625 = vmatprep.subr.mxu0 0.0
    %626 = vmatpush1.xpose.msra.mxu0 0.0
    %627 = vmatprep.subr.mxu0 0.0
    %628 = vmatpush1.xpose.msra.mxu0 0.0
    %629 = vmatprep.subr.mxu0 0.0
    %630 = vmatpush1.xpose.msra.mxu0 0.0
    %631 = vmatprep.subr.mxu0 0.0
    %632 = vmatpush1.xpose.msra.mxu0 0.0
    %633 = vmatprep.subr.mxu0 0.0
    %634 = vmatpush1.xpose.msra.mxu0 0.0
    %635 = vmatprep.subr.mxu0 0.0
    %636 = vmatpush1.xpose.msra.mxu0 0.0
    %637 = vmatprep.subr.mxu0 0.0
    %638 = vmatpush1.xpose.msra.mxu0 0.0
    %639 = vmatprep.subr.mxu0 0.0
    %640 = vmatpush1.xpose.msra.mxu0 0.0
    %641 = vmatprep.subr.mxu0 0.0
    %642 = vmatpush1.xpose.msra.mxu0 0.0
    %643 = vmatprep.subr.mxu0 0.0
    %644 = vmatpush1.xpose.msra.mxu0 0.0
    %645 = vmatprep.subr.mxu0 0.0
    %646 = vmatpush1.xpose.msra.mxu0 0.0
    %647 = vmatprep.subr.mxu0 0.0
    %648 = vmatpush1.xpose.msra.mxu0 0.0
    %649 = vmatprep.subr.mxu0 0.0
    %650 = vmatpush1.xpose.msra.mxu0 0.0
    %651 = vmatprep.subr.mxu0 0.0
    %652 = vmatpush1.xpose.msra.mxu0 0.0
    %653 = vmatprep.subr.mxu0 0.0
    %654 = vmatpush1.xpose.msra.mxu0 0.0
    %655 = vmatprep.mubr.f32.mxu0 0.0
    %656 = vmatmul.mubr.f32.gmra.mrb[0].mxu0 %v587
    %v657 = vpop.f32.mrb[0].mxu0
    %v658 = vadd.f32 %v201, %v657
    %v659 = vpop.f32.mrb[0].mxu0
    %660 = vdwg.mxu0
    %661 = vrot.lane.b32.xlu0 %v191, 120
    %v662 = vpop.permute.xlu0 %661
    %v663 = vsel %vm206, %v191, 0
    %v665 = vsel %vm206, %v662, 0
    %667 = vmatprep.subr.mxu0 0.0
    %668 = vmatpush1.xpose.msra.mxu0 %v665
    %669 = vmatprep.subr.mxu0 0.0
    %670 = vmatpush1.xpose.msra.mxu0 0.0
    %671 = vmatprep.subr.mxu0 0.0
    %672 = vmatpush1.xpose.msra.mxu0 0.0
    %673 = vmatprep.subr.mxu0 0.0
    %674 = vmatpush1.xpose.msra.mxu0 0.0
    %675 = vmatprep.subr.mxu0 0.0
    %676 = vmatpush1.xpose.msra.mxu0 0.0
    %677 = vmatprep.subr.mxu0 0.0
    %678 = vmatpush1.xpose.msra.mxu0 0.0
    %679 = vmatprep.subr.mxu0 0.0
    %680 = vmatpush1.xpose.msra.mxu0 0.0
    %681 = vmatprep.subr.mxu0 0.0
    %682 = vmatpush1.xpose.msra.mxu0 0.0
    %683 = vmatprep.subr.mxu0 0.0
    %684 = vmatpush1.xpose.msra.mxu0 0.0
    %685 = vmatprep.subr.mxu0 0.0
    %686 = vmatpush1.xpose.msra.mxu0 0.0
    %687 = vmatprep.subr.mxu0 0.0
    %688 = vmatpush1.xpose.msra.mxu0 0.0
    %689 = vmatprep.subr.mxu0 0.0
    %690 = vmatpush1.xpose.msra.mxu0 0.0
    %691 = vmatprep.subr.mxu0 0.0
    %692 = vmatpush1.xpose.msra.mxu0 0.0
    %693 = vmatprep.subr.mxu0 0.0
    %694 = vmatpush1.xpose.msra.mxu0 0.0
    %695 = vmatprep.subr.mxu0 0.0
    %696 = vmatpush1.xpose.msra.mxu0 0.0
    %697 = vmatprep.subr.mxu0 0.0
    %698 = vmatpush1.xpose.msra.mxu0 0.0
    %699 = vmatprep.subr.mxu0 0.0
    %700 = vmatpush1.xpose.msra.mxu0 0.0
    %701 = vmatprep.subr.mxu0 0.0
    %702 = vmatpush1.xpose.msra.mxu0 0.0
    %703 = vmatprep.subr.mxu0 0.0
    %704 = vmatpush1.xpose.msra.mxu0 0.0
    %705 = vmatprep.subr.mxu0 0.0
    %706 = vmatpush1.xpose.msra.mxu0 0.0
    %707 = vmatprep.subr.mxu0 0.0
    %708 = vmatpush1.xpose.msra.mxu0 0.0
    %709 = vmatprep.subr.mxu0 0.0
    %710 = vmatpush1.xpose.msra.mxu0 0.0
    %711 = vmatprep.subr.mxu0 0.0
    %712 = vmatpush1.xpose.msra.mxu0 0.0
    %713 = vmatprep.subr.mxu0 0.0
    %714 = vmatpush1.xpose.msra.mxu0 0.0
    %715 = vmatprep.subr.mxu0 0.0
    %716 = vmatpush1.xpose.msra.mxu0 0.0
    %717 = vmatprep.subr.mxu0 0.0
    %718 = vmatpush1.xpose.msra.mxu0 0.0
    %719 = vmatprep.subr.mxu0 0.0
    %720 = vmatpush1.xpose.msra.mxu0 0.0
    %721 = vmatprep.subr.mxu0 0.0
    %722 = vmatpush1.xpose.msra.mxu0 0.0
    %723 = vmatprep.subr.mxu0 0.0
    %724 = vmatpush1.xpose.msra.mxu0 0.0
    %725 = vmatprep.subr.mxu0 0.0
    %726 = vmatpush1.xpose.msra.mxu0 0.0
    %727 = vmatprep.subr.mxu0 0.0
    %728 = vmatpush1.xpose.msra.mxu0 0.0
    %729 = vmatprep.subr.mxu0 0.0
    %730 = vmatpush1.xpose.msra.mxu0 0.0
    %731 = vmatprep.mubr.f32.mxu0 0.0
    %732 = vmatmul.mubr.f32.gmra.mrb[0].mxu0 %v663
    %v733 = vpop.f32.mrb[0].mxu0
    %v734 = vadd.f32 %v197, %v733
    %v735 = vpop.f32.mrb[0].mxu0
    %736 = vdwg.mxu0
    %737 = vrot.lane.b32.xlu0 %v193, 120
    %v738 = vpop.permute.xlu0 %737
    %v739 = vsel %vm206, %v193, 0
    %v741 = vsel %vm206, %v738, 0
    %743 = vmatprep.subr.mxu0 0.0
    %744 = vmatpush1.xpose.msra.mxu0 %v741
    %745 = vmatprep.subr.mxu0 0.0
    %746 = vmatpush1.xpose.msra.mxu0 0.0
    %747 = vmatprep.subr.mxu0 0.0
    %748 = vmatpush1.xpose.msra.mxu0 0.0
    %749 = vmatprep.subr.mxu0 0.0
    %750 = vmatpush1.xpose.msra.mxu0 0.0
    %751 = vmatprep.subr.mxu0 0.0
    %752 = vmatpush1.xpose.msra.mxu0 0.0
    %753 = vmatprep.subr.mxu0 0.0
    %754 = vmatpush1.xpose.msra.mxu0 0.0
    %755 = vmatprep.subr.mxu0 0.0
    %756 = vmatpush1.xpose.msra.mxu0 0.0
    %757 = vmatprep.subr.mxu0 0.0
    %758 = vmatpush1.xpose.msra.mxu0 0.0
    %759 = vmatprep.subr.mxu0 0.0
    %760 = vmatpush1.xpose.msra.mxu0 0.0
    %761 = vmatprep.subr.mxu0 0.0
    %762 = vmatpush1.xpose.msra.mxu0 0.0
    %763 = vmatprep.subr.mxu0 0.0
    %764 = vmatpush1.xpose.msra.mxu0 0.0
    %765 = vmatprep.subr.mxu0 0.0
    %766 = vmatpush1.xpose.msra.mxu0 0.0
    %767 = vmatprep.subr.mxu0 0.0
    %768 = vmatpush1.xpose.msra.mxu0 0.0
    %769 = vmatprep.subr.mxu0 0.0
    %770 = vmatpush1.xpose.msra.mxu0 0.0
    %771 = vmatprep.subr.mxu0 0.0
    %772 = vmatpush1.xpose.msra.mxu0 0.0
    %773 = vmatprep.subr.mxu0 0.0
    %774 = vmatpush1.xpose.msra.mxu0 0.0
    %775 = vmatprep.subr.mxu0 0.0
    %776 = vmatpush1.xpose.msra.mxu0 0.0
    %777 = vmatprep.subr.mxu0 0.0
    %778 = vmatpush1.xpose.msra.mxu0 0.0
    %779 = vmatprep.subr.mxu0 0.0
    %780 = vmatpush1.xpose.msra.mxu0 0.0
    %781 = vmatprep.subr.mxu0 0.0
    %782 = vmatpush1.xpose.msra.mxu0 0.0
    %783 = vmatprep.subr.mxu0 0.0
    %784 = vmatpush1.xpose.msra.mxu0 0.0
    %785 = vmatprep.subr.mxu0 0.0
    %786 = vmatpush1.xpose.msra.mxu0 0.0
    %787 = vmatprep.subr.mxu0 0.0
    %788 = vmatpush1.xpose.msra.mxu0 0.0
    %789 = vmatprep.subr.mxu0 0.0
    %790 = vmatpush1.xpose.msra.mxu0 0.0
    %791 = vmatprep.subr.mxu0 0.0
    %792 = vmatpush1.xpose.msra.mxu0 0.0
    %793 = vmatprep.subr.mxu0 0.0
    %794 = vmatpush1.xpose.msra.mxu0 0.0
    %795 = vmatprep.subr.mxu0 0.0
    %796 = vmatpush1.xpose.msra.mxu0 0.0
    %797 = vmatprep.subr.mxu0 0.0
    %798 = vmatpush1.xpose.msra.mxu0 0.0
    %799 = vmatprep.subr.mxu0 0.0
    %800 = vmatpush1.xpose.msra.mxu0 0.0
    %801 = vmatprep.subr.mxu0 0.0
    %802 = vmatpush1.xpose.msra.mxu0 0.0
    %803 = vmatprep.subr.mxu0 0.0
    %804 = vmatpush1.xpose.msra.mxu0 0.0
    %805 = vmatprep.subr.mxu0 0.0
    %806 = vmatpush1.xpose.msra.mxu0 0.0
    %807 = vmatprep.mubr.f32.mxu0 0.0
    %808 = vmatmul.mubr.f32.gmra.mrb[0].mxu0 %v739
    %v809 = vpop.f32.mrb[0].mxu0
    %v810 = vadd.f32 %v201, %v809
    %v811 = vpop.f32.mrb[0].mxu0
    %812 = vdwg.mxu0
    %v813 = vsel %vm206, %v278, -inf
    %814 = vmax.xlane.f32.xlu0 %v813
    %v815 = vpop.xlane.xlu0 %814
    %v816 = vsel %vm206, %v354, -inf
    %817 = vmax.xlane.f32.xlu0 %v816
    %v818 = vpop.xlane.xlu0 %817
    %v819 = vsel %vm206, %v430, -inf
    %820 = vmax.xlane.f32.xlu0 %v819
    %v821 = vpop.xlane.xlu0 %820
    %v822 = vsel %vm206, %v506, -inf
    %823 = vmax.xlane.f32.xlu0 %v822
    %v824 = vpop.xlane.xlu0 %823
    %v825 = vsel %vm206, %v582, -inf
    %826 = vmax.xlane.f32.xlu0 %v825
    %v827 = vpop.xlane.xlu0 %826
    %v828 = vsel %vm206, %v658, -inf
    %829 = vmax.xlane.f32.xlu0 %v828
    %v830 = vpop.xlane.xlu0 %829
    %v831 = vsel %vm206, %v734, -inf
    %832 = vmax.xlane.f32.xlu0 %v831
    %v833 = vpop.xlane.xlu0 %832
    %v834 = vsel %vm206, %v810, -inf
    %835 = vmax.xlane.f32.xlu0 %v834
    %v836 = vpop.xlane.xlu0 %835
    %v837 = vsub.f32 %v278, %v815
    %v838 = vsub.f32 %v354, %v818
    %v839 = vsub.f32 %v430, %v821
    %v840 = vsub.f32 %v506, %v824
    %v841 = vsub.f32 %v582, %v827
    %v842 = vsub.f32 %v658, %v830
    %v843 = vsub.f32 %v734, %v833
    %v844 = vsub.f32 %v810, %v836
    %v845 = vmul.f32 %v837, 1.442695
    %v846 = vpow.pop %v845
    %v847 = vmul.f32 %v838, 1.442695
    %v848 = vpow.pop %v847
    %v849 = vmul.f32 %v839, 1.442695
    %v850 = vpow.pop %v849
    %v851 = vmul.f32 %v840, 1.442695
    %v852 = vpow.pop %v851
    %v853 = vmul.f32 %v841, 1.442695
    %v854 = vpow.pop %v853
    %v855 = vmul.f32 %v842, 1.442695
    %v856 = vpow.pop %v855
    %v857 = vmul.f32 %v843, 1.442695
    %v858 = vpow.pop %v857
    %v859 = vmul.f32 %v844, 1.442695
    %v860 = vpow.pop %v859
    %v861 = vsel %vm206, %v846, 0.0
    %862 = vadd.xlane.f32.xlu0 %v861
    %v863 = vpop.xlane.xlu0 %862
    %v864 = vsel %vm206, %v848, 0.0
    %865 = vadd.xlane.f32.xlu0 %v864
    %v866 = vpop.xlane.xlu0 %865
    %v867 = vsel %vm206, %v850, 0.0
    %868 = vadd.xlane.f32.xlu0 %v867
    %v869 = vpop.xlane.xlu0 %868
    %v870 = vsel %vm206, %v852, 0.0
    %871 = vadd.xlane.f32.xlu0 %v870
    %v872 = vpop.xlane.xlu0 %871
    %v873 = vsel %vm206, %v854, 0.0
    %874 = vadd.xlane.f32.xlu0 %v873
    %v875 = vpop.xlane.xlu0 %874
    %v876 = vsel %vm206, %v856, 0.0
    %877 = vadd.xlane.f32.xlu0 %v876
    %v878 = vpop.xlane.xlu0 %877
    %v879 = vsel %vm206, %v858, 0.0
    %880 = vadd.xlane.f32.xlu0 %v879
    %v881 = vpop.xlane.xlu0 %880
    %v882 = vsel %vm206, %v860, 0.0
    %883 = vadd.xlane.f32.xlu0 %v882
    %v884 = vpop.xlane.xlu0 %883
    %v885 = vrcp.pop %v863
    %v886 = vrcp.pop %v866
    %v887 = vrcp.pop %v869
    %v888 = vrcp.pop %v872
    %v889 = vrcp.pop %v875
    %v890 = vrcp.pop %v878
    %v891 = vrcp.pop %v881
    %v892 = vrcp.pop %v884
    %v893 = vmul.f32 %v846, %v885
    %v894 = vmul.f32 %v848, %v886
    %v895 = vmul.f32 %v850, %v887
    %v896 = vmul.f32 %v852, %v888
    %v897 = vmul.f32 %v854, %v889
    %v898 = vmul.f32 %v856, %v890
    %v899 = vmul.f32 %v858, %v891
    %v900 = vmul.f32 %v860, %v892
    %901 = vrot.lane.b32.xlu0 %v172, 112
    %v902 = vpop.permute.xlu0 %901
    %v905 = vsel %vm206, %v893, 0
    %907 = vmatprep.subr.mxu0 0.0
    %908 = vmatpush1.msra.mxu0 %v902
    %909 = vmatprep.subr.mxu0 0.0
    %910 = vmatpush1.msra.mxu0 0.0
    %911 = vmatprep.subr.mxu0 0.0
    %912 = vmatpush1.msra.mxu0 0.0
    %913 = vmatprep.subr.mxu0 0.0
    %914 = vmatpush1.msra.mxu0 0.0
    %915 = vmatprep.subr.mxu0 0.0
    %916 = vmatpush1.msra.mxu0 0.0
    %917 = vmatprep.subr.mxu0 0.0
    %918 = vmatpush1.msra.mxu0 0.0
    %919 = vmatprep.subr.mxu0 0.0
    %920 = vmatpush1.msra.mxu0 0.0
    %921 = vmatprep.subr.mxu0 0.0
    %922 = vmatpush1.msra.mxu0 0.0
    %923 = vmatprep.subr.mxu0 0.0
    %924 = vmatpush1.msra.mxu0 0.0
    %925 = vmatprep.subr.mxu0 0.0
    %926 = vmatpush1.msra.mxu0 0.0
    %927 = vmatprep.subr.mxu0 0.0
    %928 = vmatpush1.msra.mxu0 0.0
    %929 = vmatprep.subr.mxu0 0.0
    %930 = vmatpush1.msra.mxu0 0.0
    %931 = vmatprep.subr.mxu0 0.0
    %932 = vmatpush1.msra.mxu0 0.0
    %933 = vmatprep.subr.mxu0 0.0
    %934 = vmatpush1.msra.mxu0 0.0
    %935 = vmatprep.subr.mxu0 0.0
    %936 = vmatpush1.msra.mxu0 0.0
    %937 = vmatprep.subr.mxu0 0.0
    %938 = vmatpush1.msra.mxu0 0.0
    %939 = vmatprep.subr.mxu0 0.0
    %940 = vmatpush1.msra.mxu0 0.0
    %941 = vmatprep.subr.mxu0 0.0
    %942 = vmatpush1.msra.mxu0 0.0
    %943 = vmatprep.subr.mxu0 0.0
    %944 = vmatpush1.msra.mxu0 0.0
    %945 = vmatprep.subr.mxu0 0.0
    %946 = vmatpush1.msra.mxu0 0.0
    %947 = vmatprep.subr.mxu0 0.0
    %948 = vmatpush1.msra.mxu0 0.0
    %949 = vmatprep.subr.mxu0 0.0
    %950 = vmatpush1.msra.mxu0 0.0
    %951 = vmatprep.subr.mxu0 0.0
    %952 = vmatpush1.msra.mxu0 0.0
    %953 = vmatprep.subr.mxu0 0.0
    %954 = vmatpush1.msra.mxu0 0.0
    %955 = vmatprep.subr.mxu0 0.0
    %956 = vmatpush1.msra.mxu0 0.0
    %957 = vmatprep.subr.mxu0 0.0
    %958 = vmatpush1.msra.mxu0 0.0
    %959 = vmatprep.subr.mxu0 0.0
    %960 = vmatpush1.msra.mxu0 0.0
    %961 = vmatprep.subr.mxu0 0.0
    %962 = vmatpush1.msra.mxu0 0.0
    %963 = vmatprep.subr.mxu0 0.0
    %964 = vmatpush1.msra.mxu0 0.0
    %965 = vmatprep.subr.mxu0 0.0
    %966 = vmatpush1.msra.mxu0 0.0
    %967 = vmatprep.subr.mxu0 0.0
    %968 = vmatpush1.msra.mxu0 0.0
    %969 = vmatprep.subr.mxu0 0.0
    %970 = vmatpush1.msra.mxu0 0.0
    %971 = vmatprep.mubr.f32.mxu0 0.0
    %972 = vmatmul.mubr.f32.gmra.mrb[0].mxu0 %v905
    %v973 = vpop.f32.mrb[0].mxu0
    %v974 = vadd.f32 0.0, %v973
    %v975 = vpop.f32.mrb[0].mxu0
    %976 = vdwg.mxu0
    %977 = vrot.lane.b32.xlu0 %v177, 112
    %v978 = vpop.permute.xlu0 %977
    %v981 = vsel %vm206, %v894, 0
    %983 = vmatprep.subr.mxu0 0.0
    %984 = vmatpush1.msra.mxu0 %v978
    %985 = vmatprep.subr.mxu0 0.0
    %986 = vmatpush1.msra.mxu0 0.0
    %987 = vmatprep.subr.mxu0 0.0
    %988 = vmatpush1.msra.mxu0 0.0
    %989 = vmatprep.subr.mxu0 0.0
    %990 = vmatpush1.msra.mxu0 0.0
    %991 = vmatprep.subr.mxu0 0.0
    %992 = vmatpush1.msra.mxu0 0.0
    %993 = vmatprep.subr.mxu0 0.0
    %994 = vmatpush1.msra.mxu0 0.0
    %995 = vmatprep.subr.mxu0 0.0
    %996 = vmatpush1.msra.mxu0 0.0
    %997 = vmatprep.subr.mxu0 0.0
    %998 = vmatpush1.msra.mxu0 0.0
    %999 = vmatprep.subr.mxu0 0.0
    %1000 = vmatpush1.msra.mxu0 0.0
    %1001 = vmatprep.subr.mxu0 0.0
    %1002 = vmatpush1.msra.mxu0 0.0
    %1003 = vmatprep.subr.mxu0 0.0
    %1004 = vmatpush1.msra.mxu0 0.0
    %1005 = vmatprep.subr.mxu0 0.0
    %1006 = vmatpush1.msra.mxu0 0.0
    %1007 = vmatprep.subr.mxu0 0.0
    %1008 = vmatpush1.msra.mxu0 0.0
    %1009 = vmatprep.subr.mxu0 0.0
    %1010 = vmatpush1.msra.mxu0 0.0
    %1011 = vmatprep.subr.mxu0 0.0
    %1012 = vmatpush1.msra.mxu0 0.0
    %1013 = vmatprep.subr.mxu0 0.0
    %1014 = vmatpush1.msra.mxu0 0.0
    %1015 = vmatprep.subr.mxu0 0.0
    %1016 = vmatpush1.msra.mxu0 0.0
    %1017 = vmatprep.subr.mxu0 0.0
    %1018 = vmatpush1.msra.mxu0 0.0
    %1019 = vmatprep.subr.mxu0 0.0
    %1020 = vmatpush1.msra.mxu0 0.0
    %1021 = vmatprep.subr.mxu0 0.0
    %1022 = vmatpush1.msra.mxu0 0.0
    %1023 = vmatprep.subr.mxu0 0.0
    %1024 = vmatpush1.msra.mxu0 0.0
    %1025 = vmatprep.subr.mxu0 0.0
    %1026 = vmatpush1.msra.mxu0 0.0
    %1027 = vmatprep.subr.mxu0 0.0
    %1028 = vmatpush1.msra.mxu0 0.0
    %1029 = vmatprep.subr.mxu0 0.0
    %1030 = vmatpush1.msra.mxu0 0.0
    %1031 = vmatprep.subr.mxu0 0.0
    %1032 = vmatpush1.msra.mxu0 0.0
    %1033 = vmatprep.subr.mxu0 0.0
    %1034 = vmatpush1.msra.mxu0 0.0
    %1035 = vmatprep.subr.mxu0 0.0
    %1036 = vmatpush1.msra.mxu0 0.0
    %1037 = vmatprep.subr.mxu0 0.0
    %1038 = vmatpush1.msra.mxu0 0.0
    %1039 = vmatprep.subr.mxu0 0.0
    %1040 = vmatpush1.msra.mxu0 0.0
    %1041 = vmatprep.subr.mxu0 0.0
    %1042 = vmatpush1.msra.mxu0 0.0
    %1043 = vmatprep.subr.mxu0 0.0
    %1044 = vmatpush1.msra.mxu0 0.0
    %1045 = vmatprep.subr.mxu0 0.0
    %1046 = vmatpush1.msra.mxu0 0.0
    %1047 = vmatprep.mubr.f32.mxu0 0.0
    %1048 = vmatmul.mubr.f32.gmra.mrb[0].mxu0 %v981
    %v1049 = vpop.f32.mrb[0].mxu0
    %v1050 = vadd.f32 0.0, %v1049
    %v1051 = vpop.f32.mrb[0].mxu0
    %1052 = vdwg.mxu0
    %1053 = vrot.lane.b32.xlu0 %v183, 112
    %v1054 = vpop.permute.xlu0 %1053
    %v1057 = vsel %vm206, %v895, 0
    %1059 = vmatprep.subr.mxu0 0.0
    %1060 = vmatpush1.msra.mxu0 %v1054
    %1061 = vmatprep.subr.mxu0 0.0
    %1062 = vmatpush1.msra.mxu0 0.0
    %1063 = vmatprep.subr.mxu0 0.0
    %1064 = vmatpush1.msra.mxu0 0.0
    %1065 = vmatprep.subr.mxu0 0.0
    %1066 = vmatpush1.msra.mxu0 0.0
    %1067 = vmatprep.subr.mxu0 0.0
    %1068 = vmatpush1.msra.mxu0 0.0
    %1069 = vmatprep.subr.mxu0 0.0
    %1070 = vmatpush1.msra.mxu0 0.0
    %1071 = vmatprep.subr.mxu0 0.0
    %1072 = vmatpush1.msra.mxu0 0.0
    %1073 = vmatprep.subr.mxu0 0.0
    %1074 = vmatpush1.msra.mxu0 0.0
    %1075 = vmatprep.subr.mxu0 0.0
    %1076 = vmatpush1.msra.mxu0 0.0
    %1077 = vmatprep.subr.mxu0 0.0
    %1078 = vmatpush1.msra.mxu0 0.0
    %1079 = vmatprep.subr.mxu0 0.0
    %1080 = vmatpush1.msra.mxu0 0.0
    %1081 = vmatprep.subr.mxu0 0.0
    %1082 = vmatpush1.msra.mxu0 0.0
    %1083 = vmatprep.subr.mxu0 0.0
    %1084 = vmatpush1.msra.mxu0 0.0
    %1085 = vmatprep.subr.mxu0 0.0
    %1086 = vmatpush1.msra.mxu0 0.0
    %1087 = vmatprep.subr.mxu0 0.0
    %1088 = vmatpush1.msra.mxu0 0.0
    %1089 = vmatprep.subr.mxu0 0.0
    %1090 = vmatpush1.msra.mxu0 0.0
    %1091 = vmatprep.subr.mxu0 0.0
    %1092 = vmatpush1.msra.mxu0 0.0
    %1093 = vmatprep.subr.mxu0 0.0
    %1094 = vmatpush1.msra.mxu0 0.0
    %1095 = vmatprep.subr.mxu0 0.0
    %1096 = vmatpush1.msra.mxu0 0.0
    %1097 = vmatprep.subr.mxu0 0.0
    %1098 = vmatpush1.msra.mxu0 0.0
    %1099 = vmatprep.subr.mxu0 0.0
    %1100 = vmatpush1.msra.mxu0 0.0
    %1101 = vmatprep.subr.mxu0 0.0
    %1102 = vmatpush1.msra.mxu0 0.0
    %1103 = vmatprep.subr.mxu0 0.0
    %1104 = vmatpush1.msra.mxu0 0.0
    %1105 = vmatprep.subr.mxu0 0.0
    %1106 = vmatpush1.msra.mxu0 0.0
    %1107 = vmatprep.subr.mxu0 0.0
    %1108 = vmatpush1.msra.mxu0 0.0
    %1109 = vmatprep.subr.mxu0 0.0
    %1110 = vmatpush1.msra.mxu0 0.0
    %1111 = vmatprep.subr.mxu0 0.0
    %1112 = vmatpush1.msra.mxu0 0.0
    %1113 = vmatprep.subr.mxu0 0.0
    %1114 = vmatpush1.msra.mxu0 0.0
    %1115 = vmatprep.subr.mxu0 0.0
    %1116 = vmatpush1.msra.mxu0 0.0
    %1117 = vmatprep.subr.mxu0 0.0
    %1118 = vmatpush1.msra.mxu0 0.0
    %1119 = vmatprep.subr.mxu0 0.0
    %1120 = vmatpush1.msra.mxu0 0.0
    %1121 = vmatprep.subr.mxu0 0.0
    %1122 = vmatpush1.msra.mxu0 0.0
    %1123 = vmatprep.mubr.f32.mxu0 0.0
    %1124 = vmatmul.mubr.f32.gmra.mrb[0].mxu0 %v1057
    %v1125 = vpop.f32.mrb[0].mxu0
    %v1126 = vadd.f32 0.0, %v1125
    %v1127 = vpop.f32.mrb[0].mxu0
    %1128 = vdwg.mxu0
    %1129 = vrot.lane.b32.xlu0 %v185, 112
    %v1130 = vpop.permute.xlu0 %1129
    %v1133 = vsel %vm206, %v896, 0
    %1135 = vmatprep.subr.mxu0 0.0
    %1136 = vmatpush1.msra.mxu0 %v1130
    %1137 = vmatprep.subr.mxu0 0.0
    %1138 = vmatpush1.msra.mxu0 0.0
    %1139 = vmatprep.subr.mxu0 0.0
    %1140 = vmatpush1.msra.mxu0 0.0
    %1141 = vmatprep.subr.mxu0 0.0
    %1142 = vmatpush1.msra.mxu0 0.0
    %1143 = vmatprep.subr.mxu0 0.0
    %1144 = vmatpush1.msra.mxu0 0.0
    %1145 = vmatprep.subr.mxu0 0.0
    %1146 = vmatpush1.msra.mxu0 0.0
    %1147 = vmatprep.subr.mxu0 0.0
    %1148 = vmatpush1.msra.mxu0 0.0
    %1149 = vmatprep.subr.mxu0 0.0
    %1150 = vmatpush1.msra.mxu0 0.0
    %1151 = vmatprep.subr.mxu0 0.0
    %1152 = vmatpush1.msra.mxu0 0.0
    %1153 = vmatprep.subr.mxu0 0.0
    %1154 = vmatpush1.msra.mxu0 0.0
    %1155 = vmatprep.subr.mxu0 0.0
    %1156 = vmatpush1.msra.mxu0 0.0
    %1157 = vmatprep.subr.mxu0 0.0
    %1158 = vmatpush1.msra.mxu0 0.0
    %1159 = vmatprep.subr.mxu0 0.0
    %1160 = vmatpush1.msra.mxu0 0.0
    %1161 = vmatprep.subr.mxu0 0.0
    %1162 = vmatpush1.msra.mxu0 0.0
    %1163 = vmatprep.subr.mxu0 0.0
    %1164 = vmatpush1.msra.mxu0 0.0
    %1165 = vmatprep.subr.mxu0 0.0
    %1166 = vmatpush1.msra.mxu0 0.0
    %1167 = vmatprep.subr.mxu0 0.0
    %1168 = vmatpush1.msra.mxu0 0.0
    %1169 = vmatprep.subr.mxu0 0.0
    %1170 = vmatpush1.msra.mxu0 0.0
    %1171 = vmatprep.subr.mxu0 0.0
    %1172 = vmatpush1.msra.mxu0 0.0
    %1173 = vmatprep.subr.mxu0 0.0
    %1174 = vmatpush1.msra.mxu0 0.0
    %1175 = vmatprep.subr.mxu0 0.0
    %1176 = vmatpush1.msra.mxu0 0.0
    %1177 = vmatprep.subr.mxu0 0.0
    %1178 = vmatpush1.msra.mxu0 0.0
    %1179 = vmatprep.subr.mxu0 0.0
    %1180 = vmatpush1.msra.mxu0 0.0
    %1181 = vmatprep.subr.mxu0 0.0
    %1182 = vmatpush1.msra.mxu0 0.0
    %1183 = vmatprep.subr.mxu0 0.0
    %1184 = vmatpush1.msra.mxu0 0.0
    %1185 = vmatprep.subr.mxu0 0.0
    %1186 = vmatpush1.msra.mxu0 0.0
    %1187 = vmatprep.subr.mxu0 0.0
    %1188 = vmatpush1.msra.mxu0 0.0
    %1189 = vmatprep.subr.mxu0 0.0
    %1190 = vmatpush1.msra.mxu0 0.0
    %1191 = vmatprep.subr.mxu0 0.0
    %1192 = vmatpush1.msra.mxu0 0.0
    %1193 = vmatprep.subr.mxu0 0.0
    %1194 = vmatpush1.msra.mxu0 0.0
    %1195 = vmatprep.subr.mxu0 0.0
    %1196 = vmatpush1.msra.mxu0 0.0
    %1197 = vmatprep.subr.mxu0 0.0
    %1198 = vmatpush1.msra.mxu0 0.0
    %1199 = vmatprep.mubr.f32.mxu0 0.0
    %1200 = vmatmul.mubr.f32.gmra.mrb[0].mxu0 %v1133
    %v1201 = vpop.f32.mrb[0].mxu0
    %v1202 = vadd.f32 0.0, %v1201
    %v1203 = vpop.f32.mrb[0].mxu0
    %1204 = vdwg.mxu0
    %1205 = vrot.lane.b32.xlu0 %v187, 112
    %v1206 = vpop.permute.xlu0 %1205
    %v1209 = vsel %vm206, %v897, 0
    %1211 = vmatprep.subr.mxu0 0.0
    %1212 = vmatpush1.msra.mxu0 %v1206
    %1213 = vmatprep.subr.mxu0 0.0
    %1214 = vmatpush1.msra.mxu0 0.0
    %1215 = vmatprep.subr.mxu0 0.0
    %1216 = vmatpush1.msra.mxu0 0.0
    %1217 = vmatprep.subr.mxu0 0.0
    %1218 = vmatpush1.msra.mxu0 0.0
    %1219 = vmatprep.subr.mxu0 0.0
    %1220 = vmatpush1.msra.mxu0 0.0
    %1221 = vmatprep.subr.mxu0 0.0
    %1222 = vmatpush1.msra.mxu0 0.0
    %1223 = vmatprep.subr.mxu0 0.0
    %1224 = vmatpush1.msra.mxu0 0.0
    %1225 = vmatprep.subr.mxu0 0.0
    %1226 = vmatpush1.msra.mxu0 0.0
    %1227 = vmatprep.subr.mxu0 0.0
    %1228 = vmatpush1.msra.mxu0 0.0
    %1229 = vmatprep.subr.mxu0 0.0
    %1230 = vmatpush1.msra.mxu0 0.0
    %1231 = vmatprep.subr.mxu0 0.0
    %1232 = vmatpush1.msra.mxu0 0.0
    %1233 = vmatprep.subr.mxu0 0.0
    %1234 = vmatpush1.msra.mxu0 0.0
    %1235 = vmatprep.subr.mxu0 0.0
    %1236 = vmatpush1.msra.mxu0 0.0
    %1237 = vmatprep.subr.mxu0 0.0
    %1238 = vmatpush1.msra.mxu0 0.0
    %1239 = vmatprep.subr.mxu0 0.0
    %1240 = vmatpush1.msra.mxu0 0.0
    %1241 = vmatprep.subr.mxu0 0.0
    %1242 = vmatpush1.msra.mxu0 0.0
    %1243 = vmatprep.subr.mxu0 0.0
    %1244 = vmatpush1.msra.mxu0 0.0
    %1245 = vmatprep.subr.mxu0 0.0
    %1246 = vmatpush1.msra.mxu0 0.0
    %1247 = vmatprep.subr.mxu0 0.0
    %1248 = vmatpush1.msra.mxu0 0.0
    %1249 = vmatprep.subr.mxu0 0.0
    %1250 = vmatpush1.msra.mxu0 0.0
    %1251 = vmatprep.subr.mxu0 0.0
    %1252 = vmatpush1.msra.mxu0 0.0
    %1253 = vmatprep.subr.mxu0 0.0
    %1254 = vmatpush1.msra.mxu0 0.0
    %1255 = vmatprep.subr.mxu0 0.0
    %1256 = vmatpush1.msra.mxu0 0.0
    %1257 = vmatprep.subr.mxu0 0.0
    %1258 = vmatpush1.msra.mxu0 0.0
    %1259 = vmatprep.subr.mxu0 0.0
    %1260 = vmatpush1.msra.mxu0 0.0
    %1261 = vmatprep.subr.mxu0 0.0
    %1262 = vmatpush1.msra.mxu0 0.0
    %1263 = vmatprep.subr.mxu0 0.0
    %1264 = vmatpush1.msra.mxu0 0.0
    %1265 = vmatprep.subr.mxu0 0.0
    %1266 = vmatpush1.msra.mxu0 0.0
    %1267 = vmatprep.subr.mxu0 0.0
    %1268 = vmatpush1.msra.mxu0 0.0
    %1269 = vmatprep.subr.mxu0 0.0
    %1270 = vmatpush1.msra.mxu0 0.0
    %1271 = vmatprep.subr.mxu0 0.0
    %1272 = vmatpush1.msra.mxu0 0.0
    %1273 = vmatprep.subr.mxu0 0.0
    %1274 = vmatpush1.msra.mxu0 0.0
    %1275 = vmatprep.mubr.f32.mxu0 0.0
    %1276 = vmatmul.mubr.f32.gmra.mrb[0].mxu0 %v1209
    %v1277 = vpop.f32.mrb[0].mxu0
    %v1278 = vadd.f32 0.0, %v1277
    %v1279 = vpop.f32.mrb[0].mxu0
    %1280 = vdwg.mxu0
    %1281 = vrot.lane.b32.xlu0 %v189, 112
    %v1282 = vpop.permute.xlu0 %1281
    %v1285 = vsel %vm206, %v898, 0
    %1287 = vmatprep.subr.mxu0 0.0
    %1288 = vmatpush1.msra.mxu0 %v1282
    %1289 = vmatprep.subr.mxu0 0.0
    %1290 = vmatpush1.msra.mxu0 0.0
    %1291 = vmatprep.subr.mxu0 0.0
    %1292 = vmatpush1.msra.mxu0 0.0
    %1293 = vmatprep.subr.mxu0 0.0
    %1294 = vmatpush1.msra.mxu0 0.0
    %1295 = vmatprep.subr.mxu0 0.0
    %1296 = vmatpush1.msra.mxu0 0.0
    %1297 = vmatprep.subr.mxu0 0.0
    %1298 = vmatpush1.msra.mxu0 0.0
    %1299 = vmatprep.subr.mxu0 0.0
    %1300 = vmatpush1.msra.mxu0 0.0
    %1301 = vmatprep.subr.mxu0 0.0
    %1302 = vmatpush1.msra.mxu0 0.0
    %1303 = vmatprep.subr.mxu0 0.0
    %1304 = vmatpush1.msra.mxu0 0.0
    %1305 = vmatprep.subr.mxu0 0.0
    %1306 = vmatpush1.msra.mxu0 0.0
    %1307 = vmatprep.subr.mxu0 0.0
    %1308 = vmatpush1.msra.mxu0 0.0
    %1309 = vmatprep.subr.mxu0 0.0
    %1310 = vmatpush1.msra.mxu0 0.0
    %1311 = vmatprep.subr.mxu0 0.0
    %1312 = vmatpush1.msra.mxu0 0.0
    %1313 = vmatprep.subr.mxu0 0.0
    %1314 = vmatpush1.msra.mxu0 0.0
    %1315 = vmatprep.subr.mxu0 0.0
    %1316 = vmatpush1.msra.mxu0 0.0
    %1317 = vmatprep.subr.mxu0 0.0
    %1318 = vmatpush1.msra.mxu0 0.0
    %1319 = vmatprep.subr.mxu0 0.0
    %1320 = vmatpush1.msra.mxu0 0.0
    %1321 = vmatprep.subr.mxu0 0.0
    %1322 = vmatpush1.msra.mxu0 0.0
    %1323 = vmatprep.subr.mxu0 0.0
    %1324 = vmatpush1.msra.mxu0 0.0
    %1325 = vmatprep.subr.mxu0 0.0
    %1326 = vmatpush1.msra.mxu0 0.0
    %1327 = vmatprep.subr.mxu0 0.0
    %1328 = vmatpush1.msra.mxu0 0.0
    %1329 = vmatprep.subr.mxu0 0.0
    %1330 = vmatpush1.msra.mxu0 0.0
    %1331 = vmatprep.subr.mxu0 0.0
    %1332 = vmatpush1.msra.mxu0 0.0
    %1333 = vmatprep.subr.mxu0 0.0
    %1334 = vmatpush1.msra.mxu0 0.0
    %1335 = vmatprep.subr.mxu0 0.0
    %1336 = vmatpush1.msra.mxu0 0.0
    %1337 = vmatprep.subr.mxu0 0.0
    %1338 = vmatpush1.msra.mxu0 0.0
    %1339 = vmatprep.subr.mxu0 0.0
    %1340 = vmatpush1.msra.mxu0 0.0
    %1341 = vmatprep.subr.mxu0 0.0
    %1342 = vmatpush1.msra.mxu0 0.0
    %1343 = vmatprep.subr.mxu0 0.0
    %1344 = vmatpush1.msra.mxu0 0.0
    %1345 = vmatprep.subr.mxu0 0.0
    %1346 = vmatpush1.msra.mxu0 0.0
    %1347 = vmatprep.subr.mxu0 0.0
    %1348 = vmatpush1.msra.mxu0 0.0
    %1349 = vmatprep.subr.mxu0 0.0
    %1350 = vmatpush1.msra.mxu0 0.0
    %1351 = vmatprep.mubr.f32.mxu0 0.0
    %1352 = vmatmul.mubr.f32.gmra.mrb[0].mxu0 %v1285
    %v1353 = vpop.f32.mrb[0].mxu0
    %v1354 = vadd.f32 0.0, %v1353
    %v1355 = vpop.f32.mrb[0].mxu0
    %1356 = vdwg.mxu0
    %1357 = vrot.lane.b32.xlu0 %v191, 112
    %v1358 = vpop.permute.xlu0 %1357
    %v1361 = vsel %vm206, %v899, 0
    %1363 = vmatprep.subr.mxu0 0.0
    %1364 = vmatpush1.msra.mxu0 %v1358
    %1365 = vmatprep.subr.mxu0 0.0
    %1366 = vmatpush1.msra.mxu0 0.0
    %1367 = vmatprep.subr.mxu0 0.0
    %1368 = vmatpush1.msra.mxu0 0.0
    %1369 = vmatprep.subr.mxu0 0.0
    %1370 = vmatpush1.msra.mxu0 0.0
    %1371 = vmatprep.subr.mxu0 0.0
    %1372 = vmatpush1.msra.mxu0 0.0
    %1373 = vmatprep.subr.mxu0 0.0
    %1374 = vmatpush1.msra.mxu0 0.0
    %1375 = vmatprep.subr.mxu0 0.0
    %1376 = vmatpush1.msra.mxu0 0.0
    %1377 = vmatprep.subr.mxu0 0.0
    %1378 = vmatpush1.msra.mxu0 0.0
    %1379 = vmatprep.subr.mxu0 0.0
    %1380 = vmatpush1.msra.mxu0 0.0
    %1381 = vmatprep.subr.mxu0 0.0
    %1382 = vmatpush1.msra.mxu0 0.0
    %1383 = vmatprep.subr.mxu0 0.0
    %1384 = vmatpush1.msra.mxu0 0.0
    %1385 = vmatprep.subr.mxu0 0.0
    %1386 = vmatpush1.msra.mxu0 0.0
    %1387 = vmatprep.subr.mxu0 0.0
    %1388 = vmatpush1.msra.mxu0 0.0
    %1389 = vmatprep.subr.mxu0 0.0
    %1390 = vmatpush1.msra.mxu0 0.0
    %1391 = vmatprep.subr.mxu0 0.0
    %1392 = vmatpush1.msra.mxu0 0.0
    %1393 = vmatprep.subr.mxu0 0.0
    %1394 = vmatpush1.msra.mxu0 0.0
    %1395 = vmatprep.subr.mxu0 0.0
    %1396 = vmatpush1.msra.mxu0 0.0
    %1397 = vmatprep.subr.mxu0 0.0
    %1398 = vmatpush1.msra.mxu0 0.0
    %1399 = vmatprep.subr.mxu0 0.0
    %1400 = vmatpush1.msra.mxu0 0.0
    %1401 = vmatprep.subr.mxu0 0.0
    %1402 = vmatpush1.msra.mxu0 0.0
    %1403 = vmatprep.subr.mxu0 0.0
    %1404 = vmatpush1.msra.mxu0 0.0
    %1405 = vmatprep.subr.mxu0 0.0
    %1406 = vmatpush1.msra.mxu0 0.0
    %1407 = vmatprep.subr.mxu0 0.0
    %1408 = vmatpush1.msra.mxu0 0.0
    %1409 = vmatprep.subr.mxu0 0.0
    %1410 = vmatpush1.msra.mxu0 0.0
    %1411 = vmatprep.subr.mxu0 0.0
    %1412 = vmatpush1.msra.mxu0 0.0
    %1413 = vmatprep.subr.mxu0 0.0
    %1414 = vmatpush1.msra.mxu0 0.0
    %1415 = vmatprep.subr.mxu0 0.0
    %1416 = vmatpush1.msra.mxu0 0.0
    %1417 = vmatprep.subr.mxu0 0.0
    %1418 = vmatpush1.msra.mxu0 0.0
    %1419 = vmatprep.subr.mxu0 0.0
    %1420 = vmatpush1.msra.mxu0 0.0
    %1421 = vmatprep.subr.mxu0 0.0
    %1422 = vmatpush1.msra.mxu0 0.0
    %1423 = vmatprep.subr.mxu0 0.0
    %1424 = vmatpush1.msra.mxu0 0.0
    %1425 = vmatprep.subr.mxu0 0.0
    %1426 = vmatpush1.msra.mxu0 0.0
    %1427 = vmatprep.mubr.f32.mxu0 0.0
    %1428 = vmatmul.mubr.f32.gmra.mrb[0].mxu0 %v1361
    %v1429 = vpop.f32.mrb[0].mxu0
    %v1430 = vadd.f32 0.0, %v1429
    %v1431 = vpop.f32.mrb[0].mxu0
    %1432 = vdwg.mxu0
    %1433 = vrot.lane.b32.xlu0 %v193, 112
    %v1434 = vpop.permute.xlu0 %1433
    %v1437 = vsel %vm206, %v900, 0
    %1439 = vmatprep.subr.mxu0 0.0
    %1440 = vmatpush1.msra.mxu0 %v1434
    %1441 = vmatprep.subr.mxu0 0.0
    %1442 = vmatpush1.msra.mxu0 0.0
    %1443 = vmatprep.subr.mxu0 0.0
    %1444 = vmatpush1.msra.mxu0 0.0
    %1445 = vmatprep.subr.mxu0 0.0
    %1446 = vmatpush1.msra.mxu0 0.0
    %1447 = vmatprep.subr.mxu0 0.0
    %1448 = vmatpush1.msra.mxu0 0.0
    %1449 = vmatprep.subr.mxu0 0.0
    %1450 = vmatpush1.msra.mxu0 0.0
    %1451 = vmatprep.subr.mxu0 0.0
    %1452 = vmatpush1.msra.mxu0 0.0
    %1453 = vmatprep.subr.mxu0 0.0
    %1454 = vmatpush1.msra.mxu0 0.0
    %1455 = vmatprep.subr.mxu0 0.0
    %1456 = vmatpush1.msra.mxu0 0.0
    %1457 = vmatprep.subr.mxu0 0.0
    %1458 = vmatpush1.msra.mxu0 0.0
    %1459 = vmatprep.subr.mxu0 0.0
    %1460 = vmatpush1.msra.mxu0 0.0
    %1461 = vmatprep.subr.mxu0 0.0
    %1462 = vmatpush1.msra.mxu0 0.0
    %1463 = vmatprep.subr.mxu0 0.0
    %1464 = vmatpush1.msra.mxu0 0.0
    %1465 = vmatprep.subr.mxu0 0.0
    %1466 = vmatpush1.msra.mxu0 0.0
    %1467 = vmatprep.subr.mxu0 0.0
    %1468 = vmatpush1.msra.mxu0 0.0
    %1469 = vmatprep.subr.mxu0 0.0
    %1470 = vmatpush1.msra.mxu0 0.0
    %1471 = vmatprep.subr.mxu0 0.0
    %1472 = vmatpush1.msra.mxu0 0.0
    %1473 = vmatprep.subr.mxu0 0.0
    %1474 = vmatpush1.msra.mxu0 0.0
    %1475 = vmatprep.subr.mxu0 0.0
    %1476 = vmatpush1.msra.mxu0 0.0
    %1477 = vmatprep.subr.mxu0 0.0
    %1478 = vmatpush1.msra.mxu0 0.0
    %1479 = vmatprep.subr.mxu0 0.0
    %1480 = vmatpush1.msra.mxu0 0.0
    %1481 = vmatprep.subr.mxu0 0.0
    %1482 = vmatpush1.msra.mxu0 0.0
    %1483 = vmatprep.subr.mxu0 0.0
    %1484 = vmatpush1.msra.mxu0 0.0
    %1485 = vmatprep.subr.mxu0 0.0
    %1486 = vmatpush1.msra.mxu0 0.0
    %1487 = vmatprep.subr.mxu0 0.0
    %1488 = vmatpush1.msra.mxu0 0.0
    %1489 = vmatprep.subr.mxu0 0.0
    %1490 = vmatpush1.msra.mxu0 0.0
    %1491 = vmatprep.subr.mxu0 0.0
    %1492 = vmatpush1.msra.mxu0 0.0
    %1493 = vmatprep.subr.mxu0 0.0
    %1494 = vmatpush1.msra.mxu0 0.0
    %1495 = vmatprep.subr.mxu0 0.0
    %1496 = vmatpush1.msra.mxu0 0.0
    %1497 = vmatprep.subr.mxu0 0.0
    %1498 = vmatpush1.msra.mxu0 0.0
    %1499 = vmatprep.subr.mxu0 0.0
    %1500 = vmatpush1.msra.mxu0 0.0
    %1501 = vmatprep.subr.mxu0 0.0
    %1502 = vmatpush1.msra.mxu0 0.0
    %1503 = vmatprep.mubr.f32.mxu0 0.0
    %1504 = vmatmul.mubr.f32.gmra.mrb[0].mxu0 %v1437
    %v1505 = vpop.f32.mrb[0].mxu0
    %v1506 = vadd.f32 0.0, %v1505
    %v1507 = vpop.f32.mrb[0].mxu0
    %1508 = vdwg.mxu0
    %1511 = vrot.lane.b32.xlu0 %v1126, 8
    %v1512 = vpop.permute.xlu0 %1511
    %1513 = vrot.lane.b32.xlu0 %v1202, 8
    %v1514 = vpop.permute.xlu0 %1513
    %1519 = vrot.lane.b32.xlu0 %v1278, 16
    %v1520 = vpop.permute.xlu0 %1519
    %1521 = vrot.lane.b32.xlu0 %v1354, 16
    %v1522 = vpop.permute.xlu0 %1521
    %1527 = vrot.lane.b32.xlu0 %v1430, 24
    %v1528 = vpop.permute.xlu0 %1527
    %1529 = vrot.lane.b32.xlu0 %v1506, 24
    %v1530 = vpop.permute.xlu0 %1529
    %v1533 = vsel %vm206, %v974, %v1512
    %v1534 = vsel %vm206, %v1050, %v1514
    %vm1535 = vcmask 130048
    %v1536 = vsel %vm1535, %v1533, %v1520
    %v1537 = vsel %vm1535, %v1534, %v1522
    %vm1538 = vcmask 195584
    %v1539 = vsel %vm1538, %v1536, %v1528
    %v1540 = vsel %vm1538, %v1537, %v1530
    %1545 = vrot.lane.b32.xlu0 %v43, 32
    %v1546 = vpop.permute.xlu0 %1545
    %1547 = vrot.lane.b32.xlu0 %v44, 32
    %v1548 = vpop.permute.xlu0 %1547
    %1549 = vrot.lane.b32.xlu0 %v45, 32
    %v1550 = vpop.permute.xlu0 %1549
    %1551 = vrot.lane.b32.xlu0 %v46, 32
    %v1552 = vpop.permute.xlu0 %1551
    %v1558 = vsel %vm67, %v1539, 0
    %v1561 = vsel %vm67, %v1540, 0
    %1563 = vmatprep.subr.mxu0 0.0
    %1564 = vmatpush1.msra.mxu0 %v1546
    %1565 = vmatprep.subr.mxu0 0.0
    %1566 = vmatpush1.msra.mxu0 %v1548
    %1567 = vmatprep.subr.mxu0 0.0
    %1568 = vmatpush1.msra.mxu0 %v1550
    %1569 = vmatprep.subr.mxu0 0.0
    %1570 = vmatpush1.msra.mxu0 %v1552
    %1571 = vmatprep.subr.mxu0 0.0
    %1572 = vmatpush1.msra.mxu0 0.0
    %1573 = vmatprep.subr.mxu0 0.0
    %1574 = vmatpush1.msra.mxu0 0.0
    %1575 = vmatprep.subr.mxu0 0.0
    %1576 = vmatpush1.msra.mxu0 0.0
    %1577 = vmatprep.subr.mxu0 0.0
    %1578 = vmatpush1.msra.mxu0 0.0
    %1579 = vmatprep.subr.mxu0 0.0
    %1580 = vmatpush1.msra.mxu0 0.0
    %1581 = vmatprep.subr.mxu0 0.0
    %1582 = vmatpush1.msra.mxu0 0.0
    %1583 = vmatprep.subr.mxu0 0.0
    %1584 = vmatpush1.msra.mxu0 0.0
    %1585 = vmatprep.subr.mxu0 0.0
    %1586 = vmatpush1.msra.mxu0 0.0
    %1587 = vmatprep.subr.mxu0 0.0
    %1588 = vmatpush1.msra.mxu0 0.0
    %1589 = vmatprep.subr.mxu0 0.0
    %1590 = vmatpush1.msra.mxu0 0.0
    %1591 = vmatprep.subr.mxu0 0.0
    %1592 = vmatpush1.msra.mxu0 0.0
    %1593 = vmatprep.subr.mxu0 0.0
    %1594 = vmatpush1.msra.mxu0 0.0
    %1595 = vmatprep.subr.mxu0 0.0
    %1596 = vmatpush1.msra.mxu0 0.0
    %1597 = vmatprep.subr.mxu0 0.0
    %1598 = vmatpush1.msra.mxu0 0.0
    %1599 = vmatprep.subr.mxu0 0.0
    %1600 = vmatpush1.msra.mxu0 0.0
    %1601 = vmatprep.subr.mxu0 0.0
    %1602 = vmatpush1.msra.mxu0 0.0
    %1603 = vmatprep.subr.mxu0 0.0
    %1604 = vmatpush1.msra.mxu0 0.0
    %1605 = vmatprep.subr.mxu0 0.0
    %1606 = vmatpush1.msra.mxu0 0.0
    %1607 = vmatprep.subr.mxu0 0.0
    %1608 = vmatpush1.msra.mxu0 0.0
    %1609 = vmatprep.subr.mxu0 0.0
    %1610 = vmatpush1.msra.mxu0 0.0
    %1611 = vmatprep.subr.mxu0 0.0
    %1612 = vmatpush1.msra.mxu0 0.0
    %1613 = vmatprep.subr.mxu0 0.0
    %1614 = vmatpush1.msra.mxu0 0.0
    %1615 = vmatprep.subr.mxu0 0.0
    %1616 = vmatpush1.msra.mxu0 0.0
    %1617 = vmatprep.subr.mxu0 0.0
    %1618 = vmatpush1.msra.mxu0 0.0
    %1619 = vmatprep.subr.mxu0 0.0
    %1620 = vmatpush1.msra.mxu0 0.0
    %1621 = vmatprep.subr.mxu0 0.0
    %1622 = vmatpush1.msra.mxu0 0.0
    %1623 = vmatprep.subr.mxu0 0.0
    %1624 = vmatpush1.msra.mxu0 0.0
    %1625 = vmatprep.subr.mxu0 0.0
    %1626 = vmatpush1.msra.mxu0 0.0
    %1627 = vmatprep.mubr.f32.mxu0 0.0
    %1628 = vmatmul.mubr.f32.gmra.mrb[0].mxu0 %v1558
    %v1629 = vpop.f32.mrb[0].mxu0
    %v1630 = vadd.f32 %v62, %v1629
    %v1631 = vpop.f32.mrb[0].mxu0
    %1632 = vmatprep.mubr.f32.mxu0 0.0
    %1633 = vmatmul.mubr.f32.gmra.mrb[0].mxu0 %v1561
    %v1634 = vpop.f32.mrb[0].mxu0
    %v1635 = vadd.f32 %v62, %v1634
    %v1636 = vpop.f32.mrb[0].mxu0
    %1637 = vdwg.mxu0
    %v1638 = vadd.f32 %v15, %v1630
    %v1639 = vadd.f32 %v16, %v1635
    %v1640 = vsel %vm67, %v1638, 0.0
    %1641 = vadd.xlane.f32.xlu0 %v1640
    %v1642 = vpop.xlane.xlu0 %1641
    %v1643 = vsel %vm67, %v1639, 0.0
    %1644 = vadd.xlane.f32.xlu0 %v1643
    %v1645 = vpop.xlane.xlu0 %1644
    %v1646 = vmul.f32 %v1642, %v74
    %v1647 = vmul.f32 %v1645, %v74
    %v1648 = vsub.f32 %v1638, %v1646
    %v1649 = vsub.f32 %v1639, %v1647
    %v1650 = vmul.f32 %v1648, %v1648
    %v1651 = vmul.f32 %v1649, %v1649
    %v1652 = vsel %vm67, %v1650, 0.0
    %1653 = vadd.xlane.f32.xlu0 %v1652
    %v1654 = vpop.xlane.xlu0 %1653
    %v1655 = vsel %vm67, %v1651, 0.0
    %1656 = vadd.xlane.f32.xlu0 %v1655
    %v1657 = vpop.xlane.xlu0 %1656
    %v1658 = vmul.f32 %v1654, %v74
    %v1659 = vmul.f32 %v1657, %v74
    %v1660 = vadd.f32 %v1658, 1e-05
    %v1661 = vadd.f32 %v1659, 1e-05
    %v1662 = vrsqrt.pop %v1660
    %v1663 = vrsqrt.pop %v1661
    %v1664 = vmul.f32 %v1648, %v1662
    %v1665 = vmul.f32 %v1649, %v1663
    %v1666 = vmul.f32 %v1664, %v63
    %v1667 = vmul.f32 %v1665, %v63
    %v1668 = vadd.f32 %v1666, %v64
    %v1669 = vadd.f32 %v1667, %v64
    %v1671 = vsel %vm67, %v1668, 0
    %v1674 = vsel %vm67, %v1669, 0
    %1676 = vmatprep.subr.mxu0 0.0
    %1677 = vmatpush1.msra.mxu0 %v47
    %1678 = vmatprep.subr.mxu0 0.0
    %1679 = vmatpush1.msra.mxu0 %v48
    %1680 = vmatprep.subr.mxu0 0.0
    %1681 = vmatpush1.msra.mxu0 %v49
    %1682 = vmatprep.subr.mxu0 0.0
    %1683 = vmatpush1.msra.mxu0 %v50
    %1684 = vmatprep.subr.mxu0 0.0
    %1685 = vmatpush1.msra.mxu0 0.0
    %1686 = vmatprep.subr.mxu0 0.0
    %1687 = vmatpush1.msra.mxu0 0.0
    %1688 = vmatprep.subr.mxu0 0.0
    %1689 = vmatpush1.msra.mxu0 0.0
    %1690 = vmatprep.subr.mxu0 0.0
    %1691 = vmatpush1.msra.mxu0 0.0
    %1692 = vmatprep.subr.mxu0 0.0
    %1693 = vmatpush1.msra.mxu0 0.0
    %1694 = vmatprep.subr.mxu0 0.0
    %1695 = vmatpush1.msra.mxu0 0.0
    %1696 = vmatprep.subr.mxu0 0.0
    %1697 = vmatpush1.msra.mxu0 0.0
    %1698 = vmatprep.subr.mxu0 0.0
    %1699 = vmatpush1.msra.mxu0 0.0
    %1700 = vmatprep.subr.mxu0 0.0
    %1701 = vmatpush1.msra.mxu0 0.0
    %1702 = vmatprep.subr.mxu0 0.0
    %1703 = vmatpush1.msra.mxu0 0.0
    %1704 = vmatprep.subr.mxu0 0.0
    %1705 = vmatpush1.msra.mxu0 0.0
    %1706 = vmatprep.subr.mxu0 0.0
    %1707 = vmatpush1.msra.mxu0 0.0
    %1708 = vmatprep.subr.mxu0 0.0
    %1709 = vmatpush1.msra.mxu0 0.0
    %1710 = vmatprep.subr.mxu0 0.0
    %1711 = vmatpush1.msra.mxu0 0.0
    %1712 = vmatprep.subr.mxu0 0.0
    %1713 = vmatpush1.msra.mxu0 0.0
    %1714 = vmatprep.subr.mxu0 0.0
    %1715 = vmatpush1.msra.mxu0 0.0
    %1716 = vmatprep.subr.mxu0 0.0
    %1717 = vmatpush1.msra.mxu0 0.0
    %1718 = vmatprep.subr.mxu0 0.0
    %1719 = vmatpush1.msra.mxu0 0.0
    %1720 = vmatprep.subr.mxu0 0.0
    %1721 = vmatpush1.msra.mxu0 0.0
    %1722 = vmatprep.subr.mxu0 0.0
    %1723 = vmatpush1.msra.mxu0 0.0
    %1724 = vmatprep.subr.mxu0 0.0
    %1725 = vmatpush1.msra.mxu0 0.0
    %1726 = vmatprep.subr.mxu0 0.0
    %1727 = vmatpush1.msra.mxu0 0.0
    %1728 = vmatprep.subr.mxu0 0.0
    %1729 = vmatpush1.msra.mxu0 0.0
    %1730 = vmatprep.subr.mxu0 0.0
    %1731 = vmatpush1.msra.mxu0 0.0
    %1732 = vmatprep.subr.mxu0 0.0
    %1733 = vmatpush1.msra.mxu0 0.0
    %1734 = vmatprep.subr.mxu0 0.0
    %1735 = vmatpush1.msra.mxu0 0.0
    %1736 = vmatprep.subr.mxu0 0.0
    %1737 = vmatpush1.msra.mxu0 0.0
    %1738 = vmatprep.subr.mxu0 0.0
    %1739 = vmatpush1.msra.mxu0 0.0
    %1740 = vmatprep.mubr.f32.mxu0 0.0
    %1741 = vmatmul.mubr.f32.gmra.mrb[0].mxu0 %v1671
    %v1742 = vpop.f32.mrb[0].mxu0
    %v1743 = vadd.f32 %v65, %v1742
    %v1744 = vpop.f32.mrb[0].mxu0
    %1745 = vmatprep.mubr.f32.mxu0 0.0
    %1746 = vmatmul.mubr.f32.gmra.mrb[0].mxu0 %v1674
    %v1747 = vpop.f32.mrb[0].mxu0
    %v1748 = vadd.f32 %v65, %v1747
    %v1749 = vpop.f32.mrb[0].mxu0
    %1750 = vdwg.mxu0
    %v1751 = vmax.f32 %v1743, 0.0
    %v1752 = vmax.f32 %v1748, 0.0
    %vm1753 = vcmask 523264
    %v1755 = vsel %vm1753, %v1751, 0
    %v1758 = vsel %vm1753, %v1752, 0
    %1760 = vmatprep.subr.mxu0 0.0
    %1761 = vmatpush1.msra.mxu0 %v51
    %1762 = vmatprep.subr.mxu0 0.0
    %1763 = vmatpush1.msra.mxu0 %v52
    %1764 = vmatprep.subr.mxu0 0.0
    %1765 = vmatpush1.msra.mxu0 %v53
    %1766 = vmatprep.subr.mxu0 0.0
    %1767 = vmatpush1.msra.mxu0 %v54
    %1768 = vmatprep.subr.mxu0 0.0
    %1769 = vmatpush1.msra.mxu0 %v55
    %1770 = vmatprep.subr.mxu0 0.0
    %1771 = vmatpush1.msra.mxu0 %v56
    %1772 = vmatprep.subr.mxu0 0.0
    %1773 = vmatpush1.msra.mxu0 %v57
    %1774 = vmatprep.subr.mxu0 0.0
    %1775 = vmatpush1.msra.mxu0 %v58
    %1776 = vmatprep.subr.mxu0 0.0
    %1777 = vmatpush1.msra.mxu0 0.0
    %1778 = vmatprep.subr.mxu0 0.0
    %1779 = vmatpush1.msra.mxu0 0.0
    %1780 = vmatprep.subr.mxu0 0.0
    %1781 = vmatpush1.msra.mxu0 0.0
    %1782 = vmatprep.subr.mxu0 0.0
    %1783 = vmatpush1.msra.mxu0 0.0
    %1784 = vmatprep.subr.mxu0 0.0
    %1785 = vmatpush1.msra.mxu0 0.0
    %1786 = vmatprep.subr.mxu0 0.0
    %1787 = vmatpush1.msra.mxu0 0.0
    %1788 = vmatprep.subr.mxu0 0.0
    %1789 = vmatpush1.msra.mxu0 0.0
    %1790 = vmatprep.subr.mxu0 0.0
    %1791 = vmatpush1.msra.mxu0 0.0
    %1792 = vmatprep.subr.mxu0 0.0
    %1793 = vmatpush1.msra.mxu0 0.0
    %1794 = vmatprep.subr.mxu0 0.0
    %1795 = vmatpush1.msra.mxu0 0.0
    %1796 = vmatprep.subr.mxu0 0.0
    %1797 = vmatpush1.msra.mxu0 0.0
    %1798 = vmatprep.subr.mxu0 0.0
    %1799 = vmatpush1.msra.mxu0 0.0
    %1800 = vmatprep.subr.mxu0 0.0
    %1801 = vmatpush1.msra.mxu0 0.0
    %1802 = vmatprep.subr.mxu0 0.0
    %1803 = vmatpush1.msra.mxu0 0.0
    %1804 = vmatprep.subr.mxu0 0.0
    %1805 = vmatpush1.msra.mxu0 0.0
    %1806 = vmatprep.subr.mxu0 0.0
    %1807 = vmatpush1.msra.mxu0 0.0
    %1808 = vmatprep.subr.mxu0 0.0
    %1809 = vmatpush1.msra.mxu0 0.0
    %1810 = vmatprep.subr.mxu0 0.0
    %1811 = vmatpush1.msra.mxu0 0.0
    %1812 = vmatprep.subr.mxu0 0.0
    %1813 = vmatpush1.msra.mxu0 0.0
    %1814 = vmatprep.subr.mxu0 0.0
    %1815 = vmatpush1.msra.mxu0 0.0
    %1816 = vmatprep.subr.mxu0 0.0
    %1817 = vmatpush1.msra.mxu0 0.0
    %1818 = vmatprep.subr.mxu0 0.0
    %1819 = vmatpush1.msra.mxu0 0.0
    %1820 = vmatprep.subr.mxu0 0.0
    %1821 = vmatpush1.msra.mxu0 0.0
    %1822 = vmatprep.subr.mxu0 0.0
    %1823 = vmatpush1.msra.mxu0 0.0
    %1824 = vmatprep.mubr.f32.mxu0 0.0
    %1825 = vmatmul.mubr.f32.gmra.mrb[0].mxu0 %v1755
    %v1826 = vpop.f32.mrb[0].mxu0
    %v1827 = vadd.f32 %v66, %v1826
    %v1828 = vpop.f32.mrb[0].mxu0
    %1829 = vmatprep.mubr.f32.mxu0 0.0
    %1830 = vmatmul.mubr.f32.gmra.mrb[0].mxu0 %v1758
    %v1831 = vpop.f32.mrb[0].mxu0
    %v1832 = vadd.f32 %v66, %v1831
    %v1833 = vpop.f32.mrb[0].mxu0
    %1834 = vdwg.mxu0
    %v1835 = vadd.f32 %v1638, %v1827
    %v1836 = vadd.f32 %v1639, %v1832
    %v1837 = vld [vmem:[%s2 + $0x40] sm:$0xff]
    %v1838 = vld [vmem:[%s2 + $0x50] sm:$0xff]
    %v1839 = vld [vmem:[%s2 + $0x60] sm:$0xff]
    %v1840 = vld [vmem:[%s2 + $0x70] sm:$0xff]
    %v1841 = vld [vmem:[%s2 + $0x48] sm:$0xff]
    %v1842 = vld [vmem:[%s2 + $0x58] sm:$0xff]
    %v1843 = vld [vmem:[%s2 + $0x68] sm:$0xff]
    %v1844 = vld [vmem:[%s2 + $0x78] sm:$0xff]
    %v1845 = vld [vmem:[%s2 + $0x100] sm:$0xff]
    %v1846 = vld [vmem:[%s2 + $0x110] sm:$0xff]
    %v1847 = vld [vmem:[%s2 + $0x120] sm:$0xff]
    %v1848 = vld [vmem:[%s2 + $0x130] sm:$0xff]
    %v1849 = vld [vmem:[%s2 + $0x140] sm:$0xff]
    %v1850 = vld [vmem:[%s2 + $0x150] sm:$0xff]
    %v1851 = vld [vmem:[%s2 + $0x160] sm:$0xff]
    %v1852 = vld [vmem:[%s2 + $0x170] sm:$0xff]
    %v1853 = vld [vmem:[%s2 + $0x190] ss:$0 sm:$0xff]
    %v1854 = vld [vmem:[%s2 + $0x191] ss:$0 sm:$0xff]
    %v1855 = vld [vmem:[%s2 + $0x192] ss:$0 sm:$0xff]
    %v1856 = vld [vmem:[%s2 + $0x193] ss:$0 sm:$0xff]
    %v1857 = vld [vmem:[%s2 + $0x194] ss:$0 sm:$0xff]
    %v1858 = vld [vmem:[%s2 + $0x195] ss:$0 sm:$0xff]
    %v1859 = vld [vmem:[%s2 + $0x196] ss:$0 sm:$0xff]
    %v1860 = vld [vmem:[%s2 + $0x197] ss:$0 sm:$0xff]
    %v1861 = vsel %vm67, %v1835, 0.0
    %1862 = vadd.xlane.f32.xlu0 %v1861
    %v1863 = vpop.xlane.xlu0 %1862
    %v1864 = vsel %vm67, %v1836, 0.0
    %1865 = vadd.xlane.f32.xlu0 %v1864
    %v1866 = vpop.xlane.xlu0 %1865
    %v1867 = vmul.f32 %v1863, %v74
    %v1868 = vmul.f32 %v1866, %v74
    %v1869 = vsub.f32 %v1835, %v1867
    %v1870 = vsub.f32 %v1836, %v1868
    %v1871 = vmul.f32 %v1869, %v1869
    %v1872 = vmul.f32 %v1870, %v1870
    %v1873 = vsel %vm67, %v1871, 0.0
    %1874 = vadd.xlane.f32.xlu0 %v1873
    %v1875 = vpop.xlane.xlu0 %1874
    %v1876 = vsel %vm67, %v1872, 0.0
    %1877 = vadd.xlane.f32.xlu0 %v1876
    %v1878 = vpop.xlane.xlu0 %1877
    %v1879 = vmul.f32 %v1875, %v74
    %v1880 = vmul.f32 %v1878, %v74
    %v1881 = vadd.f32 %v1879, 1e-05
    %v1882 = vadd.f32 %v1880, 1e-05
    %v1883 = vrsqrt.pop %v1881
    %v1884 = vrsqrt.pop %v1882
    %v1885 = vmul.f32 %v1869, %v1883
    %v1886 = vmul.f32 %v1870, %v1884
    %v1887 = vmul.f32 %v1885, %v1853
    %v1888 = vmul.f32 %v1886, %v1853
    %v1889 = vadd.f32 %v1887, %v1854
    %v1890 = vadd.f32 %v1888, %v1854
    %v1892 = vsel %vm67, %v1889, 0
    %v1895 = vsel %vm67, %v1890, 0
    %1897 = vmatprep.subr.mxu0 0.0
    %1898 = vmatpush1.msra.mxu0 %v1837
    %1899 = vmatprep.subr.mxu0 0.0
    %1900 = vmatpush1.msra.mxu0 %v1838
    %1901 = vmatprep.subr.mxu0 0.0
    %1902 = vmatpush1.msra.mxu0 %v1839
    %1903 = vmatprep.subr.mxu0 0.0
    %1904 = vmatpush1.msra.mxu0 %v1840
    %1905 = vmatprep.subr.mxu0 0.0
    %1906 = vmatpush1.msra.mxu0 0.0
    %1907 = vmatprep.subr.mxu0 0.0
    %1908 = vmatpush1.msra.mxu0 0.0
    %1909 = vmatprep.subr.mxu0 0.0
    %1910 = vmatpush1.msra.mxu0 0.0
    %1911 = vmatprep.subr.mxu0 0.0
    %1912 = vmatpush1.msra.mxu0 0.0
    %1913 = vmatprep.subr.mxu0 0.0
    %1914 = vmatpush1.msra.mxu0 0.0
    %1915 = vmatprep.subr.mxu0 0.0
    %1916 = vmatpush1.msra.mxu0 0.0
    %1917 = vmatprep.subr.mxu0 0.0
    %1918 = vmatpush1.msra.mxu0 0.0
    %1919 = vmatprep.subr.mxu0 0.0
    %1920 = vmatpush1.msra.mxu0 0.0
    %1921 = vmatprep.subr.mxu0 0.0
    %1922 = vmatpush1.msra.mxu0 0.0
    %1923 = vmatprep.subr.mxu0 0.0
    %1924 = vmatpush1.msra.mxu0 0.0
    %1925 = vmatprep.subr.mxu0 0.0
    %1926 = vmatpush1.msra.mxu0 0.0
    %1927 = vmatprep.subr.mxu0 0.0
    %1928 = vmatpush1.msra.mxu0 0.0
    %1929 = vmatprep.subr.mxu0 0.0
    %1930 = vmatpush1.msra.mxu0 0.0
    %1931 = vmatprep.subr.mxu0 0.0
    %1932 = vmatpush1.msra.mxu0 0.0
    %1933 = vmatprep.subr.mxu0 0.0
    %1934 = vmatpush1.msra.mxu0 0.0
    %1935 = vmatprep.subr.mxu0 0.0
    %1936 = vmatpush1.msra.mxu0 0.0
    %1937 = vmatprep.subr.mxu0 0.0
    %1938 = vmatpush1.msra.mxu0 0.0
    %1939 = vmatprep.subr.mxu0 0.0
    %1940 = vmatpush1.msra.mxu0 0.0
    %1941 = vmatprep.subr.mxu0 0.0
    %1942 = vmatpush1.msra.mxu0 0.0
    %1943 = vmatprep.subr.mxu0 0.0
    %1944 = vmatpush1.msra.mxu0 0.0
    %1945 = vmatprep.subr.mxu0 0.0
    %1946 = vmatpush1.msra.mxu0 0.0
    %1947 = vmatprep.subr.mxu0 0.0
    %1948 = vmatpush1.msra.mxu0 0.0
    %1949 = vmatprep.subr.mxu0 0.0
    %1950 = vmatpush1.msra.mxu0 0.0
    %1951 = vmatprep.subr.mxu0 0.0
    %1952 = vmatpush1.msra.mxu0 0.0
    %1953 = vmatprep.subr.mxu0 0.0
    %1954 = vmatpush1.msra.mxu0 0.0
    %1955 = vmatprep.subr.mxu0 0.0
    %1956 = vmatpush1.msra.mxu0 0.0
    %1957 = vmatprep.subr.mxu0 0.0
    %1958 = vmatpush1.msra.mxu0 0.0
    %1959 = vmatprep.subr.mxu0 0.0
    %1960 = vmatpush1.msra.mxu0 0.0
    %1961 = vmatprep.mubr.f32.mxu0 0.0
    %1962 = vmatmul.mubr.f32.gmra.mrb[0].mxu0 %v1892
    %v1963 = vpop.f32.mrb[0].mxu0
    %v1964 = vadd.f32 %v1855, %v1963
    %v1965 = vpop.f32.mrb[0].mxu0
    %1966 = vmatprep.mubr.f32.mxu0 0.0
    %1967 = vmatmul.mubr.f32.gmra.mrb[0].mxu0 %v1895
    %v1968 = vpop.f32.mrb[0].mxu0
    %v1969 = vadd.f32 %v1855, %v1968
    %v1970 = vpop.f32.mrb[0].mxu0
    %1971 = vdwg.mxu0
    %1974 = vrot.lane.b32.xlu0 %v1964, 104
    %v1975 = vpop.permute.xlu0 %1974
    %1976 = vrot.lane.b32.xlu0 %v1969, 104
    %v1977 = vpop.permute.xlu0 %1976
    %1978 = vrot.lane.b32.xlu0 %v1964, 80
    %v1979 = vpop.permute.xlu0 %1978
    %1980 = vrot.lane.b32.xlu0 %v1969, 80
    %v1981 = vpop.permute.xlu0 %1980
    %1982 = vrot.lane.b32.xlu0 %v1964, 56
    %v1983 = vpop.permute.xlu0 %1982
    %1984 = vrot.lane.b32.xlu0 %v1969, 56
    %v1985 = vpop.permute.xlu0 %1984
    %1986 = vrot.lane.b32.xlu0 %v1964, 120
    %v1987 = vpop.permute.xlu0 %1986
    %v1988 = vsel %vm206, %v1964, 0
    %v1990 = vsel %vm206, %v1987, 0
    %1992 = vmatprep.subr.mxu0 0.0
    %1993 = vmatpush1.xpose.msra.mxu0 %v1990
    %1994 = vmatprep.subr.mxu0 0.0
    %1995 = vmatpush1.xpose.msra.mxu0 0.0
    %1996 = vmatprep.subr.mxu0 0.0
    %1997 = vmatpush1.xpose.msra.mxu0 0.0
    %1998 = vmatprep.subr.mxu0 0.0
    %1999 = vmatpush1.xpose.msra.mxu0 0.0
    %2000 = vmatprep.subr.mxu0 0.0
    %2001 = vmatpush1.xpose.msra.mxu0 0.0
    %2002 = vmatprep.subr.mxu0 0.0
    %2003 = vmatpush1.xpose.msra.mxu0 0.0
    %2004 = vmatprep.subr.mxu0 0.0
    %2005 = vmatpush1.xpose.msra.mxu0 0.0
    %2006 = vmatprep.subr.mxu0 0.0
    %2007 = vmatpush1.xpose.msra.mxu0 0.0
    %2008 = vmatprep.subr.mxu0 0.0
    %2009 = vmatpush1.xpose.msra.mxu0 0.0
    %2010 = vmatprep.subr.mxu0 0.0
    %2011 = vmatpush1.xpose.msra.mxu0 0.0
    %2012 = vmatprep.subr.mxu0 0.0
    %2013 = vmatpush1.xpose.msra.mxu0 0.0
    %2014 = vmatprep.subr.mxu0 0.0
    %2015 = vmatpush1.xpose.msra.mxu0 0.0
    %2016 = vmatprep.subr.mxu0 0.0
    %2017 = vmatpush1.xpose.msra.mxu0 0.0
    %2018 = vmatprep.subr.mxu0 0.0
    %2019 = vmatpush1.xpose.msra.mxu0 0.0
    %2020 = vmatprep.subr.mxu0 0.0
    %2021 = vmatpush1.xpose.msra.mxu0 0.0
    %2022 = vmatprep.subr.mxu0 0.0
    %2023 = vmatpush1.xpose.msra.mxu0 0.0
    %2024 = vmatprep.subr.mxu0 0.0
    %2025 = vmatpush1.xpose.msra.mxu0 0.0
    %2026 = vmatprep.subr.mxu0 0.0
    %2027 = vmatpush1.xpose.msra.mxu0 0.0
    %2028 = vmatprep.subr.mxu0 0.0
    %2029 = vmatpush1.xpose.msra.mxu0 0.0
    %2030 = vmatprep.subr.mxu0 0.0
    %2031 = vmatpush1.xpose.msra.mxu0 0.0
    %2032 = vmatprep.subr.mxu0 0.0
    %2033 = vmatpush1.xpose.msra.mxu0 0.0
    %2034 = vmatprep.subr.mxu0 0.0
    %2035 = vmatpush1.xpose.msra.mxu0 0.0
    %2036 = vmatprep.subr.mxu0 0.0
    %2037 = vmatpush1.xpose.msra.mxu0 0.0
    %2038 = vmatprep.subr.mxu0 0.0
    %2039 = vmatpush1.xpose.msra.mxu0 0.0
    %2040 = vmatprep.subr.mxu0 0.0
    %2041 = vmatpush1.xpose.msra.mxu0 0.0
    %2042 = vmatprep.subr.mxu0 0.0
    %2043 = vmatpush1.xpose.msra.mxu0 0.0
    %2044 = vmatprep.subr.mxu0 0.0
    %2045 = vmatpush1.xpose.msra.mxu0 0.0
    %2046 = vmatprep.subr.mxu0 0.0
    %2047 = vmatpush1.xpose.msra.mxu0 0.0
    %2048 = vmatprep.subr.mxu0 0.0
    %2049 = vmatpush1.xpose.msra.mxu0 0.0
    %2050 = vmatprep.subr.mxu0 0.0
    %2051 = vmatpush1.xpose.msra.mxu0 0.0
    %2052 = vmatprep.subr.mxu0 0.0
    %2053 = vmatpush1.xpose.msra.mxu0 0.0
    %2054 = vmatprep.subr.mxu0 0.0
    %2055 = vmatpush1.xpose.msra.mxu0 0.0
    %2056 = vmatprep.mubr.f32.mxu0 0.0
    %2057 = vmatmul.mubr.f32.gmra.mrb[0].mxu0 %v1988
    %v2058 = vpop.f32.mrb[0].mxu0
    %v2059 = vadd.f32 %v197, %v2058
    %v2060 = vpop.f32.mrb[0].mxu0
    %2061 = vdwg.mxu0
    %2062 = vrot.lane.b32.xlu0 %v1969, 120
    %v2063 = vpop.permute.xlu0 %2062
    %v2064 = vsel %vm206, %v1969, 0
    %v2066 = vsel %vm206, %v2063, 0
    %2068 = vmatprep.subr.mxu0 0.0
    %2069 = vmatpush1.xpose.msra.mxu0 %v2066
    %2070 = vmatprep.subr.mxu0 0.0
    %2071 = vmatpush1.xpose.msra.mxu0 0.0
    %2072 = vmatprep.subr.mxu0 0.0
    %2073 = vmatpush1.xpose.msra.mxu0 0.0
    %2074 = vmatprep.subr.mxu0 0.0
    %2075 = vmatpush1.xpose.msra.mxu0 0.0
    %2076 = vmatprep.subr.mxu0 0.0
    %2077 = vmatpush1.xpose.msra.mxu0 0.0
    %2078 = vmatprep.subr.mxu0 0.0
    %2079 = vmatpush1.xpose.msra.mxu0 0.0
    %2080 = vmatprep.subr.mxu0 0.0
    %2081 = vmatpush1.xpose.msra.mxu0 0.0
    %2082 = vmatprep.subr.mxu0 0.0
    %2083 = vmatpush1.xpose.msra.mxu0 0.0
    %2084 = vmatprep.subr.mxu0 0.0
    %2085 = vmatpush1.xpose.msra.mxu0 0.0
    %2086 = vmatprep.subr.mxu0 0.0
    %2087 = vmatpush1.xpose.msra.mxu0 0.0
    %2088 = vmatprep.subr.mxu0 0.0
    %2089 = vmatpush1.xpose.msra.mxu0 0.0
    %2090 = vmatprep.subr.mxu0 0.0
    %2091 = vmatpush1.xpose.msra.mxu0 0.0
    %2092 = vmatprep.subr.mxu0 0.0
    %2093 = vmatpush1.xpose.msra.mxu0 0.0
    %2094 = vmatprep.subr.mxu0 0.0
    %2095 = vmatpush1.xpose.msra.mxu0 0.0
    %2096 = vmatprep.subr.mxu0 0.0
    %2097 = vmatpush1.xpose.msra.mxu0 0.0
    %2098 = vmatprep.subr.mxu0 0.0
    %2099 = vmatpush1.xpose.msra.mxu0 0.0
    %2100 = vmatprep.subr.mxu0 0.0
    %2101 = vmatpush1.xpose.msra.mxu0 0.0
    %2102 = vmatprep.subr.mxu0 0.0
    %2103 = vmatpush1.xpose.msra.mxu0 0.0
    %2104 = vmatprep.subr.mxu0 0.0
    %2105 = vmatpush1.xpose.msra.mxu0 0.0
    %2106 = vmatprep.subr.mxu0 0.0
    %2107 = vmatpush1.xpose.msra.mxu0 0.0
    %2108 = vmatprep.subr.mxu0 0.0
    %2109 = vmatpush1.xpose.msra.mxu0 0.0
    %2110 = vmatprep.subr.mxu0 0.0
    %2111 = vmatpush1.xpose.msra.mxu0 0.0
    %2112 = vmatprep.subr.mxu0 0.0
    %2113 = vmatpush1.xpose.msra.mxu0 0.0
    %2114 = vmatprep.subr.mxu0 0.0
    %2115 = vmatpush1.xpose.msra.mxu0 0.0
    %2116 = vmatprep.subr.mxu0 0.0
    %2117 = vmatpush1.xpose.msra.mxu0 0.0
    %2118 = vmatprep.subr.mxu0 0.0
    %2119 = vmatpush1.xpose.msra.mxu0 0.0
    %2120 = vmatprep.subr.mxu0 0.0
    %2121 = vmatpush1.xpose.msra.mxu0 0.0
    %2122 = vmatprep.subr.mxu0 0.0
    %2123 = vmatpush1.xpose.msra.mxu0 0.0
    %2124 = vmatprep.subr.mxu0 0.0
    %2125 = vmatpush1.xpose.msra.mxu0 0.0
    %2126 = vmatprep.subr.mxu0 0.0
    %2127 = vmatpush1.xpose.msra.mxu0 0.0
    %2128 = vmatprep.subr.mxu0 0.0
    %2129 = vmatpush1.xpose.msra.mxu0 0.0
    %2130 = vmatprep.subr.mxu0 0.0
    %2131 = vmatpush1.xpose.msra.mxu0 0.0
    %2132 = vmatprep.mubr.f32.mxu0 0.0
    %2133 = vmatmul.mubr.f32.gmra.mrb[0].mxu0 %v2064
    %v2134 = vpop.f32.mrb[0].mxu0
    %v2135 = vadd.f32 %v201, %v2134
    %v2136 = vpop.f32.mrb[0].mxu0
    %2137 = vdwg.mxu0
    %2138 = vrot.lane.b32.xlu0 %v1975, 120
    %v2139 = vpop.permute.xlu0 %2138
    %v2140 = vsel %vm206, %v1975, 0
    %v2142 = vsel %vm206, %v2139, 0
    %2144 = vmatprep.subr.mxu0 0.0
    %2145 = vmatpush1.xpose.msra.mxu0 %v2142
    %2146 = vmatprep.subr.mxu0 0.0
    %2147 = vmatpush1.xpose.msra.mxu0 0.0
    %2148 = vmatprep.subr.mxu0 0.0
    %2149 = vmatpush1.xpose.msra.mxu0 0.0
    %2150 = vmatprep.subr.mxu0 0.0
    %2151 = vmatpush1.xpose.msra.mxu0 0.0
    %2152 = vmatprep.subr.mxu0 0.0
    %2153 = vmatpush1.xpose.msra.mxu0 0.0
    %2154 = vmatprep.subr.mxu0 0.0
    %2155 = vmatpush1.xpose.msra.mxu0 0.0
    %2156 = vmatprep.subr.mxu0 0.0
    %2157 = vmatpush1.xpose.msra.mxu0 0.0
    %2158 = vmatprep.subr.mxu0 0.0
    %2159 = vmatpush1.xpose.msra.mxu0 0.0
    %2160 = vmatprep.subr.mxu0 0.0
    %2161 = vmatpush1.xpose.msra.mxu0 0.0
    %2162 = vmatprep.subr.mxu0 0.0
    %2163 = vmatpush1.xpose.msra.mxu0 0.0
    %2164 = vmatprep.subr.mxu0 0.0
    %2165 = vmatpush1.xpose.msra.mxu0 0.0
    %2166 = vmatprep.subr.mxu0 0.0
    %2167 = vmatpush1.xpose.msra.mxu0 0.0
    %2168 = vmatprep.subr.mxu0 0.0
    %2169 = vmatpush1.xpose.msra.mxu0 0.0
    %2170 = vmatprep.subr.mxu0 0.0
    %2171 = vmatpush1.xpose.msra.mxu0 0.0
    %2172 = vmatprep.subr.mxu0 0.0
    %2173 = vmatpush1.xpose.msra.mxu0 0.0
    %2174 = vmatprep.subr.mxu0 0.0
    %2175 = vmatpush1.xpose.msra.mxu0 0.0
    %2176 = vmatprep.subr.mxu0 0.0
    %2177 = vmatpush1.xpose.msra.mxu0 0.0
    %2178 = vmatprep.subr.mxu0 0.0
    %2179 = vmatpush1.xpose.msra.mxu0 0.0
    %2180 = vmatprep.subr.mxu0 0.0
    %2181 = vmatpush1.xpose.msra.mxu0 0.0
    %2182 = vmatprep.subr.mxu0 0.0
    %2183 = vmatpush1.xpose.msra.mxu0 0.0
    %2184 = vmatprep.subr.mxu0 0.0
    %2185 = vmatpush1.xpose.msra.mxu0 0.0
    %2186 = vmatprep.subr.mxu0 0.0
    %2187 = vmatpush1.xpose.msra.mxu0 0.0
    %2188 = vmatprep.subr.mxu0 0.0
    %2189 = vmatpush1.xpose.msra.mxu0 0.0
    %2190 = vmatprep.subr.mxu0 0.0
    %2191 = vmatpush1.xpose.msra.mxu0 0.0
    %2192 = vmatprep.subr.mxu0 0.0
    %2193 = vmatpush1.xpose.msra.mxu0 0.0
    %2194 = vmatprep.subr.mxu0 0.0
    %2195 = vmatpush1.xpose.msra.mxu0 0.0
    %2196 = vmatprep.subr.mxu0 0.0
    %2197 = vmatpush1.xpose.msra.mxu0 0.0
    %2198 = vmatprep.subr.mxu0 0.0
    %2199 = vmatpush1.xpose.msra.mxu0 0.0
    %2200 = vmatprep.subr.mxu0 0.0
    %2201 = vmatpush1.xpose.msra.mxu0 0.0
    %2202 = vmatprep.subr.mxu0 0.0
    %2203 = vmatpush1.xpose.msra.mxu0 0.0
    %2204 = vmatprep.subr.mxu0 0.0
    %2205 = vmatpush1.xpose.msra.mxu0 0.0
    %2206 = vmatprep.subr.mxu0 0.0
    %2207 = vmatpush1.xpose.msra.mxu0 0.0
    %2208 = vmatprep.mubr.f32.mxu0 0.0
    %2209 = vmatmul.mubr.f32.gmra.mrb[0].mxu0 %v2140
    %v2210 = vpop.f32.mrb[0].mxu0
    %v2211 = vadd.f32 %v197, %v2210
    %v2212 = vpop.f32.mrb[0].mxu0
    %2213 = vdwg.mxu0
    %2214 = vrot.lane.b32.xlu0 %v1977, 120
    %v2215 = vpop.permute.xlu0 %2214
    %v2216 = vsel %vm206, %v1977, 0
    %v2218 = vsel %vm206, %v2215, 0
    %2220 = vmatprep.subr.mxu0 0.0
    %2221 = vmatpush1.xpose.msra.mxu0 %v2218
    %2222 = vmatprep.subr.mxu0 0.0
    %2223 = vmatpush1.xpose.msra.mxu0 0.0
    %2224 = vmatprep.subr.mxu0 0.0
    %2225 = vmatpush1.xpose.msra.mxu0 0.0
    %2226 = vmatprep.subr.mxu0 0.0
    %2227 = vmatpush1.xpose.msra.mxu0 0.0
    %2228 = vmatprep.subr.mxu0 0.0
    %2229 = vmatpush1.xpose.msra.mxu0 0.0
    %2230 = vmatprep.subr.mxu0 0.0
    %2231 = vmatpush1.xpose.msra.mxu0 0.0
    %2232 = vmatprep.subr.mxu0 0.0
    %2233 = vmatpush1.xpose.msra.mxu0 0.0
    %2234 = vmatprep.subr.mxu0 0.0
    %2235 = vmatpush1.xpose.msra.mxu0 0.0
    %2236 = vmatprep.subr.mxu0 0.0
    %2237 = vmatpush1.xpose.msra.mxu0 0.0
    %2238 = vmatprep.subr.mxu0 0.0
    %2239 = vmatpush1.xpose.msra.mxu0 0.0
    %2240 = vmatprep.subr.mxu0 0.0
    %2241 = vmatpush1.xpose.msra.mxu0 0.0
    %2242 = vmatprep.subr.mxu0 0.0
    %2243 = vmatpush1.xpose.msra.mxu0 0.0
    %2244 = vmatprep.subr.mxu0 0.0
    %2245 = vmatpush1.xpose.msra.mxu0 0.0
    %2246 = vmatprep.subr.mxu0 0.0
    %2247 = vmatpush1.xpose.msra.mxu0 0.0
    %2248 = vmatprep.subr.mxu0 0.0
    %2249 = vmatpush1.xpose.msra.mxu0 0.0
    %2250 = vmatprep.subr.mxu0 0.0
    %2251 = vmatpush1.xpose.msra.mxu0 0.0
    %2252 = vmatprep.subr.mxu0 0.0
    %2253 = vmatpush1.xpose.msra.mxu0 0.0
    %2254 = vmatprep.subr.mxu0 0.0
    %2255 = vmatpush1.xpose.msra.mxu0 0.0
    %2256 = vmatprep.subr.mxu0 0.0
    %2257 = vmatpush1.xpose.msra.mxu0 0.0
    %2258 = vmatprep.subr.mxu0 0.0
    %2259 = vmatpush1.xpose.msra.mxu0 0.0
    %2260 = vmatprep.subr.mxu0 0.0
    %2261 = vmatpush1.xpose.msra.mxu0 0.0
    %2262 = vmatprep.subr.mxu0 0.0
    %2263 = vmatpush1.xpose.msra.mxu0 0.0
    %2264 = vmatprep.subr.mxu0 0.0
    %2265 = vmatpush1.xpose.msra.mxu0 0.0
    %2266 = vmatprep.subr.mxu0 0.0
    %2267 = vmatpush1.xpose.msra.mxu0 0.0
    %2268 = vmatprep.subr.mxu0 0.0
    %2269 = vmatpush1.xpose.msra.mxu0 0.0
    %2270 = vmatprep.subr.mxu0 0.0
    %2271 = vmatpush1.xpose.msra.mxu0 0.0
    %2272 = vmatprep.subr.mxu0 0.0
    %2273 = vmatpush1.xpose.msra.mxu0 0.0
    %2274 = vmatprep.subr.mxu0 0.0
    %2275 = vmatpush1.xpose.msra.mxu0 0.0
    %2276 = vmatprep.subr.mxu0 0.0
    %2277 = vmatpush1.xpose.msra.mxu0 0.0
    %2278 = vmatprep.subr.mxu0 0.0
    %2279 = vmatpush1.xpose.msra.mxu0 0.0
    %2280 = vmatprep.subr.mxu0 0.0
    %2281 = vmatpush1.xpose.msra.mxu0 0.0
    %2282 = vmatprep.subr.mxu0 0.0
    %2283 = vmatpush1.xpose.msra.mxu0 0.0
    %2284 = vmatprep.mubr.f32.mxu0 0.0
    %2285 = vmatmul.mubr.f32.gmra.mrb[0].mxu0 %v2216
    %v2286 = vpop.f32.mrb[0].mxu0
    %v2287 = vadd.f32 %v201, %v2286
    %v2288 = vpop.f32.mrb[0].mxu0
    %2289 = vdwg.mxu0
    %2290 = vrot.lane.b32.xlu0 %v1979, 120
    %v2291 = vpop.permute.xlu0 %2290
    %v2292 = vsel %vm206, %v1979, 0
    %v2294 = vsel %vm206, %v2291, 0
    %2296 = vmatprep.subr.mxu0 0.0
    %2297 = vmatpush1.xpose.msra.mxu0 %v2294
    %2298 = vmatprep.subr.mxu0 0.0
    %2299 = vmatpush1.xpose.msra.mxu0 0.0
    %2300 = vmatprep.subr.mxu0 0.0
    %2301 = vmatpush1.xpose.msra.mxu0 0.0
    %2302 = vmatprep.subr.mxu0 0.0
    %2303 = vmatpush1.xpose.msra.mxu0 0.0
    %2304 = vmatprep.subr.mxu0 0.0
    %2305 = vmatpush1.xpose.msra.mxu0 0.0
    %2306 = vmatprep.subr.mxu0 0.0
    %2307 = vmatpush1.xpose.msra.mxu0 0.0
    %2308 = vmatprep.subr.mxu0 0.0
    %2309 = vmatpush1.xpose.msra.mxu0 0.0
    %2310 = vmatprep.subr.mxu0 0.0
    %2311 = vmatpush1.xpose.msra.mxu0 0.0
    %2312 = vmatprep.subr.mxu0 0.0
    %2313 = vmatpush1.xpose.msra.mxu0 0.0
    %2314 = vmatprep.subr.mxu0 0.0
    %2315 = vmatpush1.xpose.msra.mxu0 0.0
    %2316 = vmatprep.subr.mxu0 0.0
    %2317 = vmatpush1.xpose.msra.mxu0 0.0
    %2318 = vmatprep.subr.mxu0 0.0
    %2319 = vmatpush1.xpose.msra.mxu0 0.0
    %2320 = vmatprep.subr.mxu0 0.0
    %2321 = vmatpush1.xpose.msra.mxu0 0.0
    %2322 = vmatprep.subr.mxu0 0.0
    %2323 = vmatpush1.xpose.msra.mxu0 0.0
    %2324 = vmatprep.subr.mxu0 0.0
    %2325 = vmatpush1.xpose.msra.mxu0 0.0
    %2326 = vmatprep.subr.mxu0 0.0
    %2327 = vmatpush1.xpose.msra.mxu0 0.0
    %2328 = vmatprep.subr.mxu0 0.0
    %2329 = vmatpush1.xpose.msra.mxu0 0.0
    %2330 = vmatprep.subr.mxu0 0.0
    %2331 = vmatpush1.xpose.msra.mxu0 0.0
    %2332 = vmatprep.subr.mxu0 0.0
    %2333 = vmatpush1.xpose.msra.mxu0 0.0
    %2334 = vmatprep.subr.mxu0 0.0
    %2335 = vmatpush1.xpose.msra.mxu0 0.0
    %2336 = vmatprep.subr.mxu0 0.0
    %2337 = vmatpush1.xpose.msra.mxu0 0.0
    %2338 = vmatprep.subr.mxu0 0.0
    %2339 = vmatpush1.xpose.msra.mxu0 0.0
    %2340 = vmatprep.subr.mxu0 0.0
    %2341 = vmatpush1.xpose.msra.mxu0 0.0
    %2342 = vmatprep.subr.mxu0 0.0
    %2343 = vmatpush1.xpose.msra.mxu0 0.0
    %2344 = vmatprep.subr.mxu0 0.0
    %2345 = vmatpush1.xpose.msra.mxu0 0.0
    %2346 = vmatprep.subr.mxu0 0.0
    %2347 = vmatpush1.xpose.msra.mxu0 0.0
    %2348 = vmatprep.subr.mxu0 0.0
    %2349 = vmatpush1.xpose.msra.mxu0 0.0
    %2350 = vmatprep.subr.mxu0 0.0
    %2351 = vmatpush1.xpose.msra.mxu0 0.0
    %2352 = vmatprep.subr.mxu0 0.0
    %2353 = vmatpush1.xpose.msra.mxu0 0.0
    %2354 = vmatprep.subr.mxu0 0.0
    %2355 = vmatpush1.xpose.msra.mxu0 0.0
    %2356 = vmatprep.subr.mxu0 0.0
    %2357 = vmatpush1.xpose.msra.mxu0 0.0
    %2358 = vmatprep.subr.mxu0 0.0
    %2359 = vmatpush1.xpose.msra.mxu0 0.0
    %2360 = vmatprep.mubr.f32.mxu0 0.0
    %2361 = vmatmul.mubr.f32.gmra.mrb[0].mxu0 %v2292
    %v2362 = vpop.f32.mrb[0].mxu0
    %v2363 = vadd.f32 %v197, %v2362
    %v2364 = vpop.f32.mrb[0].mxu0
    %2365 = vdwg.mxu0
    %2366 = vrot.lane.b32.xlu0 %v1981, 120
    %v2367 = vpop.permute.xlu0 %2366
    %v2368 = vsel %vm206, %v1981, 0
    %v2370 = vsel %vm206, %v2367, 0
    %2372 = vmatprep.subr.mxu0 0.0
    %2373 = vmatpush1.xpose.msra.mxu0 %v2370
    %2374 = vmatprep.subr.mxu0 0.0
    %2375 = vmatpush1.xpose.msra.mxu0 0.0
    %2376 = vmatprep.subr.mxu0 0.0
    %2377 = vmatpush1.xpose.msra.mxu0 0.0
    %2378 = vmatprep.subr.mxu0 0.0
    %2379 = vmatpush1.xpose.msra.mxu0 0.0
    %2380 = vmatprep.subr.mxu0 0.0
    %2381 = vmatpush1.xpose.msra.mxu0 0.0
    %2382 = vmatprep.subr.mxu0 0.0
    %2383 = vmatpush1.xpose.msra.mxu0 0.0
    %2384 = vmatprep.subr.mxu0 0.0
    %2385 = vmatpush1.xpose.msra.mxu0 0.0
    %2386 = vmatprep.subr.mxu0 0.0
    %2387 = vmatpush1.xpose.msra.mxu0 0.0
    %2388 = vmatprep.subr.mxu0 0.0
    %2389 = vmatpush1.xpose.msra.mxu0 0.0
    %2390 = vmatprep.subr.mxu0 0.0
    %2391 = vmatpush1.xpose.msra.mxu0 0.0
    %2392 = vmatprep.subr.mxu0 0.0
    %2393 = vmatpush1.xpose.msra.mxu0 0.0
    %2394 = vmatprep.subr.mxu0 0.0
    %2395 = vmatpush1.xpose.msra.mxu0 0.0
    %2396 = vmatprep.subr.mxu0 0.0
    %2397 = vmatpush1.xpose.msra.mxu0 0.0
    %2398 = vmatprep.subr.mxu0 0.0
    %2399 = vmatpush1.xpose.msra.mxu0 0.0
    %2400 = vmatprep.subr.mxu0 0.0
    %2401 = vmatpush1.xpose.msra.mxu0 0.0
    %2402 = vmatprep.subr.mxu0 0.0
    %2403 = vmatpush1.xpose.msra.mxu0 0.0
    %2404 = vmatprep.subr.mxu0 0.0
    %2405 = vmatpush1.xpose.msra.mxu0 0.0
    %2406 = vmatprep.subr.mxu0 0.0
    %2407 = vmatpush1.xpose.msra.mxu0 0.0
    %2408 = vmatprep.subr.mxu0 0.0
    %2409 = vmatpush1.xpose.msra.mxu0 0.0
    %2410 = vmatprep.subr.mxu0 0.0
    %2411 = vmatpush1.xpose.msra.mxu0 0.0
    %2412 = vmatprep.subr.mxu0 0.0
    %2413 = vmatpush1.xpose.msra.mxu0 0.0
    %2414 = vmatprep.subr.mxu0 0.0
    %2415 = vmatpush1.xpose.msra.mxu0 0.0
    %2416 = vmatprep.subr.mxu0 0.0
    %2417 = vmatpush1.xpose.msra.mxu0 0.0
    %2418 = vmatprep.subr.mxu0 0.0
    %2419 = vmatpush1.xpose.msra.mxu0 0.0
    %2420 = vmatprep.subr.mxu0 0.0
    %2421 = vmatpush1.xpose.msra.mxu0 0.0
    %2422 = vmatprep.subr.mxu0 0.0
    %2423 = vmatpush1.xpose.msra.mxu0 0.0
    %2424 = vmatprep.subr.mxu0 0.0
    %2425 = vmatpush1.xpose.msra.mxu0 0.0
    %2426 = vmatprep.subr.mxu0 0.0
    %2427 = vmatpush1.xpose.msra.mxu0 0.0
    %2428 = vmatprep.subr.mxu0 0.0
    %2429 = vmatpush1.xpose.msra.mxu0 0.0
    %2430 = vmatprep.subr.mxu0 0.0
    %2431 = vmatpush1.xpose.msra.mxu0 0.0
    %2432 = vmatprep.subr.mxu0 0.0
    %2433 = vmatpush1.xpose.msra.mxu0 0.0
    %2434 = vmatprep.subr.mxu0 0.0
    %2435 = vmatpush1.xpose.msra.mxu0 0.0
    %2436 = vmatprep.mubr.f32.mxu0 0.0
    %2437 = vmatmul.mubr.f32.gmra.mrb[0].mxu0 %v2368
    %v2438 = vpop.f32.mrb[0].mxu0
    %v2439 = vadd.f32 %v201, %v2438
    %v2440 = vpop.f32.mrb[0].mxu0
    %2441 = vdwg.mxu0
    %2442 = vrot.lane.b32.xlu0 %v1983, 120
    %v2443 = vpop.permute.xlu0 %2442
    %v2444 = vsel %vm206, %v1983, 0
    %v2446 = vsel %vm206, %v2443, 0
    %2448 = vmatprep.subr.mxu0 0.0
    %2449 = vmatpush1.xpose.msra.mxu0 %v2446
    %2450 = vmatprep.subr.mxu0 0.0
    %2451 = vmatpush1.xpose.msra.mxu0 0.0
    %2452 = vmatprep.subr.mxu0 0.0
    %2453 = vmatpush1.xpose.msra.mxu0 0.0
    %2454 = vmatprep.subr.mxu0 0.0
    %2455 = vmatpush1.xpose.msra.mxu0 0.0
    %2456 = vmatprep.subr.mxu0 0.0
    %2457 = vmatpush1.xpose.msra.mxu0 0.0
    %2458 = vmatprep.subr.mxu0 0.0
    %2459 = vmatpush1.xpose.msra.mxu0 0.0
    %2460 = vmatprep.subr.mxu0 0.0
    %2461 = vmatpush1.xpose.msra.mxu0 0.0
    %2462 = vmatprep.subr.mxu0 0.0
    %2463 = vmatpush1.xpose.msra.mxu0 0.0
    %2464 = vmatprep.subr.mxu0 0.0
    %2465 = vmatpush1.xpose.msra.mxu0 0.0
    %2466 = vmatprep.subr.mxu0 0.0
    %2467 = vmatpush1.xpose.msra.mxu0 0.0
    %2468 = vmatprep.subr.mxu0 0.0
    %2469 = vmatpush1.xpose.msra.mxu0 0.0
    %2470 = vmatprep.subr.mxu0 0.0
    %2471 = vmatpush1.xpose.msra.mxu0 0.0
    %2472 = vmatprep.subr.mxu0 0.0
    %2473 = vmatpush1.xpose.msra.mxu0 0.0
    %2474 = vmatprep.subr.mxu0 0.0
    %2475 = vmatpush1.xpose.msra.mxu0 0.0
    %2476 = vmatprep.subr.mxu0 0.0
    %2477 = vmatpush1.xpose.msra.mxu0 0.0
    %2478 = vmatprep.subr.mxu0 0.0
    %2479 = vmatpush1.xpose.msra.mxu0 0.0
    %2480 = vmatprep.subr.mxu0 0.0
    %2481 = vmatpush1.xpose.msra.mxu0 0.0
    %2482 = vmatprep.subr.mxu0 0.0
    %2483 = vmatpush1.xpose.msra.mxu0 0.0
    %2484 = vmatprep.subr.mxu0 0.0
    %2485 = vmatpush1.xpose.msra.mxu0 0.0
    %2486 = vmatprep.subr.mxu0 0.0
    %2487 = vmatpush1.xpose.msra.mxu0 0.0
    %2488 = vmatprep.subr.mxu0 0.0
    %2489 = vmatpush1.xpose.msra.mxu0 0.0
    %2490 = vmatprep.subr.mxu0 0.0
    %2491 = vmatpush1.xpose.msra.mxu0 0.0
    %2492 = vmatprep.subr.mxu0 0.0
    %2493 = vmatpush1.xpose.msra.mxu0 0.0
    %2494 = vmatprep.subr.mxu0 0.0
    %2495 = vmatpush1.xpose.msra.mxu0 0.0
    %2496 = vmatprep.subr.mxu0 0.0
    %2497 = vmatpush1.xpose.msra.mxu0 0.0
    %2498 = vmatprep.subr.mxu0 0.0
    %2499 = vmatpush1.xpose.msra.mxu0 0.0
    %2500 = vmatprep.subr.mxu0 0.0
    %2501 = vmatpush1.xpose.msra.mxu0 0.0
    %2502 = vmatprep.subr.mxu0 0.0
    %2503 = vmatpush1.xpose.msra.mxu0 0.0
    %2504 = vmatprep.subr.mxu0 0.0
    %2505 = vmatpush1.xpose.msra.mxu0 0.0
    %2506 = vmatprep.subr.mxu0 0.0
    %2507 = vmatpush1.xpose.msra.mxu0 0.0
    %2508 = vmatprep.subr.mxu0 0.0
    %2509 = vmatpush1.xpose.msra.mxu0 0.0
    %2510 = vmatprep.subr.mxu0 0.0
    %2511 = vmatpush1.xpose.msra.mxu0 0.0
    %2512 = vmatprep.mubr.f32.mxu0 0.0
    %2513 = vmatmul.mubr.f32.gmra.mrb[0].mxu0 %v2444
    %v2514 = vpop.f32.mrb[0].mxu0
    %v2515 = vadd.f32 %v197, %v2514
    %v2516 = vpop.f32.mrb[0].mxu0
    %2517 = vdwg.mxu0
    %2518 = vrot.lane.b32.xlu0 %v1985, 120
    %v2519 = vpop.permute.xlu0 %2518
    %v2520 = vsel %vm206, %v1985, 0
    %v2522 = vsel %vm206, %v2519, 0
    %2524 = vmatprep.subr.mxu0 0.0
    %2525 = vmatpush1.xpose.msra.mxu0 %v2522
    %2526 = vmatprep.subr.mxu0 0.0
    %2527 = vmatpush1.xpose.msra.mxu0 0.0
    %2528 = vmatprep.subr.mxu0 0.0
    %2529 = vmatpush1.xpose.msra.mxu0 0.0
    %2530 = vmatprep.subr.mxu0 0.0
    %2531 = vmatpush1.xpose.msra.mxu0 0.0
    %2532 = vmatprep.subr.mxu0 0.0
    %2533 = vmatpush1.xpose.msra.mxu0 0.0
    %2534 = vmatprep.subr.mxu0 0.0
    %2535 = vmatpush1.xpose.msra.mxu0 0.0
    %2536 = vmatprep.subr.mxu0 0.0
    %2537 = vmatpush1.xpose.msra.mxu0 0.0
    %2538 = vmatprep.subr.mxu0 0.0
    %2539 = vmatpush1.xpose.msra.mxu0 0.0
    %2540 = vmatprep.subr.mxu0 0.0
    %2541 = vmatpush1.xpose.msra.mxu0 0.0
    %2542 = vmatprep.subr.mxu0 0.0
    %2543 = vmatpush1.xpose.msra.mxu0 0.0
    %2544 = vmatprep.subr.mxu0 0.0
    %2545 = vmatpush1.xpose.msra.mxu0 0.0
    %2546 = vmatprep.subr.mxu0 0.0
    %2547 = vmatpush1.xpose.msra.mxu0 0.0
    %2548 = vmatprep.subr.mxu0 0.0
    %2549 = vmatpush1.xpose.msra.mxu0 0.0
    %2550 = vmatprep.subr.mxu0 0.0
    %2551 = vmatpush1.xpose.msra.mxu0 0.0
    %2552 = vmatprep.subr.mxu0 0.0
    %2553 = vmatpush1.xpose.msra.mxu0 0.0
    %2554 = vmatprep.subr.mxu0 0.0
    %2555 = vmatpush1.xpose.msra.mxu0 0.0
    %2556 = vmatprep.subr.mxu0 0.0
    %2557 = vmatpush1.xpose.msra.mxu0 0.0
    %2558 = vmatprep.subr.mxu0 0.0
    %2559 = vmatpush1.xpose.msra.mxu0 0.0
    %2560 = vmatprep.subr.mxu0 0.0
    %2561 = vmatpush1.xpose.msra.mxu0 0.0
    %2562 = vmatprep.subr.mxu0 0.0
    %2563 = vmatpush1.xpose.msra.mxu0 0.0
    %2564 = vmatprep.subr.mxu0 0.0
    %2565 = vmatpush1.xpose.msra.mxu0 0.0
    %2566 = vmatprep.subr.mxu0 0.0
    %2567 = vmatpush1.xpose.msra.mxu0 0.0
    %2568 = vmatprep.subr.mxu0 0.0
    %2569 = vmatpush1.xpose.msra.mxu0 0.0
    %2570 = vmatprep.subr.mxu0 0.0
    %2571 = vmatpush1.xpose.msra.mxu0 0.0
    %2572 = vmatprep.subr.mxu0 0.0
    %2573 = vmatpush1.xpose.msra.mxu0 0.0
    %2574 = vmatprep.subr.mxu0 0.0
    %2575 = vmatpush1.xpose.msra.mxu0 0.0
    %2576 = vmatprep.subr.mxu0 0.0
    %2577 = vmatpush1.xpose.msra.mxu0 0.0
    %2578 = vmatprep.subr.mxu0 0.0
    %2579 = vmatpush1.xpose.msra.mxu0 0.0
    %2580 = vmatprep.subr.mxu0 0.0
    %2581 = vmatpush1.xpose.msra.mxu0 0.0
    %2582 = vmatprep.subr.mxu0 0.0
    %2583 = vmatpush1.xpose.msra.mxu0 0.0
    %2584 = vmatprep.subr.mxu0 0.0
    %2585 = vmatpush1.xpose.msra.mxu0 0.0
    %2586 = vmatprep.subr.mxu0 0.0
    %2587 = vmatpush1.xpose.msra.mxu0 0.0
    %2588 = vmatprep.mubr.f32.mxu0 0.0
    %2589 = vmatmul.mubr.f32.gmra.mrb[0].mxu0 %v2520
    %v2590 = vpop.f32.mrb[0].mxu0
    %v2591 = vadd.f32 %v201, %v2590
    %v2592 = vpop.f32.mrb[0].mxu0
    %2593 = vdwg.mxu0
    %v2594 = vsel %vm206, %v2059, -inf
    %2595 = vmax.xlane.f32.xlu0 %v2594
    %v2596 = vpop.xlane.xlu0 %2595
    %v2597 = vsel %vm206, %v2135, -inf
    %2598 = vmax.xlane.f32.xlu0 %v2597
    %v2599 = vpop.xlane.xlu0 %2598
    %v2600 = vsel %vm206, %v2211, -inf
    %2601 = vmax.xlane.f32.xlu0 %v2600
    %v2602 = vpop.xlane.xlu0 %2601
    %v2603 = vsel %vm206, %v2287, -inf
    %2604 = vmax.xlane.f32.xlu0 %v2603
    %v2605 = vpop.xlane.xlu0 %2604
    %v2606 = vsel %vm206, %v2363, -inf
    %2607 = vmax.xlane.f32.xlu0 %v2606
    %v2608 = vpop.xlane.xlu0 %2607
    %v2609 = vsel %vm206, %v2439, -inf
    %2610 = vmax.xlane.f32.xlu0 %v2609
    %v2611 = vpop.xlane.xlu0 %2610
    %v2612 = vsel %vm206, %v2515, -inf
    %2613 = vmax.xlane.f32.xlu0 %v2612
    %v2614 = vpop.xlane.xlu0 %2613
    %v2615 = vsel %vm206, %v2591, -inf
    %2616 = vmax.xlane.f32.xlu0 %v2615
    %v2617 = vpop.xlane.xlu0 %2616
    %v2618 = vsub.f32 %v2059, %v2596
    %v2619 = vsub.f32 %v2135, %v2599
    %v2620 = vsub.f32 %v2211, %v2602
    %v2621 = vsub.f32 %v2287, %v2605
    %v2622 = vsub.f32 %v2363, %v2608
    %v2623 = vsub.f32 %v2439, %v2611
    %v2624 = vsub.f32 %v2515, %v2614
    %v2625 = vsub.f32 %v2591, %v2617
    %v2626 = vmul.f32 %v2618, 1.442695
    %v2627 = vpow.pop %v2626
    %v2628 = vmul.f32 %v2619, 1.442695
    %v2629 = vpow.pop %v2628
    %v2630 = vmul.f32 %v2620, 1.442695
    %v2631 = vpow.pop %v2630
    %v2632 = vmul.f32 %v2621, 1.442695
    %v2633 = vpow.pop %v2632
    %v2634 = vmul.f32 %v2622, 1.442695
    %v2635 = vpow.pop %v2634
    %v2636 = vmul.f32 %v2623, 1.442695
    %v2637 = vpow.pop %v2636
    %v2638 = vmul.f32 %v2624, 1.442695
    %v2639 = vpow.pop %v2638
    %v2640 = vmul.f32 %v2625, 1.442695
    %v2641 = vpow.pop %v2640
    %v2642 = vsel %vm206, %v2627, 0.0
    %2643 = vadd.xlane.f32.xlu0 %v2642
    %v2644 = vpop.xlane.xlu0 %2643
    %v2645 = vsel %vm206, %v2629, 0.0
    %2646 = vadd.xlane.f32.xlu0 %v2645
    %v2647 = vpop.xlane.xlu0 %2646
    %v2648 = vsel %vm206, %v2631, 0.0
    %2649 = vadd.xlane.f32.xlu0 %v2648
    %v2650 = vpop.xlane.xlu0 %2649
    %v2651 = vsel %vm206, %v2633, 0.0
    %2652 = vadd.xlane.f32.xlu0 %v2651
    %v2653 = vpop.xlane.xlu0 %2652
    %v2654 = vsel %vm206, %v2635, 0.0
    %2655 = vadd.xlane.f32.xlu0 %v2654
    %v2656 = vpop.xlane.xlu0 %2655
    %v2657 = vsel %vm206, %v2637, 0.0
    %2658 = vadd.xlane.f32.xlu0 %v2657
    %v2659 = vpop.xlane.xlu0 %2658
    %v2660 = vsel %vm206, %v2639, 0.0
    %2661 = vadd.xlane.f32.xlu0 %v2660
    %v2662 = vpop.xlane.xlu0 %2661
    %v2663 = vsel %vm206, %v2641, 0.0
    %2664 = vadd.xlane.f32.xlu0 %v2663
    %v2665 = vpop.xlane.xlu0 %2664
    %v2666 = vrcp.pop %v2644
    %v2667 = vrcp.pop %v2647
    %v2668 = vrcp.pop %v2650
    %v2669 = vrcp.pop %v2653
    %v2670 = vrcp.pop %v2656
    %v2671 = vrcp.pop %v2659
    %v2672 = vrcp.pop %v2662
    %v2673 = vrcp.pop %v2665
    %v2674 = vmul.f32 %v2627, %v2666
    %v2675 = vmul.f32 %v2629, %v2667
    %v2676 = vmul.f32 %v2631, %v2668
    %v2677 = vmul.f32 %v2633, %v2669
    %v2678 = vmul.f32 %v2635, %v2670
    %v2679 = vmul.f32 %v2637, %v2671
    %v2680 = vmul.f32 %v2639, %v2672
    %v2681 = vmul.f32 %v2641, %v2673
    %2682 = vrot.lane.b32.xlu0 %v1964, 112
    %v2683 = vpop.permute.xlu0 %2682
    %v2686 = vsel %vm206, %v2674, 0
    %2688 = vmatprep.subr.mxu0 0.0
    %2689 = vmatpush1.msra.mxu0 %v2683
    %2690 = vmatprep.subr.mxu0 0.0
    %2691 = vmatpush1.msra.mxu0 0.0
    %2692 = vmatprep.subr.mxu0 0.0
    %2693 = vmatpush1.msra.mxu0 0.0
    %2694 = vmatprep.subr.mxu0 0.0
    %2695 = vmatpush1.msra.mxu0 0.0
    %2696 = vmatprep.subr.mxu0 0.0
    %2697 = vmatpush1.msra.mxu0 0.0
    %2698 = vmatprep.subr.mxu0 0.0
    %2699 = vmatpush1.msra.mxu0 0.0
    %2700 = vmatprep.subr.mxu0 0.0
    %2701 = vmatpush1.msra.mxu0 0.0
    %2702 = vmatprep.subr.mxu0 0.0
    %2703 = vmatpush1.msra.mxu0 0.0
    %2704 = vmatprep.subr.mxu0 0.0
    %2705 = vmatpush1.msra.mxu0 0.0
    %2706 = vmatprep.subr.mxu0 0.0
    %2707 = vmatpush1.msra.mxu0 0.0
    %2708 = vmatprep.subr.mxu0 0.0
    %2709 = vmatpush1.msra.mxu0 0.0
    %2710 = vmatprep.subr.mxu0 0.0
    %2711 = vmatpush1.msra.mxu0 0.0
    %2712 = vmatprep.subr.mxu0 0.0
    %2713 = vmatpush1.msra.mxu0 0.0
    %2714 = vmatprep.subr.mxu0 0.0
    %2715 = vmatpush1.msra.mxu0 0.0
    %2716 = vmatprep.subr.mxu0 0.0
    %2717 = vmatpush1.msra.mxu0 0.0
    %2718 = vmatprep.subr.mxu0 0.0
    %2719 = vmatpush1.msra.mxu0 0.0
    %2720 = vmatprep.subr.mxu0 0.0
    %2721 = vmatpush1.msra.mxu0 0.0
    %2722 = vmatprep.subr.mxu0 0.0
    %2723 = vmatpush1.msra.mxu0 0.0
    %2724 = vmatprep.subr.mxu0 0.0
    %2725 = vmatpush1.msra.mxu0 0.0
    %2726 = vmatprep.subr.mxu0 0.0
    %2727 = vmatpush1.msra.mxu0 0.0
    %2728 = vmatprep.subr.mxu0 0.0
    %2729 = vmatpush1.msra.mxu0 0.0
    %2730 = vmatprep.subr.mxu0 0.0
    %2731 = vmatpush1.msra.mxu0 0.0
    %2732 = vmatprep.subr.mxu0 0.0
    %2733 = vmatpush1.msra.mxu0 0.0
    %2734 = vmatprep.subr.mxu0 0.0
    %2735 = vmatpush1.msra.mxu0 0.0
    %2736 = vmatprep.subr.mxu0 0.0
    %2737 = vmatpush1.msra.mxu0 0.0
    %2738 = vmatprep.subr.mxu0 0.0
    %2739 = vmatpush1.msra.mxu0 0.0
    %2740 = vmatprep.subr.mxu0 0.0
    %2741 = vmatpush1.msra.mxu0 0.0
    %2742 = vmatprep.subr.mxu0 0.0
    %2743 = vmatpush1.msra.mxu0 0.0
    %2744 = vmatprep.subr.mxu0 0.0
    %2745 = vmatpush1.msra.mxu0 0.0
    %2746 = vmatprep.subr.mxu0 0.0
    %2747 = vmatpush1.msra.mxu0 0.0
    %2748 = vmatprep.subr.mxu0 0.0
    %2749 = vmatpush1.msra.mxu0 0.0
    %2750 = vmatprep.subr.mxu0 0.0
    %2751 = vmatpush1.msra.mxu0 0.0
    %2752 = vmatprep.mubr.f32.mxu0 0.0
    %2753 = vmatmul.mubr.f32.gmra.mrb[0].mxu0 %v2686
    %v2754 = vpop.f32.mrb[0].mxu0
    %v2755 = vadd.f32 0.0, %v2754
    %v2756 = vpop.f32.mrb[0].mxu0
    %2757 = vdwg.mxu0
    %2758 = vrot.lane.b32.xlu0 %v1969, 112
    %v2759 = vpop.permute.xlu0 %2758
    %v2762 = vsel %vm206, %v2675, 0
    %2764 = vmatprep.subr.mxu0 0.0
    %2765 = vmatpush1.msra.mxu0 %v2759
    %2766 = vmatprep.subr.mxu0 0.0
    %2767 = vmatpush1.msra.mxu0 0.0
    %2768 = vmatprep.subr.mxu0 0.0
    %2769 = vmatpush1.msra.mxu0 0.0
    %2770 = vmatprep.subr.mxu0 0.0
    %2771 = vmatpush1.msra.mxu0 0.0
    %2772 = vmatprep.subr.mxu0 0.0
    %2773 = vmatpush1.msra.mxu0 0.0
    %2774 = vmatprep.subr.mxu0 0.0
    %2775 = vmatpush1.msra.mxu0 0.0
    %2776 = vmatprep.subr.mxu0 0.0
    %2777 = vmatpush1.msra.mxu0 0.0
    %2778 = vmatprep.subr.mxu0 0.0
    %2779 = vmatpush1.msra.mxu0 0.0
    %2780 = vmatprep.subr.mxu0 0.0
    %2781 = vmatpush1.msra.mxu0 0.0
    %2782 = vmatprep.subr.mxu0 0.0
    %2783 = vmatpush1.msra.mxu0 0.0
    %2784 = vmatprep.subr.mxu0 0.0
    %2785 = vmatpush1.msra.mxu0 0.0
    %2786 = vmatprep.subr.mxu0 0.0
    %2787 = vmatpush1.msra.mxu0 0.0
    %2788 = vmatprep.subr.mxu0 0.0
    %2789 = vmatpush1.msra.mxu0 0.0
    %2790 = vmatprep.subr.mxu0 0.0
    %2791 = vmatpush1.msra.mxu0 0.0
    %2792 = vmatprep.subr.mxu0 0.0
    %2793 = vmatpush1.msra.mxu0 0.0
    %2794 = vmatprep.subr.mxu0 0.0
    %2795 = vmatpush1.msra.mxu0 0.0
    %2796 = vmatprep.subr.mxu0 0.0
    %2797 = vmatpush1.msra.mxu0 0.0
    %2798 = vmatprep.subr.mxu0 0.0
    %2799 = vmatpush1.msra.mxu0 0.0
    %2800 = vmatprep.subr.mxu0 0.0
    %2801 = vmatpush1.msra.mxu0 0.0
    %2802 = vmatprep.subr.mxu0 0.0
    %2803 = vmatpush1.msra.mxu0 0.0
    %2804 = vmatprep.subr.mxu0 0.0
    %2805 = vmatpush1.msra.mxu0 0.0
    %2806 = vmatprep.subr.mxu0 0.0
    %2807 = vmatpush1.msra.mxu0 0.0
    %2808 = vmatprep.subr.mxu0 0.0
    %2809 = vmatpush1.msra.mxu0 0.0
    %2810 = vmatprep.subr.mxu0 0.0
    %2811 = vmatpush1.msra.mxu0 0.0
    %2812 = vmatprep.subr.mxu0 0.0
    %2813 = vmatpush1.msra.mxu0 0.0
    %2814 = vmatprep.subr.mxu0 0.0
    %2815 = vmatpush1.msra.mxu0 0.0
    %2816 = vmatprep.subr.mxu0 0.0
    %2817 = vmatpush1.msra.mxu0 0.0
    %2818 = vmatprep.subr.mxu0 0.0
    %2819 = vmatpush1.msra.mxu0 0.0
    %2820 = vmatprep.subr.mxu0 0.0
    %2821 = vmatpush1.msra.mxu0 0.0
    %2822 = vmatprep.subr.mxu0 0.0
    %2823 = vmatpush1.msra.mxu0 0.0
    %2824 = vmatprep.subr.mxu0 0.0
    %2825 = vmatpush1.msra.mxu0 0.0
    %2826 = vmatprep.subr.mxu0 0.0
    %2827 = vmatpush1.msra.mxu0 0.0
    %2828 = vmatprep.mubr.f32.mxu0 0.0
    %2829 = vmatmul.mubr.f32.gmra.mrb[0].mxu0 %v2762
    %v2830 = vpop.f32.mrb[0].mxu0
    %v2831 = vadd.f32 0.0, %v2830
    %v2832 = vpop.f32.mrb[0].mxu0
    %2833 = vdwg.mxu0
    %2834 = vrot.lane.b32.xlu0 %v1975, 112
    %v2835 = vpop.permute.xlu0 %2834
    %v2838 = vsel %vm206, %v2676, 0
    %2840 = vmatprep.subr.mxu0 0.0
    %2841 = vmatpush1.msra.mxu0 %v2835
    %2842 = vmatprep.subr.mxu0 0.0
    %2843 = vmatpush1.msra.mxu0 0.0
    %2844 = vmatprep.subr.mxu0 0.0
    %2845 = vmatpush1.msra.mxu0 0.0
    %2846 = vmatprep.subr.mxu0 0.0
    %2847 = vmatpush1.msra.mxu0 0.0
    %2848 = vmatprep.subr.mxu0 0.0
    %2849 = vmatpush1.msra.mxu0 0.0
    %2850 = vmatprep.subr.mxu0 0.0
    %2851 = vmatpush1.msra.mxu0 0.0
    %2852 = vmatprep.subr.mxu0 0.0
    %2853 = vmatpush1.msra.mxu0 0.0
    %2854 = vmatprep.subr.mxu0 0.0
    %2855 = vmatpush1.msra.mxu0 0.0
    %2856 = vmatprep.subr.mxu0 0.0
    %2857 = vmatpush1.msra.mxu0 0.0
    %2858 = vmatprep.subr.mxu0 0.0
    %2859 = vmatpush1.msra.mxu0 0.0
    %2860 = vmatprep.subr.mxu0 0.0
    %2861 = vmatpush1.msra.mxu0 0.0
    %2862 = vmatprep.subr.mxu0 0.0
    %2863 = vmatpush1.msra.mxu0 0.0
    %2864 = vmatprep.subr.mxu0 0.0
    %2865 = vmatpush1.msra.mxu0 0.0
    %2866 = vmatprep.subr.mxu0 0.0
    %2867 = vmatpush1.msra.mxu0 0.0
    %2868 = vmatprep.subr.mxu0 0.0
    %2869 = vmatpush1.msra.mxu0 0.0
    %2870 = vmatprep.subr.mxu0 0.0
    %2871 = vmatpush1.msra.mxu0 0.0
    %2872 = vmatprep.subr.mxu0 0.0
    %2873 = vmatpush1.msra.mxu0 0.0
    %2874 = vmatprep.subr.mxu0 0.0
    %2875 = vmatpush1.msra.mxu0 0.0
    %2876 = vmatprep.subr.mxu0 0.0
    %2877 = vmatpush1.msra.mxu0 0.0
    %2878 = vmatprep.subr.mxu0 0.0
    %2879 = vmatpush1.msra.mxu0 0.0
    %2880 = vmatprep.subr.mxu0 0.0
    %2881 = vmatpush1.msra.mxu0 0.0
    %2882 = vmatprep.subr.mxu0 0.0
    %2883 = vmatpush1.msra.mxu0 0.0
    %2884 = vmatprep.subr.mxu0 0.0
    %2885 = vmatpush1.msra.mxu0 0.0
    %2886 = vmatprep.subr.mxu0 0.0
    %2887 = vmatpush1.msra.mxu0 0.0
    %2888 = vmatprep.subr.mxu0 0.0
    %2889 = vmatpush1.msra.mxu0 0.0
    %2890 = vmatprep.subr.mxu0 0.0
    %2891 = vmatpush1.msra.mxu0 0.0
    %2892 = vmatprep.subr.mxu0 0.0
    %2893 = vmatpush1.msra.mxu0 0.0
    %2894 = vmatprep.subr.mxu0 0.0
    %2895 = vmatpush1.msra.mxu0 0.0
    %2896 = vmatprep.subr.mxu0 0.0
    %2897 = vmatpush1.msra.mxu0 0.0
    %2898 = vmatprep.subr.mxu0 0.0
    %2899 = vmatpush1.msra.mxu0 0.0
    %2900 = vmatprep.subr.mxu0 0.0
    %2901 = vmatpush1.msra.mxu0 0.0
    %2902 = vmatprep.subr.mxu0 0.0
    %2903 = vmatpush1.msra.mxu0 0.0
    %2904 = vmatprep.mubr.f32.mxu0 0.0
    %2905 = vmatmul.mubr.f32.gmra.mrb[0].mxu0 %v2838
    %v2906 = vpop.f32.mrb[0].mxu0
    %v2907 = vadd.f32 0.0, %v2906
    %v2908 = vpop.f32.mrb[0].mxu0
    %2909 = vdwg.mxu0
    %2910 = vrot.lane.b32.xlu0 %v1977, 112
    %v2911 = vpop.permute.xlu0 %2910
    %v2914 = vsel %vm206, %v2677, 0
    %2916 = vmatprep.subr.mxu0 0.0
    %2917 = vmatpush1.msra.mxu0 %v2911
    %2918 = vmatprep.subr.mxu0 0.0
    %2919 = vmatpush1.msra.mxu0 0.0
    %2920 = vmatprep.subr.mxu0 0.0
    %2921 = vmatpush1.msra.mxu0 0.0
    %2922 = vmatprep.subr.mxu0 0.0
    %2923 = vmatpush1.msra.mxu0 0.0
    %2924 = vmatprep.subr.mxu0 0.0
    %2925 = vmatpush1.msra.mxu0 0.0
    %2926 = vmatprep.subr.mxu0 0.0
    %2927 = vmatpush1.msra.mxu0 0.0
    %2928 = vmatprep.subr.mxu0 0.0
    %2929 = vmatpush1.msra.mxu0 0.0
    %2930 = vmatprep.subr.mxu0 0.0
    %2931 = vmatpush1.msra.mxu0 0.0
    %2932 = vmatprep.subr.mxu0 0.0
    %2933 = vmatpush1.msra.mxu0 0.0
    %2934 = vmatprep.subr.mxu0 0.0
    %2935 = vmatpush1.msra.mxu0 0.0
    %2936 = vmatprep.subr.mxu0 0.0
    %2937 = vmatpush1.msra.mxu0 0.0
    %2938 = vmatprep.subr.mxu0 0.0
    %2939 = vmatpush1.msra.mxu0 0.0
    %2940 = vmatprep.subr.mxu0 0.0
    %2941 = vmatpush1.msra.mxu0 0.0
    %2942 = vmatprep.subr.mxu0 0.0
    %2943 = vmatpush1.msra.mxu0 0.0
    %2944 = vmatprep.subr.mxu0 0.0
    %2945 = vmatpush1.msra.mxu0 0.0
    %2946 = vmatprep.subr.mxu0 0.0
    %2947 = vmatpush1.msra.mxu0 0.0
    %2948 = vmatprep.subr.mxu0 0.0
    %2949 = vmatpush1.msra.mxu0 0.0
    %2950 = vmatprep.subr.mxu0 0.0
    %2951 = vmatpush1.msra.mxu0 0.0
    %2952 = vmatprep.subr.mxu0 0.0
    %2953 = vmatpush1.msra.mxu0 0.0
    %2954 = vmatprep.subr.mxu0 0.0
    %2955 = vmatpush1.msra.mxu0 0.0
    %2956 = vmatprep.subr.mxu0 0.0
    %2957 = vmatpush1.msra.mxu0 0.0
    %2958 = vmatprep.subr.mxu0 0.0
    %2959 = vmatpush1.msra.mxu0 0.0
    %2960 = vmatprep.subr.mxu0 0.0
    %2961 = vmatpush1.msra.mxu0 0.0
    %2962 = vmatprep.subr.mxu0 0.0
    %2963 = vmatpush1.msra.mxu0 0.0
    %2964 = vmatprep.subr.mxu0 0.0
    %2965 = vmatpush1.msra.mxu0 0.0
    %2966 = vmatprep.subr.mxu0 0.0
    %2967 = vmatpush1.msra.mxu0 0.0
    %2968 = vmatprep.subr.mxu0 0.0
    %2969 = vmatpush1.msra.mxu0 0.0
    %2970 = vmatprep.subr.mxu0 0.0
    %2971 = vmatpush1.msra.mxu0 0.0
    %2972 = vmatprep.subr.mxu0 0.0
    %2973 = vmatpush1.msra.mxu0 0.0
    %2974 = vmatprep.subr.mxu0 0.0
    %2975 = vmatpush1.msra.mxu0 0.0
    %2976 = vmatprep.subr.mxu0 0.0
    %2977 = vmatpush1.msra.mxu0 0.0
    %2978 = vmatprep.subr.mxu0 0.0
    %2979 = vmatpush1.msra.mxu0 0.0
    %2980 = vmatprep.mubr.f32.mxu0 0.0
    %2981 = vmatmul.mubr.f32.gmra.mrb[0].mxu0 %v2914
    %v2982 = vpop.f32.mrb[0].mxu0
    %v2983 = vadd.f32 0.0, %v2982
    %v2984 = vpop.f32.mrb[0].mxu0
    %2985 = vdwg.mxu0
    %2986 = vrot.lane.b32.xlu0 %v1979, 112
    %v2987 = vpop.permute.xlu0 %2986
    %v2990 = vsel %vm206, %v2678, 0
    %2992 = vmatprep.subr.mxu0 0.0
    %2993 = vmatpush1.msra.mxu0 %v2987
    %2994 = vmatprep.subr.mxu0 0.0
    %2995 = vmatpush1.msra.mxu0 0.0
    %2996 = vmatprep.subr.mxu0 0.0
    %2997 = vmatpush1.msra.mxu0 0.0
    %2998 = vmatprep.subr.mxu0 0.0
    %2999 = vmatpush1.msra.mxu0 0.0
    %3000 = vmatprep.subr.mxu0 0.0
    %3001 = vmatpush1.msra.mxu0 0.0
    %3002 = vmatprep.subr.mxu0 0.0
    %3003 = vmatpush1.msra.mxu0 0.0
    %3004 = vmatprep.subr.mxu0 0.0
    %3005 = vmatpush1.msra.mxu0 0.0
    %3006 = vmatprep.subr.mxu0 0.0
    %3007 = vmatpush1.msra.mxu0 0.0
    %3008 = vmatprep.subr.mxu0 0.0
    %3009 = vmatpush1.msra.mxu0 0.0
    %3010 = vmatprep.subr.mxu0 0.0
    %3011 = vmatpush1.msra.mxu0 0.0
    %3012 = vmatprep.subr.mxu0 0.0
    %3013 = vmatpush1.msra.mxu0 0.0
    %3014 = vmatprep.subr.mxu0 0.0
    %3015 = vmatpush1.msra.mxu0 0.0
    %3016 = vmatprep.subr.mxu0 0.0
    %3017 = vmatpush1.msra.mxu0 0.0
    %3018 = vmatprep.subr.mxu0 0.0
    %3019 = vmatpush1.msra.mxu0 0.0
    %3020 = vmatprep.subr.mxu0 0.0
    %3021 = vmatpush1.msra.mxu0 0.0
    %3022 = vmatprep.subr.mxu0 0.0
    %3023 = vmatpush1.msra.mxu0 0.0
    %3024 = vmatprep.subr.mxu0 0.0
    %3025 = vmatpush1.msra.mxu0 0.0
    %3026 = vmatprep.subr.mxu0 0.0
    %3027 = vmatpush1.msra.mxu0 0.0
    %3028 = vmatprep.subr.mxu0 0.0
    %3029 = vmatpush1.msra.mxu0 0.0
    %3030 = vmatprep.subr.mxu0 0.0
    %3031 = vmatpush1.msra.mxu0 0.0
    %3032 = vmatprep.subr.mxu0 0.0
    %3033 = vmatpush1.msra.mxu0 0.0
    %3034 = vmatprep.subr.mxu0 0.0
    %3035 = vmatpush1.msra.mxu0 0.0
    %3036 = vmatprep.subr.mxu0 0.0
    %3037 = vmatpush1.msra.mxu0 0.0
    %3038 = vmatprep.subr.mxu0 0.0
    %3039 = vmatpush1.msra.mxu0 0.0
    %3040 = vmatprep.subr.mxu0 0.0
    %3041 = vmatpush1.msra.mxu0 0.0
    %3042 = vmatprep.subr.mxu0 0.0
    %3043 = vmatpush1.msra.mxu0 0.0
    %3044 = vmatprep.subr.mxu0 0.0
    %3045 = vmatpush1.msra.mxu0 0.0
    %3046 = vmatprep.subr.mxu0 0.0
    %3047 = vmatpush1.msra.mxu0 0.0
    %3048 = vmatprep.subr.mxu0 0.0
    %3049 = vmatpush1.msra.mxu0 0.0
    %3050 = vmatprep.subr.mxu0 0.0
    %3051 = vmatpush1.msra.mxu0 0.0
    %3052 = vmatprep.subr.mxu0 0.0
    %3053 = vmatpush1.msra.mxu0 0.0
    %3054 = vmatprep.subr.mxu0 0.0
    %3055 = vmatpush1.msra.mxu0 0.0
    %3056 = vmatprep.mubr.f32.mxu0 0.0
    %3057 = vmatmul.mubr.f32.gmra.mrb[0].mxu0 %v2990
    %v3058 = vpop.f32.mrb[0].mxu0
    %v3059 = vadd.f32 0.0, %v3058
    %v3060 = vpop.f32.mrb[0].mxu0
    %3061 = vdwg.mxu0
    %3062 = vrot.lane.b32.xlu0 %v1981, 112
    %v3063 = vpop.permute.xlu0 %3062
    %v3066 = vsel %vm206, %v2679, 0
    %3068 = vmatprep.subr.mxu0 0.0
    %3069 = vmatpush1.msra.mxu0 %v3063
    %3070 = vmatprep.subr.mxu0 0.0
    %3071 = vmatpush1.msra.mxu0 0.0
    %3072 = vmatprep.subr.mxu0 0.0
    %3073 = vmatpush1.msra.mxu0 0.0
    %3074 = vmatprep.subr.mxu0 0.0
    %3075 = vmatpush1.msra.mxu0 0.0
    %3076 = vmatprep.subr.mxu0 0.0
    %3077 = vmatpush1.msra.mxu0 0.0
    %3078 = vmatprep.subr.mxu0 0.0
    %3079 = vmatpush1.msra.mxu0 0.0
    %3080 = vmatprep.subr.mxu0 0.0
    %3081 = vmatpush1.msra.mxu0 0.0
    %3082 = vmatprep.subr.mxu0 0.0
    %3083 = vmatpush1.msra.mxu0 0.0
    %3084 = vmatprep.subr.mxu0 0.0
    %3085 = vmatpush1.msra.mxu0 0.0
    %3086 = vmatprep.subr.mxu0 0.0
    %3087 = vmatpush1.msra.mxu0 0.0
    %3088 = vmatprep.subr.mxu0 0.0
    %3089 = vmatpush1.msra.mxu0 0.0
    %3090 = vmatprep.subr.mxu0 0.0
    %3091 = vmatpush1.msra.mxu0 0.0
    %3092 = vmatprep.subr.mxu0 0.0
    %3093 = vmatpush1.msra.mxu0 0.0
    %3094 = vmatprep.subr.mxu0 0.0
    %3095 = vmatpush1.msra.mxu0 0.0
    %3096 = vmatprep.subr.mxu0 0.0
    %3097 = vmatpush1.msra.mxu0 0.0
    %3098 = vmatprep.subr.mxu0 0.0
    %3099 = vmatpush1.msra.mxu0 0.0
    %3100 = vmatprep.subr.mxu0 0.0
    %3101 = vmatpush1.msra.mxu0 0.0
    %3102 = vmatprep.subr.mxu0 0.0
    %3103 = vmatpush1.msra.mxu0 0.0
    %3104 = vmatprep.subr.mxu0 0.0
    %3105 = vmatpush1.msra.mxu0 0.0
    %3106 = vmatprep.subr.mxu0 0.0
    %3107 = vmatpush1.msra.mxu0 0.0
    %3108 = vmatprep.subr.mxu0 0.0
    %3109 = vmatpush1.msra.mxu0 0.0
    %3110 = vmatprep.subr.mxu0 0.0
    %3111 = vmatpush1.msra.mxu0 0.0
    %3112 = vmatprep.subr.mxu0 0.0
    %3113 = vmatpush1.msra.mxu0 0.0
    %3114 = vmatprep.subr.mxu0 0.0
    %3115 = vmatpush1.msra.mxu0 0.0
    %3116 = vmatprep.subr.mxu0 0.0
    %3117 = vmatpush1.msra.mxu0 0.0
    %3118 = vmatprep.subr.mxu0 0.0
    %3119 = vmatpush1.msra.mxu0 0.0
    %3120 = vmatprep.subr.mxu0 0.0
    %3121 = vmatpush1.msra.mxu0 0.0
    %3122 = vmatprep.subr.mxu0 0.0
    %3123 = vmatpush1.msra.mxu0 0.0
    %3124 = vmatprep.subr.mxu0 0.0
    %3125 = vmatpush1.msra.mxu0 0.0
    %3126 = vmatprep.subr.mxu0 0.0
    %3127 = vmatpush1.msra.mxu0 0.0
    %3128 = vmatprep.subr.mxu0 0.0
    %3129 = vmatpush1.msra.mxu0 0.0
    %3130 = vmatprep.subr.mxu0 0.0
    %3131 = vmatpush1.msra.mxu0 0.0
    %3132 = vmatprep.mubr.f32.mxu0 0.0
    %3133 = vmatmul.mubr.f32.gmra.mrb[0].mxu0 %v3066
    %v3134 = vpop.f32.mrb[0].mxu0
    %v3135 = vadd.f32 0.0, %v3134
    %v3136 = vpop.f32.mrb[0].mxu0
    %3137 = vdwg.mxu0
    %3138 = vrot.lane.b32.xlu0 %v1983, 112
    %v3139 = vpop.permute.xlu0 %3138
    %v3142 = vsel %vm206, %v2680, 0
    %3144 = vmatprep.subr.mxu0 0.0
    %3145 = vmatpush1.msra.mxu0 %v3139
    %3146 = vmatprep.subr.mxu0 0.0
    %3147 = vmatpush1.msra.mxu0 0.0
    %3148 = vmatprep.subr.mxu0 0.0
    %3149 = vmatpush1.msra.mxu0 0.0
    %3150 = vmatprep.subr.mxu0 0.0
    %3151 = vmatpush1.msra.mxu0 0.0
    %3152 = vmatprep.subr.mxu0 0.0
    %3153 = vmatpush1.msra.mxu0 0.0
    %3154 = vmatprep.subr.mxu0 0.0
    %3155 = vmatpush1.msra.mxu0 0.0
    %3156 = vmatprep.subr.mxu0 0.0
    %3157 = vmatpush1.msra.mxu0 0.0
    %3158 = vmatprep.subr.mxu0 0.0
    %3159 = vmatpush1.msra.mxu0 0.0
    %3160 = vmatprep.subr.mxu0 0.0
    %3161 = vmatpush1.msra.mxu0 0.0
    %3162 = vmatprep.subr.mxu0 0.0
    %3163 = vmatpush1.msra.mxu0 0.0
    %3164 = vmatprep.subr.mxu0 0.0
    %3165 = vmatpush1.msra.mxu0 0.0
    %3166 = vmatprep.subr.mxu0 0.0
    %3167 = vmatpush1.msra.mxu0 0.0
    %3168 = vmatprep.subr.mxu0 0.0
    %3169 = vmatpush1.msra.mxu0 0.0
    %3170 = vmatprep.subr.mxu0 0.0
    %3171 = vmatpush1.msra.mxu0 0.0
    %3172 = vmatprep.subr.mxu0 0.0
    %3173 = vmatpush1.msra.mxu0 0.0
    %3174 = vmatprep.subr.mxu0 0.0
    %3175 = vmatpush1.msra.mxu0 0.0
    %3176 = vmatprep.subr.mxu0 0.0
    %3177 = vmatpush1.msra.mxu0 0.0
    %3178 = vmatprep.subr.mxu0 0.0
    %3179 = vmatpush1.msra.mxu0 0.0
    %3180 = vmatprep.subr.mxu0 0.0
    %3181 = vmatpush1.msra.mxu0 0.0
    %3182 = vmatprep.subr.mxu0 0.0
    %3183 = vmatpush1.msra.mxu0 0.0
    %3184 = vmatprep.subr.mxu0 0.0
    %3185 = vmatpush1.msra.mxu0 0.0
    %3186 = vmatprep.subr.mxu0 0.0
    %3187 = vmatpush1.msra.mxu0 0.0
    %3188 = vmatprep.subr.mxu0 0.0
    %3189 = vmatpush1.msra.mxu0 0.0
    %3190 = vmatprep.subr.mxu0 0.0
    %3191 = vmatpush1.msra.mxu0 0.0
    %3192 = vmatprep.subr.mxu0 0.0
    %3193 = vmatpush1.msra.mxu0 0.0
    %3194 = vmatprep.subr.mxu0 0.0
    %3195 = vmatpush1.msra.mxu0 0.0
    %3196 = vmatprep.subr.mxu0 0.0
    %3197 = vmatpush1.msra.mxu0 0.0
    %3198 = vmatprep.subr.mxu0 0.0
    %3199 = vmatpush1.msra.mxu0 0.0
    %3200 = vmatprep.subr.mxu0 0.0
    %3201 = vmatpush1.msra.mxu0 0.0
    %3202 = vmatprep.subr.mxu0 0.0
    %3203 = vmatpush1.msra.mxu0 0.0
    %3204 = vmatprep.subr.mxu0 0.0
    %3205 = vmatpush1.msra.mxu0 0.0
    %3206 = vmatprep.subr.mxu0 0.0
    %3207 = vmatpush1.msra.mxu0 0.0
    %3208 = vmatprep.mubr.f32.mxu0 0.0
    %3209 = vmatmul.mubr.f32.gmra.mrb[0].mxu0 %v3142
    %v3210 = vpop.f32.mrb[0].mxu0
    %v3211 = vadd.f32 0.0, %v3210
    %v3212 = vpop.f32.mrb[0].mxu0
    %3213 = vdwg.mxu0
    %3214 = vrot.lane.b32.xlu0 %v1985, 112
    %v3215 = vpop.permute.xlu0 %3214
    %v3218 = vsel %vm206, %v2681, 0
    %3220 = vmatprep.subr.mxu0 0.0
    %3221 = vmatpush1.msra.mxu0 %v3215
    %3222 = vmatprep.subr.mxu0 0.0
    %3223 = vmatpush1.msra.mxu0 0.0
    %3224 = vmatprep.subr.mxu0 0.0
    %3225 = vmatpush1.msra.mxu0 0.0
    %3226 = vmatprep.subr.mxu0 0.0
    %3227 = vmatpush1.msra.mxu0 0.0
    %3228 = vmatprep.subr.mxu0 0.0
    %3229 = vmatpush1.msra.mxu0 0.0
    %3230 = vmatprep.subr.mxu0 0.0
    %3231 = vmatpush1.msra.mxu0 0.0
    %3232 = vmatprep.subr.mxu0 0.0
    %3233 = vmatpush1.msra.mxu0 0.0
    %3234 = vmatprep.subr.mxu0 0.0
    %3235 = vmatpush1.msra.mxu0 0.0
    %3236 = vmatprep.subr.mxu0 0.0
    %3237 = vmatpush1.msra.mxu0 0.0
    %3238 = vmatprep.subr.mxu0 0.0
    %3239 = vmatpush1.msra.mxu0 0.0
    %3240 = vmatprep.subr.mxu0 0.0
    %3241 = vmatpush1.msra.mxu0 0.0
    %3242 = vmatprep.subr.mxu0 0.0
    %3243 = vmatpush1.msra.mxu0 0.0
    %3244 = vmatprep.subr.mxu0 0.0
    %3245 = vmatpush1.msra.mxu0 0.0
    %3246 = vmatprep.subr.mxu0 0.0
    %3247 = vmatpush1.msra.mxu0 0.0
    %3248 = vmatprep.subr.mxu0 0.0
    %3249 = vmatpush1.msra.mxu0 0.0
    %3250 = vmatprep.subr.mxu0 0.0
    %3251 = vmatpush1.msra.mxu0 0.0
    %3252 = vmatprep.subr.mxu0 0.0
    %3253 = vmatpush1.msra.mxu0 0.0
    %3254 = vmatprep.subr.mxu0 0.0
    %3255 = vmatpush1.msra.mxu0 0.0
    %3256 = vmatprep.subr.mxu0 0.0
    %3257 = vmatpush1.msra.mxu0 0.0
    %3258 = vmatprep.subr.mxu0 0.0
    %3259 = vmatpush1.msra.mxu0 0.0
    %3260 = vmatprep.subr.mxu0 0.0
    %3261 = vmatpush1.msra.mxu0 0.0
    %3262 = vmatprep.subr.mxu0 0.0
    %3263 = vmatpush1.msra.mxu0 0.0
    %3264 = vmatprep.subr.mxu0 0.0
    %3265 = vmatpush1.msra.mxu0 0.0
    %3266 = vmatprep.subr.mxu0 0.0
    %3267 = vmatpush1.msra.mxu0 0.0
    %3268 = vmatprep.subr.mxu0 0.0
    %3269 = vmatpush1.msra.mxu0 0.0
    %3270 = vmatprep.subr.mxu0 0.0
    %3271 = vmatpush1.msra.mxu0 0.0
    %3272 = vmatprep.subr.mxu0 0.0
    %3273 = vmatpush1.msra.mxu0 0.0
    %3274 = vmatprep.subr.mxu0 0.0
    %3275 = vmatpush1.msra.mxu0 0.0
    %3276 = vmatprep.subr.mxu0 0.0
    %3277 = vmatpush1.msra.mxu0 0.0
    %3278 = vmatprep.subr.mxu0 0.0
    %3279 = vmatpush1.msra.mxu0 0.0
    %3280 = vmatprep.subr.mxu0 0.0
    %3281 = vmatpush1.msra.mxu0 0.0
    %3282 = vmatprep.subr.mxu0 0.0
    %3283 = vmatpush1.msra.mxu0 0.0
    %3284 = vmatprep.mubr.f32.mxu0 0.0
    %3285 = vmatmul.mubr.f32.gmra.mrb[0].mxu0 %v3218
    %v3286 = vpop.f32.mrb[0].mxu0
    %v3287 = vadd.f32 0.0, %v3286
    %v3288 = vpop.f32.mrb[0].mxu0
    %3289 = vdwg.mxu0
    %3292 = vrot.lane.b32.xlu0 %v2907, 8
    %v3293 = vpop.permute.xlu0 %3292
    %3294 = vrot.lane.b32.xlu0 %v2983, 8
    %v3295 = vpop.permute.xlu0 %3294
    %3300 = vrot.lane.b32.xlu0 %v3059, 16
    %v3301 = vpop.permute.xlu0 %3300
    %3302 = vrot.lane.b32.xlu0 %v3135, 16
    %v3303 = vpop.permute.xlu0 %3302
    %3308 = vrot.lane.b32.xlu0 %v3211, 24
    %v3309 = vpop.permute.xlu0 %3308
    %3310 = vrot.lane.b32.xlu0 %v3287, 24
    %v3311 = vpop.permute.xlu0 %3310
    %v3314 = vsel %vm206, %v2755, %v3293
    %v3315 = vsel %vm206, %v2831, %v3295
    %v3316 = vsel %vm1535, %v3314, %v3301
    %v3317 = vsel %vm1535, %v3315, %v3303
    %v3318 = vsel %vm1538, %v3316, %v3309
    %v3319 = vsel %vm1538, %v3317, %v3311
    %3324 = vrot.lane.b32.xlu0 %v1837, 32
    %v3325 = vpop.permute.xlu0 %3324
    %3326 = vrot.lane.b32.xlu0 %v1838, 32
    %v3327 = vpop.permute.xlu0 %3326
    %3328 = vrot.lane.b32.xlu0 %v1839, 32
    %v3329 = vpop.permute.xlu0 %3328
    %3330 = vrot.lane.b32.xlu0 %v1840, 32
    %v3331 = vpop.permute.xlu0 %3330
    %v3337 = vsel %vm67, %v3318, 0
    %v3340 = vsel %vm67, %v3319, 0
    %3342 = vmatprep.subr.mxu0 0.0
    %3343 = vmatpush1.msra.mxu0 %v3325
    %3344 = vmatprep.subr.mxu0 0.0
    %3345 = vmatpush1.msra.mxu0 %v3327
    %3346 = vmatprep.subr.mxu0 0.0
    %3347 = vmatpush1.msra.mxu0 %v3329
    %3348 = vmatprep.subr.mxu0 0.0
    %3349 = vmatpush1.msra.mxu0 %v3331
    %3350 = vmatprep.subr.mxu0 0.0
    %3351 = vmatpush1.msra.mxu0 0.0
    %3352 = vmatprep.subr.mxu0 0.0
    %3353 = vmatpush1.msra.mxu0 0.0
    %3354 = vmatprep.subr.mxu0 0.0
    %3355 = vmatpush1.msra.mxu0 0.0
    %3356 = vmatprep.subr.mxu0 0.0
    %3357 = vmatpush1.msra.mxu0 0.0
    %3358 = vmatprep.subr.mxu0 0.0
    %3359 = vmatpush1.msra.mxu0 0.0
    %3360 = vmatprep.subr.mxu0 0.0
    %3361 = vmatpush1.msra.mxu0 0.0
    %3362 = vmatprep.subr.mxu0 0.0
    %3363 = vmatpush1.msra.mxu0 0.0
    %3364 = vmatprep.subr.mxu0 0.0
    %3365 = vmatpush1.msra.mxu0 0.0
    %3366 = vmatprep.subr.mxu0 0.0
    %3367 = vmatpush1.msra.mxu0 0.0
    %3368 = vmatprep.subr.mxu0 0.0
    %3369 = vmatpush1.msra.mxu0 0.0
    %3370 = vmatprep.subr.mxu0 0.0
    %3371 = vmatpush1.msra.mxu0 0.0
    %3372 = vmatprep.subr.mxu0 0.0
    %3373 = vmatpush1.msra.mxu0 0.0
    %3374 = vmatprep.subr.mxu0 0.0
    %3375 = vmatpush1.msra.mxu0 0.0
    %3376 = vmatprep.subr.mxu0 0.0
    %3377 = vmatpush1.msra.mxu0 0.0
    %3378 = vmatprep.subr.mxu0 0.0
    %3379 = vmatpush1.msra.mxu0 0.0
    %3380 = vmatprep.subr.mxu0 0.0
    %3381 = vmatpush1.msra.mxu0 0.0
    %3382 = vmatprep.subr.mxu0 0.0
    %3383 = vmatpush1.msra.mxu0 0.0
    %3384 = vmatprep.subr.mxu0 0.0
    %3385 = vmatpush1.msra.mxu0 0.0
    %3386 = vmatprep.subr.mxu0 0.0
    %3387 = vmatpush1.msra.mxu0 0.0
    %3388 = vmatprep.subr.mxu0 0.0
    %3389 = vmatpush1.msra.mxu0 0.0
    %3390 = vmatprep.subr.mxu0 0.0
    %3391 = vmatpush1.msra.mxu0 0.0
    %3392 = vmatprep.subr.mxu0 0.0
    %3393 = vmatpush1.msra.mxu0 0.0
    %3394 = vmatprep.subr.mxu0 0.0
    %3395 = vmatpush1.msra.mxu0 0.0
    %3396 = vmatprep.subr.mxu0 0.0
    %3397 = vmatpush1.msra.mxu0 0.0
    %3398 = vmatprep.subr.mxu0 0.0
    %3399 = vmatpush1.msra.mxu0 0.0
    %3400 = vmatprep.subr.mxu0 0.0
    %3401 = vmatpush1.msra.mxu0 0.0
    %3402 = vmatprep.subr.mxu0 0.0
    %3403 = vmatpush1.msra.mxu0 0.0
    %3404 = vmatprep.subr.mxu0 0.0
    %3405 = vmatpush1.msra.mxu0 0.0
    %3406 = vmatprep.mubr.f32.mxu0 0.0
    %3407 = vmatmul.mubr.f32.gmra.mrb[0].mxu0 %v3337
    %v3408 = vpop.f32.mrb[0].mxu0
    %v3409 = vadd.f32 %v1856, %v3408
    %v3410 = vpop.f32.mrb[0].mxu0
    %3411 = vmatprep.mubr.f32.mxu0 0.0
    %3412 = vmatmul.mubr.f32.gmra.mrb[0].mxu0 %v3340
    %v3413 = vpop.f32.mrb[0].mxu0
    %v3414 = vadd.f32 %v1856, %v3413
    %v3415 = vpop.f32.mrb[0].mxu0
    %3416 = vdwg.mxu0
    %v3417 = vadd.f32 %v1835, %v3409
    %v3418 = vadd.f32 %v1836, %v3414
    %v3419 = vsel %vm67, %v3417, 0.0
    %3420 = vadd.xlane.f32.xlu0 %v3419
    %v3421 = vpop.xlane.xlu0 %3420
    %v3422 = vsel %vm67, %v3418, 0.0
    %3423 = vadd.xlane.f32.xlu0 %v3422
    %v3424 = vpop.xlane.xlu0 %3423
    %v3425 = vmul.f32 %v3421, %v74
    %v3426 = vmul.f32 %v3424, %v74
    %v3427 = vsub.f32 %v3417, %v3425
    %v3428 = vsub.f32 %v3418, %v3426
    %v3429 = vmul.f32 %v3427, %v3427
    %v3430 = vmul.f32 %v3428, %v3428
    %v3431 = vsel %vm67, %v3429, 0.0
    %3432 = vadd.xlane.f32.xlu0 %v3431
    %v3433 = vpop.xlane.xlu0 %3432
    %v3434 = vsel %vm67, %v3430, 0.0
    %3435 = vadd.xlane.f32.xlu0 %v3434
    %v3436 = vpop.xlane.xlu0 %3435
    %v3437 = vmul.f32 %v3433, %v74
    %v3438 = vmul.f32 %v3436, %v74
    %v3439 = vadd.f32 %v3437, 1e-05
    %v3440 = vadd.f32 %v3438, 1e-05
    %v3441 = vrsqrt.pop %v3439
    %v3442 = vrsqrt.pop %v3440
    %v3443 = vmul.f32 %v3427, %v3441
    %v3444 = vmul.f32 %v3428, %v3442
    %v3445 = vmul.f32 %v3443, %v1857
    %v3446 = vmul.f32 %v3444, %v1857
    %v3447 = vadd.f32 %v3445, %v1858
    %v3448 = vadd.f32 %v3446, %v1858
    %v3450 = vsel %vm67, %v3447, 0
    %v3453 = vsel %vm67, %v3448, 0
    %3455 = vmatprep.subr.mxu0 0.0
    %3456 = vmatpush1.msra.mxu0 %v1841
    %3457 = vmatprep.subr.mxu0 0.0
    %3458 = vmatpush1.msra.mxu0 %v1842
    %3459 = vmatprep.subr.mxu0 0.0
    %3460 = vmatpush1.msra.mxu0 %v1843
    %3461 = vmatprep.subr.mxu0 0.0
    %3462 = vmatpush1.msra.mxu0 %v1844
    %3463 = vmatprep.subr.mxu0 0.0
    %3464 = vmatpush1.msra.mxu0 0.0
    %3465 = vmatprep.subr.mxu0 0.0
    %3466 = vmatpush1.msra.mxu0 0.0
    %3467 = vmatprep.subr.mxu0 0.0
    %3468 = vmatpush1.msra.mxu0 0.0
    %3469 = vmatprep.subr.mxu0 0.0
    %3470 = vmatpush1.msra.mxu0 0.0
    %3471 = vmatprep.subr.mxu0 0.0
    %3472 = vmatpush1.msra.mxu0 0.0
    %3473 = vmatprep.subr.mxu0 0.0
    %3474 = vmatpush1.msra.mxu0 0.0
    %3475 = vmatprep.subr.mxu0 0.0
    %3476 = vmatpush1.msra.mxu0 0.0
    %3477 = vmatprep.subr.mxu0 0.0
    %3478 = vmatpush1.msra.mxu0 0.0
    %3479 = vmatprep.subr.mxu0 0.0
    %3480 = vmatpush1.msra.mxu0 0.0
    %3481 = vmatprep.subr.mxu0 0.0
    %3482 = vmatpush1.msra.mxu0 0.0
    %3483 = vmatprep.subr.mxu0 0.0
    %3484 = vmatpush1.msra.mxu0 0.0
    %3485 = vmatprep.subr.mxu0 0.0
    %3486 = vmatpush1.msra.mxu0 0.0
    %3487 = vmatprep.subr.mxu0 0.0
    %3488 = vmatpush1.msra.mxu0 0.0
    %3489 = vmatprep.subr.mxu0 0.0
    %3490 = vmatpush1.msra.mxu0 0.0
    %3491 = vmatprep.subr.mxu0 0.0
    %3492 = vmatpush1.msra.mxu0 0.0
    %3493 = vmatprep.subr.mxu0 0.0
    %3494 = vmatpush1.msra.mxu0 0.0
    %3495 = vmatprep.subr.mxu0 0.0
    %3496 = vmatpush1.msra.mxu0 0.0
    %3497 = vmatprep.subr.mxu0 0.0
    %3498 = vmatpush1.msra.mxu0 0.0
    %3499 = vmatprep.subr.mxu0 0.0
    %3500 = vmatpush1.msra.mxu0 0.0
    %3501 = vmatprep.subr.mxu0 0.0
    %3502 = vmatpush1.msra.mxu0 0.0
    %3503 = vmatprep.subr.mxu0 0.0
    %3504 = vmatpush1.msra.mxu0 0.0
    %3505 = vmatprep.subr.mxu0 0.0
    %3506 = vmatpush1.msra.mxu0 0.0
    %3507 = vmatprep.subr.mxu0 0.0
    %3508 = vmatpush1.msra.mxu0 0.0
    %3509 = vmatprep.subr.mxu0 0.0
    %3510 = vmatpush1.msra.mxu0 0.0
    %3511 = vmatprep.subr.mxu0 0.0
    %3512 = vmatpush1.msra.mxu0 0.0
    %3513 = vmatprep.subr.mxu0 0.0
    %3514 = vmatpush1.msra.mxu0 0.0
    %3515 = vmatprep.subr.mxu0 0.0
    %3516 = vmatpush1.msra.mxu0 0.0
    %3517 = vmatprep.subr.mxu0 0.0
    %3518 = vmatpush1.msra.mxu0 0.0
    %3519 = vmatprep.mubr.f32.mxu0 0.0
    %3520 = vmatmul.mubr.f32.gmra.mrb[0].mxu0 %v3450
    %v3521 = vpop.f32.mrb[0].mxu0
    %v3522 = vadd.f32 %v1859, %v3521
    %v3523 = vpop.f32.mrb[0].mxu0
    %3524 = vmatprep.mubr.f32.mxu0 0.0
    %3525 = vmatmul.mubr.f32.gmra.mrb[0].mxu0 %v3453
    %v3526 = vpop.f32.mrb[0].mxu0
    %v3527 = vadd.f32 %v1859, %v3526
    %v3528 = vpop.f32.mrb[0].mxu0
    %3529 = vdwg.mxu0
    %v3530 = vmax.f32 %v3522, 0.0
    %v3531 = vmax.f32 %v3527, 0.0
    %v3533 = vsel %vm1753, %v3530, 0
    %v3536 = vsel %vm1753, %v3531, 0
    %3538 = vmatprep.subr.mxu0 0.0
    %3539 = vmatpush1.msra.mxu0 %v1845
    %3540 = vmatprep.subr.mxu0 0.0
    %3541 = vmatpush1.msra.mxu0 %v1846
    %3542 = vmatprep.subr.mxu0 0.0
    %3543 = vmatpush1.msra.mxu0 %v1847
    %3544 = vmatprep.subr.mxu0 0.0
    %3545 = vmatpush1.msra.mxu0 %v1848
    %3546 = vmatprep.subr.mxu0 0.0
    %3547 = vmatpush1.msra.mxu0 %v1849
    %3548 = vmatprep.subr.mxu0 0.0
    %3549 = vmatpush1.msra.mxu0 %v1850
    %3550 = vmatprep.subr.mxu0 0.0
    %3551 = vmatpush1.msra.mxu0 %v1851
    %3552 = vmatprep.subr.mxu0 0.0
    %3553 = vmatpush1.msra.mxu0 %v1852
    %3554 = vmatprep.subr.mxu0 0.0
    %3555 = vmatpush1.msra.mxu0 0.0
    %3556 = vmatprep.subr.mxu0 0.0
    %3557 = vmatpush1.msra.mxu0 0.0
    %3558 = vmatprep.subr.mxu0 0.0
    %3559 = vmatpush1.msra.mxu0 0.0
    %3560 = vmatprep.subr.mxu0 0.0
    %3561 = vmatpush1.msra.mxu0 0.0
    %3562 = vmatprep.subr.mxu0 0.0
    %3563 = vmatpush1.msra.mxu0 0.0
    %3564 = vmatprep.subr.mxu0 0.0
    %3565 = vmatpush1.msra.mxu0 0.0
    %3566 = vmatprep.subr.mxu0 0.0
    %3567 = vmatpush1.msra.mxu0 0.0
    %3568 = vmatprep.subr.mxu0 0.0
    %3569 = vmatpush1.msra.mxu0 0.0
    %3570 = vmatprep.subr.mxu0 0.0
    %3571 = vmatpush1.msra.mxu0 0.0
    %3572 = vmatprep.subr.mxu0 0.0
    %3573 = vmatpush1.msra.mxu0 0.0
    %3574 = vmatprep.subr.mxu0 0.0
    %3575 = vmatpush1.msra.mxu0 0.0
    %3576 = vmatprep.subr.mxu0 0.0
    %3577 = vmatpush1.msra.mxu0 0.0
    %3578 = vmatprep.subr.mxu0 0.0
    %3579 = vmatpush1.msra.mxu0 0.0
    %3580 = vmatprep.subr.mxu0 0.0
    %3581 = vmatpush1.msra.mxu0 0.0
    %3582 = vmatprep.subr.mxu0 0.0
    %3583 = vmatpush1.msra.mxu0 0.0
    %3584 = vmatprep.subr.mxu0 0.0
    %3585 = vmatpush1.msra.mxu0 0.0
    %3586 = vmatprep.subr.mxu0 0.0
    %3587 = vmatpush1.msra.mxu0 0.0
    %3588 = vmatprep.subr.mxu0 0.0
    %3589 = vmatpush1.msra.mxu0 0.0
    %3590 = vmatprep.subr.mxu0 0.0
    %3591 = vmatpush1.msra.mxu0 0.0
    %3592 = vmatprep.subr.mxu0 0.0
    %3593 = vmatpush1.msra.mxu0 0.0
    %3594 = vmatprep.subr.mxu0 0.0
    %3595 = vmatpush1.msra.mxu0 0.0
    %3596 = vmatprep.subr.mxu0 0.0
    %3597 = vmatpush1.msra.mxu0 0.0
    %3598 = vmatprep.subr.mxu0 0.0
    %3599 = vmatpush1.msra.mxu0 0.0
    %3600 = vmatprep.subr.mxu0 0.0
    %3601 = vmatpush1.msra.mxu0 0.0
    %3602 = vmatprep.mubr.f32.mxu0 0.0
    %3603 = vmatmul.mubr.f32.gmra.mrb[0].mxu0 %v3533
    %v3604 = vpop.f32.mrb[0].mxu0
    %v3605 = vadd.f32 %v1860, %v3604
    %v3606 = vpop.f32.mrb[0].mxu0
    %3607 = vmatprep.mubr.f32.mxu0 0.0
    %3608 = vmatmul.mubr.f32.gmra.mrb[0].mxu0 %v3536
    %v3609 = vpop.f32.mrb[0].mxu0
    %v3610 = vadd.f32 %v1860, %v3609
    %v3611 = vpop.f32.mrb[0].mxu0
    %3612 = vdwg.mxu0
    %v3613 = vadd.f32 %v3417, %v3605
    %v3614 = vadd.f32 %v3418, %v3610
    %v3615 = vld [vmem:[%s2 + $0x1a0] ss:$0 sm:$0xff]
    %v3616 = vld [vmem:[%s2 + $0x1a1] ss:$0 sm:$0xff]
    %v3617 = vsel %vm67, %v3613, 0.0
    %3618 = vadd.xlane.f32.xlu0 %v3617
    %v3619 = vpop.xlane.xlu0 %3618
    %v3620 = vsel %vm67, %v3614, 0.0
    %3621 = vadd.xlane.f32.xlu0 %v3620
    %v3622 = vpop.xlane.xlu0 %3621
    %v3623 = vmul.f32 %v3619, %v74
    %v3624 = vmul.f32 %v3622, %v74
    %v3625 = vsub.f32 %v3613, %v3623
    %v3626 = vsub.f32 %v3614, %v3624
    %v3627 = vmul.f32 %v3625, %v3625
    %v3628 = vmul.f32 %v3626, %v3626
    %v3629 = vsel %vm67, %v3627, 0.0
    %3630 = vadd.xlane.f32.xlu0 %v3629
    %v3631 = vpop.xlane.xlu0 %3630
    %v3632 = vsel %vm67, %v3628, 0.0
    %3633 = vadd.xlane.f32.xlu0 %v3632
    %v3634 = vpop.xlane.xlu0 %3633
    %v3635 = vmul.f32 %v3631, %v74
    %v3636 = vmul.f32 %v3634, %v74
    %v3637 = vadd.f32 %v3635, 1e-05
    %v3638 = vadd.f32 %v3636, 1e-05
    %v3639 = vrsqrt.pop %v3637
    %v3640 = vrsqrt.pop %v3638
    %v3641 = vmul.f32 %v3625, %v3639
    %v3642 = vmul.f32 %v3626, %v3640
    %v3643 = vmul.f32 %v3641, %v3615
    %v3644 = vmul.f32 %v3642, %v3615
    %v3645 = vadd.f32 %v3643, %v3616
    %v3646 = vadd.f32 %v3644, %v3616
    %3647 = vst.msk [vmem:[#allocation2] sm:$0xff] %vm67, %v3645
    %3648 = vst.msk [vmem:[#allocation2 + $0x8] sm:$0xff] %vm67, %v3646
    // Predicated region
    $region14: #{encoder_forward.1} parent=1 // pred_check
      _
    $region15: #{encoder_forward.1} parent=1 // pred_check_branch
      %3650 = sbr.rel (0) target = $region17
    $region16: #{encoder_forward.1} parent=1 // pred_region
      %s3652 = ssub.s32 256, 256
      %3653 = vsyncadd [#allocation3], %s3652
      %s3654 = sshll.u32 [#allocation2], 4
      %s3655 = int_to_ptr.vmem [resolvable:$true] %s3654
      %3660 = dma.vmem_to_hbm [thread:$0]  %s3655, 256, %s3, [#allocation3], 128, 128, 8
    $region17: #{encoder_forward.1} parent=1 // pred_fallthru
      _
    // Predicated region
    $region18: #{encoder_forward.1} parent=1 // pred_check
      _
    $region19: #{encoder_forward.1} parent=1 // pred_check_branch
      %3662 = sbr.rel (0) target = $region21
    $region20: #{encoder_forward.1} parent=1 // pred_region
      %3663 = dma.done [#allocation3], 256
    $region21: #{encoder_forward.1} parent=1 // pred_fallthru
      _
    %3664 = vsyncpa [#allocation3], 1

</llo_original>
